<compile_context>
chip_gen: v7x
topology: tpu7x:2x2x1
jax: 0.10.0
libtpu: 0.0.40
codegen_flags: <defaults>
</compile_context>

<pallas_src>
import functools

import jax
import jax.numpy as jnp
from jax import lax
from jax.experimental import pallas as pl
from jax.experimental.pallas import tpu as pltpu


def _lstm_recurrent_kernel(*refs, num_layers, hidden, block_t, unroll,
                           t_total, mask_tail, fuse_k):
    """One grid step == one block of `block_t` timesteps.

    Positional ref layout:
      inputs : gx0      (TT, Bp, 4H) mm_dtype        hoisted layer-0 x-proj (+bias)
               whh0_hbm (H, 4H)      mm_dtype, ANY   layer-0 hidden->hidden
               w_rest_hbm[*]         mm_dtype, ANY   layers>=1 weights
                                                     ((2H,4H) per layer if fuse_k
                                                      else (H,4H) x 2 per layer)
               b[l]     (1, 4H)      f32             layers>=1 pre-summed biases
      output : y        (TT, Bp, H)  f32             top-layer hidden state
      scratch: h_sc, c_sc (L, Bp, H) f32             persistent state
               whh0_vmem, w_rest_vmem[*]             single-buffered weight copies

    Gate column order inside the 4H axis is (i, f, o, g).
    """
    L = num_layers
    H = hidden
    n_w = L - 1
    per_layer = 1 if fuse_k else 2
    n_wr = n_w * per_layer

    gx0_ref = refs[0]
    whh0_hbm = refs[1]
    w_rest_hbm = refs[2:2 + n_wr]
    b_refs = refs[2 + n_wr:2 + n_wr + n_w]
    n_in = 2 + n_wr + n_w
    y_ref = refs[n_in]
    h_sc = refs[n_in + 1]
    c_sc = refs[n_in + 2]
    whh0_vmem = refs[n_in + 3]
    w_rest_vmem = refs[n_in + 4:n_in + 4 + n_wr]

    blk = pl.program_id(0)

    @pl.when(blk == 0)
    def _():
        # Zero-init persistent state and DMA the grid-invariant weights ONCE
        # into single-buffered VMEM scratch (avoids the default 2x
        # double-buffering of constant-index inputs).
        h_sc[...] = jnp.zeros_like(h_sc)
        c_sc[...] = jnp.zeros_like(c_sc)
        pltpu.sync_copy(whh0_hbm, whh0_vmem)
        for w_src, w_dst in zip(w_rest_hbm, w_rest_vmem):
            pltpu.sync_copy(w_src, w_dst)

    # Hoist weight / bias / state reads out of the serial time loop.
    whh0 = whh0_vmem[...]
    w_rest = tuple(r[...] for r in w_rest_vmem)
    bias = tuple(b_refs[l][...] for l in range(n_w))          # (1, 4H) f32
    mm_dtype = whh0.dtype
    h0 = tuple(h_sc[l] for l in range(L))
    c0 = tuple(c_sc[l] for l in range(L))

    # Number of valid (non-padded) timesteps inside this block.
    valid = (t_total - blk * block_t) if mask_tail else None

    def step(t, carry):
        hs, cs = carry
        new_hs, new_cs = [], []
        inp = None
        for l in range(L):
            h_prev, c_prev = hs[l], cs[l]
            if l == 0:
                gates = (gx0_ref[t].astype(jnp.float32)
                         + jnp.dot(h_prev.astype(mm_dtype), whh0,
                                   preferred_element_type=jnp.float32))
            elif fuse_k:
                # One MXU issue: [inp ; h_prev] @ [[W_ih] ; [W_hh]]  (+ bias).
                xh = jnp.concatenate([inp, h_prev], axis=1).astype(mm_dtype)
                gates = (jnp.dot(xh, w_rest[l - 1],
                                 preferred_element_type=jnp.float32)
                         + bias[l - 1])
            else:
                gates = (jnp.dot(inp.astype(mm_dtype), w_rest[2 * (l - 1)],
                                 preferred_element_type=jnp.float32)
                         + jnp.dot(h_prev.astype(mm_dtype),
                                   w_rest[2 * (l - 1) + 1],
                                   preferred_element_type=jnp.float32)
                         + bias[l - 1])
            # Gate order (i, f, o, g): one sigmoid over 3H, one tanh over H.
            sig = jax.nn.sigmoid(gates[:, :3 * H])
            g_g = jnp.tanh(gates[:, 3 * H:])
            i_g = sig[:, 0:H]
            f_g = sig[:, H:2 * H]
            o_g = sig[:, 2 * H:3 * H]
            c_new = f_g * c_prev + i_g * g_g
            h_new = o_g * jnp.tanh(c_new)
            if mask_tail:
                keep = t < valid            # freeze state on padded tail steps
                c_new = jnp.where(keep, c_new, c_prev)
                h_new = jnp.where(keep, h_new, h_prev)
            new_hs.append(h_new)
            new_cs.append(c_new)
            inp = h_new
        y_ref[t] = inp.astype(y_ref.dtype)
        return tuple(new_hs), tuple(new_cs)

    hs, cs = lax.fori_loop(0, block_t, step, (h0, c0), unroll=unroll)

    # Carry the state across time blocks.
    for l in range(L):
        h_sc[l] = hs[l]
        c_sc[l] = cs[l]


def streamable_lstm(x_bct, w_ih, w_hh, b_ih, b_hh, *, skip=True,
                    block_t=None, matmul_dtype=jnp.bfloat16,
                    vmem_block_budget_bytes=16 << 20):
    """StreamableLSTM forward (bidirectional=False).

    x_bct: (B, C, T) float32, PyTorch conv layout.
    Weights in PyTorch LSTM layout (gate order i, f, g, o):
      w_ih: (L, 4H, C), w_hh: (L, 4H, H), b_ih/b_hh: (L, 4H), with H == C.
    """
    B, C, T = x_bct.shape
    L, fourH, _ = w_ih.shape
    H = fourH // 4
    assert H == C, "StreamableLSTM uses hidden == input dimension"
    assert L >= 1

    mm_item = jnp.dtype(matmul_dtype).itemsize
    # Fused-K path needs the in-kernel lane-dim concat to be tile-aligned.
    fuse_k = (H % 128 == 0)

    # --- weight prep (cheap one-time XLA work) -----------------------------
    # Reorder gate rows (i, f, g, o) -> (i, f, o, g).
    perm = jnp.concatenate([
        jnp.arange(0 * H, 1 * H), jnp.arange(1 * H, 2 * H),
        jnp.arange(3 * H, 4 * H), jnp.arange(2 * H, 3 * H)])
    w_ih_r = w_ih[:, perm, :]                                   # (L, 4H, C)
    w_hh_r = w_hh[:, perm, :]                                   # (L, 4H, H)
    b_sum = (b_ih + b_hh)[:, perm].astype(jnp.float32)          # (L, 4H)

    wih0_t = jnp.transpose(w_ih_r[0]).astype(matmul_dtype)      # (C, 4H)
    whh0_t = jnp.transpose(w_hh_r[0]).astype(matmul_dtype)      # (H, 4H)

    w_rest = []                                                 # layers >= 1
    for l in range(1, L):
        wih_l = jnp.transpose(w_ih_r[l]).astype(matmul_dtype)   # (H, 4H)
        whh_l = jnp.transpose(w_hh_r[l]).astype(matmul_dtype)   # (H, 4H)
        if fuse_k:
            w_rest.append(jnp.concatenate([wih_l, whh_l], axis=0))  # (2H, 4H)
        else:
            w_rest.append(wih_l)
            w_rest.append(whh_l)
    biases = [b_sum[l].reshape(1, fourH) for l in range(1, L)]
    n_w = L - 1

    x_tbc = jnp.transpose(x_bct, (2, 0, 1)).astype(jnp.float32)     # (T, B, C)

    # --- hoisted layer-0 input projection (one large matmul) ---------------
    gx0 = jnp.dot(x_tbc.reshape(T * B, C).astype(matmul_dtype), wih0_t,
                  preferred_element_type=jnp.float32)
    gx0 = gx0.reshape(T, B, fourH) + b_sum[0]
    # Store in the matmul dtype: halves the dominant HBM stream + VMEM tenant.
    gx0 = gx0.astype(matmul_dtype)

    # --- batch padding to sublane multiple ----------------------------------
    B_pad = max(8, ((B + 7) // 8) * 8)
    if B_pad != B:
        gx0 = jnp.pad(gx0, ((0, 0), (0, B_pad - B), (0, 0)))

    # --- VMEM-budget-driven time blocking -----------------------------------
    lane_H = max(H, 128)
    lane_4H = max(fourH, 128)
    if block_t is None:
        block_t = 8
        for cand in (256, 128, 64, 32, 16, 8):
            blocked = 2 * cand * B_pad * (lane_4H * mm_item + lane_H * 4)
            if blocked <= vmem_block_budget_bytes:
                block_t = cand
                break
        block_t = min(block_t, T)
    num_blocks = pl.cdiv(T, block_t)
    T_pad = num_blocks * block_t
    mask_tail = (T_pad != T)
    if mask_tail:
        gx0 = jnp.pad(gx0, ((0, T_pad - T), (0, 0), (0, 0)))

    # --- explicit VMEM limit -------------------------------------------------
    blocked_vmem = 2 * block_t * B_pad * (lane_4H * mm_item + lane_H * 4)
    weights_vmem = (H + n_w * 2 * H) * lane_4H * mm_item        # single-buffered
    state_vmem = 2 * L * B_pad * lane_H * 4
    bias_vmem = 2 * n_w * 8 * lane_4H * 4
    vmem_limit = int(blocked_vmem + weights_vmem + state_vmem + bias_vmem
                     + (4 << 20))
    vmem_limit = max(vmem_limit, 16 << 20)

    unroll = 1
    for u in (8, 4, 2):
        if block_t % u == 0:
            unroll = u
            break

    n_wr = len(w_rest)
    kernel = functools.partial(
        _lstm_recurrent_kernel, num_layers=L, hidden=H, block_t=block_t,
        unroll=unroll, t_total=T, mask_tail=mask_tail, fuse_k=fuse_k)

    in_specs = ([pl.BlockSpec((block_t, B_pad, fourH), lambda i: (i, 0, 0)),  # gx0
                 pl.BlockSpec(memory_space=pl.ANY)]                           # whh0
                + [pl.BlockSpec(memory_space=pl.ANY)] * n_wr                  # w_rest
                + [pl.BlockSpec((1, fourH), lambda i: (0, 0))] * n_w)         # biases
    scratch_shapes = ([pltpu.VMEM((L, B_pad, H), jnp.float32),   # h state
                       pltpu.VMEM((L, B_pad, H), jnp.float32),   # c state
                       pltpu.VMEM((H, fourH), matmul_dtype)]     # whh0 copy
                      + [pltpu.VMEM(w.shape, matmul_dtype) for w in w_rest])

    y_tbc = pl.pallas_call(
        kernel,
        out_shape=jax.ShapeDtypeStruct((T_pad, B_pad, H), jnp.float32),
        grid_spec=pltpu.PrefetchScalarGridSpec(
            num_scalar_prefetch=0,
            grid=(num_blocks,),
            in_specs=in_specs,
            out_specs=pl.BlockSpec((block_t, B_pad, H), lambda i: (i, 0, 0)),
            scratch_shapes=scratch_shapes,
        ),
        compiler_params=pltpu.CompilerParams(
            dimension_semantics=("arbitrary",),     # recurrent over time blocks
            vmem_limit_bytes=vmem_limit,
        ),
    )(gx0, whh0_t, *w_rest, *biases)

    y_tbc = y_tbc[:T, :B]

    if skip:
        y_tbc = y_tbc + x_tbc                       # residual skip (XLA, fused)

    # back to conv layout (B, C, T) == y.permute(1, 2, 0) in PyTorch
    return jnp.transpose(y_tbc, (1, 2, 0))


def _reference(x_bct, w_ih, w_hh, b_ih, b_hh):
    """Pure-JAX reference matching torch.nn.LSTM (gate order i,f,g,o) + skip."""
    B, C, T = x_bct.shape
    L, fourH, _ = w_ih.shape
    H = fourH // 4
    x_tbc = jnp.transpose(x_bct, (2, 0, 1))

    def step(carry, x_t):
        h, c = carry
        inp = x_t
        new_h, new_c = [], []
        for l in range(L):
            gates = inp @ w_ih[l].T + h[l] @ w_hh[l].T + b_ih[l] + b_hh[l]
            i_g = jax.nn.sigmoid(gates[:, 0 * H:1 * H])
            f_g = jax.nn.sigmoid(gates[:, 1 * H:2 * H])
            g_g = jnp.tanh(gates[:, 2 * H:3 * H])
            o_g = jax.nn.sigmoid(gates[:, 3 * H:4 * H])
            c_l = f_g * c[l] + i_g * g_g
            h_l = o_g * jnp.tanh(c_l)
            new_h.append(h_l)
            new_c.append(c_l)
            inp = h_l
        return (jnp.stack(new_h), jnp.stack(new_c)), inp

    h0 = jnp.zeros((L, B, H), jnp.float32)
    c0 = jnp.zeros((L, B, H), jnp.float32)
    _, y_tbc = jax.lax.scan(step, (h0, c0), x_tbc)
    y_tbc = y_tbc + x_tbc
    return jnp.transpose(y_tbc, (1, 2, 0))


if __name__ == "__main__":
    B, C, T = 2, 32, 8          # dimension = 32, num_layers = 2
    L = 2
    H = C

    key = jax.random.PRNGKey(0)
    k = jax.random.split(key, 5)
    scale = 1.0 / jnp.sqrt(H)
    x = jax.random.normal(k[0], (B, C, T), dtype=jnp.float32)
    w_ih = jax.random.uniform(k[1], (L, 4 * H, C), jnp.float32, -scale, scale)
    w_hh = jax.random.uniform(k[2], (L, 4 * H, H), jnp.float32, -scale, scale)
    b_ih = jax.random.uniform(k[3], (L, 4 * H), jnp.float32, -scale, scale)
    b_hh = jax.random.uniform(k[4], (L, 4 * H), jnp.float32, -scale, scale)

    y_ref = _reference(x, w_ih, w_hh, b_ih, b_hh)

    # f32 matmul path: tight check against the pure-JAX reference.
    y_f32 = streamable_lstm(x, w_ih, w_hh, b_ih, b_hh,
                            matmul_dtype=jnp.float32)
    y_f32 = jax.block_until_ready(y_f32)
    assert y_f32.shape == (B, C, T)
    assert jnp.allclose(y_f32, y_ref, atol=1e-4, rtol=1e-4)

    # Default path: bf16 MXU operands + bf16 gx0, f32 accumulation / state.
    y_bf16 = streamable_lstm(x, w_ih, w_hh, b_ih, b_hh)
    y_bf16 = jax.block_until_ready(y_bf16)
    assert y_bf16.shape == (B, C, T)
    assert jnp.allclose(y_bf16, y_ref, atol=3e-2, rtol=3e-2)

    print("KERNEL_OK")
</pallas_src>

<mosaic_0001>
module attributes {stable_mosaic.version = 11 : i64} {
  func.func @_lstm_recurrent_kernel(%arg0: i32, %arg1: memref<8x8x128xf32, #tpu.memory_space<vmem>>, %arg2: memref<32x128xf32, #tpu.memory_space<any>>, %arg3: memref<32x128xf32, #tpu.memory_space<any>>, %arg4: memref<32x128xf32, #tpu.memory_space<any>>, %arg5: memref<1x128xf32, #tpu.memory_space<vmem>>, %arg6: memref<8x8x32xf32, #tpu.memory_space<vmem>>, %arg7: memref<2x8x32xf32, #tpu.memory_space<vmem>>, %arg8: memref<2x8x32xf32, #tpu.memory_space<vmem>>, %arg9: memref<32x128xf32, #tpu.memory_space<vmem>>, %arg10: memref<32x128xf32, #tpu.memory_space<vmem>>, %arg11: memref<32x128xf32, #tpu.memory_space<vmem>>) attributes {dimension_semantics = [#tpu.dimension_semantics<arbitrary>], iteration_bounds = array<i64: 1>, scalar_prefetch = 0 : i64, scratch_operands = 5 : i64, tpu.core_type = #tpu.core_type<tc>, window_params = [{transform_indices = @transform_0, window_bounds = array<i64: 8, 8, 128>}, {}, {}, {}, {pipeline_mode = #tpu.pipeline_mode<synchronous>, transform_indices = @transform_4, window_bounds = array<i64: 1, 128>}, {transform_indices = @transform_5, window_bounds = array<i64: 8, 8, 32>}]} {
    %c0_i32 = arith.constant 0 : i32
    %0 = arith.cmpi eq, %arg0, %c0_i32 : i32
    %1 = arith.extui %0 : i1 to i32
    %c0_i32_0 = arith.constant 0 : i32
    %2 = arith.cmpi ne, %1, %c0_i32_0 : i32
    scf.if %2 {
      %cst_103 = arith.constant 0.000000e+00 : f32
      %395 = vector.broadcast %cst_103 : f32 to vector<2x8x32xf32>
      %c0_104 = arith.constant 0 : index
      %c0_105 = arith.constant 0 : index
      %c0_106 = arith.constant 0 : index
      %396 = vector.load %arg7[%c0_104, %c0_105, %c0_106] : memref<2x8x32xf32, #tpu.memory_space<vmem>>, vector<2x8x32xf32>
      tpu.vector_store %arg7[%c0_104, %c0_105, %c0_106], %395 {strides = array<i32>} : memref<2x8x32xf32, #tpu.memory_space<vmem>>, vector<2x8x32xf32>,
      %cst_107 = arith.constant 0.000000e+00 : f32
      %397 = vector.broadcast %cst_107 : f32 to vector<2x8x32xf32>
      %c0_108 = arith.constant 0 : index
      %c0_109 = arith.constant 0 : index
      %c0_110 = arith.constant 0 : index
      %398 = vector.load %arg8[%c0_108, %c0_109, %c0_110] : memref<2x8x32xf32, #tpu.memory_space<vmem>>, vector<2x8x32xf32>
      tpu.vector_store %arg8[%c0_108, %c0_109, %c0_110], %397 {strides = array<i32>} : memref<2x8x32xf32, #tpu.memory_space<vmem>>, vector<2x8x32xf32>,
      "tpu.region"() ({
        %399 = tpu.sem_alloc : memref<!tpu.dma_semaphore, #tpu.memory_space<semaphore_mem>>
        tpu.enqueue_dma source(%arg2 : memref<32x128xf32, #tpu.memory_space<any>>) target(%arg9 : memref<32x128xf32, #tpu.memory_space<vmem>>) target_semaphore(%399 : memref<!tpu.dma_semaphore, #tpu.memory_space<semaphore_mem>>)
        tpu.wait_dma2 semaphore(%399 : memref<!tpu.dma_semaphore, #tpu.memory_space<semaphore_mem>>) src(%arg2 : memref<32x128xf32, #tpu.memory_space<any>>) dst(%arg9 : memref<32x128xf32, #tpu.memory_space<vmem>>)
        tpu.yield
      }) : () -> ()
      "tpu.region"() ({
        %399 = tpu.sem_alloc : memref<!tpu.dma_semaphore, #tpu.memory_space<semaphore_mem>>
        tpu.enqueue_dma source(%arg3 : memref<32x128xf32, #tpu.memory_space<any>>) target(%arg10 : memref<32x128xf32, #tpu.memory_space<vmem>>) target_semaphore(%399 : memref<!tpu.dma_semaphore, #tpu.memory_space<semaphore_mem>>)
        tpu.wait_dma2 semaphore(%399 : memref<!tpu.dma_semaphore, #tpu.memory_space<semaphore_mem>>) src(%arg3 : memref<32x128xf32, #tpu.memory_space<any>>) dst(%arg10 : memref<32x128xf32, #tpu.memory_space<vmem>>)
        tpu.yield
      }) : () -> ()
      "tpu.region"() ({
        %399 = tpu.sem_alloc : memref<!tpu.dma_semaphore, #tpu.memory_space<semaphore_mem>>
        tpu.enqueue_dma source(%arg4 : memref<32x128xf32, #tpu.memory_space<any>>) target(%arg11 : memref<32x128xf32, #tpu.memory_space<vmem>>) target_semaphore(%399 : memref<!tpu.dma_semaphore, #tpu.memory_space<semaphore_mem>>)
        tpu.wait_dma2 semaphore(%399 : memref<!tpu.dma_semaphore, #tpu.memory_space<semaphore_mem>>) src(%arg4 : memref<32x128xf32, #tpu.memory_space<any>>) dst(%arg11 : memref<32x128xf32, #tpu.memory_space<vmem>>)
        tpu.yield
      }) : () -> ()
    } else {
    }
    %c0 = arith.constant 0 : index
    %c0_1 = arith.constant 0 : index
    %3 = vector.load %arg9[%c0, %c0_1] : memref<32x128xf32, #tpu.memory_space<vmem>>, vector<32x128xf32>
    %c0_2 = arith.constant 0 : index
    %c0_3 = arith.constant 0 : index
    %4 = vector.load %arg10[%c0_2, %c0_3] : memref<32x128xf32, #tpu.memory_space<vmem>>, vector<32x128xf32>
    %c0_4 = arith.constant 0 : index
    %c0_5 = arith.constant 0 : index
    %5 = vector.load %arg11[%c0_4, %c0_5] : memref<32x128xf32, #tpu.memory_space<vmem>>, vector<32x128xf32>
    %c0_6 = arith.constant 0 : index
    %c0_7 = arith.constant 0 : index
    %6 = vector.load %arg5[%c0_6, %c0_7] : memref<1x128xf32, #tpu.memory_space<vmem>>, vector<1x128xf32>
    %c0_8 = arith.constant 0 : index
    %c0_9 = arith.constant 0 : index
    %c0_10 = arith.constant 0 : index
    %7 = vector.load %arg7[%c0_8, %c0_9, %c0_10] : memref<2x8x32xf32, #tpu.memory_space<vmem>>, vector<1x8x32xf32>
    %8 = vector.shape_cast %7 : vector<1x8x32xf32> to vector<8x32xf32>
    %c1 = arith.constant 1 : index
    %c0_11 = arith.constant 0 : index
    %c0_12 = arith.constant 0 : index
    %9 = vector.load %arg7[%c1, %c0_11, %c0_12] : memref<2x8x32xf32, #tpu.memory_space<vmem>>, vector<1x8x32xf32>
    %10 = vector.shape_cast %9 : vector<1x8x32xf32> to vector<8x32xf32>
    %c0_13 = arith.constant 0 : index
    %c0_14 = arith.constant 0 : index
    %c0_15 = arith.constant 0 : index
    %11 = vector.load %arg8[%c0_13, %c0_14, %c0_15] : memref<2x8x32xf32, #tpu.memory_space<vmem>>, vector<1x8x32xf32>
    %12 = vector.shape_cast %11 : vector<1x8x32xf32> to vector<8x32xf32>
    %c1_16 = arith.constant 1 : index
    %c0_17 = arith.constant 0 : index
    %c0_18 = arith.constant 0 : index
    %13 = vector.load %arg8[%c1_16, %c0_17, %c0_18] : memref<2x8x32xf32, #tpu.memory_space<vmem>>, vector<1x8x32xf32>
    %14 = vector.shape_cast %13 : vector<1x8x32xf32> to vector<8x32xf32>
    %c0_i32_19 = arith.constant 0 : i32
    %15 = arith.index_cast %c0_i32_19 : i32 to index
    %c0_20 = arith.constant 0 : index
    %c0_21 = arith.constant 0 : index
    %16 = vector.load %arg1[%15, %c0_20, %c0_21] : memref<8x8x128xf32, #tpu.memory_space<vmem>>, vector<1x8x128xf32>
    %17 = vector.shape_cast %16 : vector<1x8x128xf32> to vector<8x128xf32>
    %cst = arith.constant dense<0.000000e+00> : vector<8x128xf32>
    %18 = tpu.matmul %8, %3, %cst {dimension_numbers = #tpu.dot_dimension_numbers<[1], [0], [0], [1], [0, 0, 1, 1], [], []>} : vector<8x32xf32>, vector<32x128xf32>, vector<8x128xf32> -> vector<8x128xf32>
    %19 = arith.addf %17, %18 : vector<8x128xf32>
    %20 = vector.extract_strided_slice %19 {offsets = [0, 0], sizes = [8, 96], strides = [1, 1]} : vector<8x128xf32> to vector<8x96xf32>
    %21 = arith.negf %20 : vector<8x96xf32>
    %22 = math.exp %21 : vector<8x96xf32>
    %cst_22 = arith.constant 1.000000e+00 : f32
    %23 = vector.broadcast %cst_22 : f32 to vector<8x96xf32>
    %24 = arith.addf %23, %22 : vector<8x96xf32>
    %25 = arith.divf %23, %24 : vector<8x96xf32>
    %26 = vector.extract_strided_slice %19 {offsets = [0, 96], sizes = [8, 32], strides = [1, 1]} : vector<8x128xf32> to vector<8x32xf32>
    %27 = math.tanh %26 : vector<8x32xf32>
    %28 = vector.extract_strided_slice %25 {offsets = [0, 0], sizes = [8, 32], strides = [1, 1]} : vector<8x96xf32> to vector<8x32xf32>
    %29 = vector.extract_strided_slice %25 {offsets = [0, 32], sizes = [8, 32], strides = [1, 1]} : vector<8x96xf32> to vector<8x32xf32>
    %30 = vector.extract_strided_slice %25 {offsets = [0, 64], sizes = [8, 32], strides = [1, 1]} : vector<8x96xf32> to vector<8x32xf32>
    %31 = arith.mulf %29, %12 : vector<8x32xf32>
    %32 = arith.mulf %28, %27 : vector<8x32xf32>
    %33 = arith.addf %31, %32 : vector<8x32xf32>
    %34 = math.tanh %33 : vector<8x32xf32>
    %35 = arith.mulf %30, %34 : vector<8x32xf32>
    %cst_23 = arith.constant dense<0.000000e+00> : vector<8x128xf32>
    %36 = tpu.matmul %35, %4, %cst_23 {dimension_numbers = #tpu.dot_dimension_numbers<[1], [0], [0], [1], [0, 0, 1, 1], [], []>} : vector<8x32xf32>, vector<32x128xf32>, vector<8x128xf32> -> vector<8x128xf32>
    %cst_24 = arith.constant dense<0.000000e+00> : vector<8x128xf32>
    %37 = tpu.matmul %10, %5, %cst_24 {dimension_numbers = #tpu.dot_dimension_numbers<[1], [0], [0], [1], [0, 0, 1, 1], [], []>} : vector<8x32xf32>, vector<32x128xf32>, vector<8x128xf32> -> vector<8x128xf32>
    %38 = arith.addf %36, %37 : vector<8x128xf32>
    %39 = vector.broadcast %6 : vector<1x128xf32> to vector<8x128xf32>
    %40 = arith.addf %38, %39 : vector<8x128xf32>
    %41 = vector.extract_strided_slice %40 {offsets = [0, 0], sizes = [8, 96], strides = [1, 1]} : vector<8x128xf32> to vector<8x96xf32>
    %42 = arith.negf %41 : vector<8x96xf32>
    %43 = math.exp %42 : vector<8x96xf32>
    %cst_25 = arith.constant 1.000000e+00 : f32
    %44 = vector.broadcast %cst_25 : f32 to vector<8x96xf32>
    %45 = arith.addf %44, %43 : vector<8x96xf32>
    %46 = arith.divf %44, %45 : vector<8x96xf32>
    %47 = vector.extract_strided_slice %40 {offsets = [0, 96], sizes = [8, 32], strides = [1, 1]} : vector<8x128xf32> to vector<8x32xf32>
    %48 = math.tanh %47 : vector<8x32xf32>
    %49 = vector.extract_strided_slice %46 {offsets = [0, 0], sizes = [8, 32], strides = [1, 1]} : vector<8x96xf32> to vector<8x32xf32>
    %50 = vector.extract_strided_slice %46 {offsets = [0, 32], sizes = [8, 32], strides = [1, 1]} : vector<8x96xf32> to vector<8x32xf32>
    %51 = vector.extract_strided_slice %46 {offsets = [0, 64], sizes = [8, 32], strides = [1, 1]} : vector<8x96xf32> to vector<8x32xf32>
    %52 = arith.mulf %50, %14 : vector<8x32xf32>
    %53 = arith.mulf %49, %48 : vector<8x32xf32>
    %54 = arith.addf %52, %53 : vector<8x32xf32>
    %55 = math.tanh %54 : vector<8x32xf32>
    %56 = arith.mulf %51, %55 : vector<8x32xf32>
    %57 = arith.index_cast %c0_i32_19 : i32 to index
    %c0_26 = arith.constant 0 : index
    %c0_27 = arith.constant 0 : index
    %58 = vector.load %arg6[%57, %c0_26, %c0_27] : memref<8x8x32xf32, #tpu.memory_space<vmem>>, vector<1x8x32xf32>
    %59 = vector.shape_cast %58 : vector<1x8x32xf32> to vector<8x32xf32>
    %60 = vector.shape_cast %56 : vector<8x32xf32> to vector<1x8x32xf32>
    tpu.vector_store %arg6[%57, %c0_26, %c0_27], %60 {strides = array<i32>} : memref<8x8x32xf32, #tpu.memory_space<vmem>>, vector<1x8x32xf32>,
    %c1_i32 = arith.constant 1 : i32
    %61 = arith.index_cast %c1_i32 : i32 to index
    %c0_28 = arith.constant 0 : index
    %c0_29 = arith.constant 0 : index
    %62 = vector.load %arg1[%61, %c0_28, %c0_29] : memref<8x8x128xf32, #tpu.memory_space<vmem>>, vector<1x8x128xf32>
    %63 = vector.shape_cast %62 : vector<1x8x128xf32> to vector<8x128xf32>
    %cst_30 = arith.constant dense<0.000000e+00> : vector<8x128xf32>
    %64 = tpu.matmul %35, %3, %cst_30 {dimension_numbers = #tpu.dot_dimension_numbers<[1], [0], [0], [1], [0, 0, 1, 1], [], []>} : vector<8x32xf32>, vector<32x128xf32>, vector<8x128xf32> -> vector<8x128xf32>
    %65 = arith.addf %63, %64 : vector<8x128xf32>
    %66 = vector.extract_strided_slice %65 {offsets = [0, 0], sizes = [8, 96], strides = [1, 1]} : vector<8x128xf32> to vector<8x96xf32>
    %67 = arith.negf %66 : vector<8x96xf32>
    %68 = math.exp %67 : vector<8x96xf32>
    %cst_31 = arith.constant 1.000000e+00 : f32
    %69 = vector.broadcast %cst_31 : f32 to vector<8x96xf32>
    %70 = arith.addf %69, %68 : vector<8x96xf32>
    %71 = arith.divf %69, %70 : vector<8x96xf32>
    %72 = vector.extract_strided_slice %65 {offsets = [0, 96], sizes = [8, 32], strides = [1, 1]} : vector<8x128xf32> to vector<8x32xf32>
    %73 = math.tanh %72 : vector<8x32xf32>
    %74 = vector.extract_strided_slice %71 {offsets = [0, 0], sizes = [8, 32], strides = [1, 1]} : vector<8x96xf32> to vector<8x32xf32>
    %75 = vector.extract_strided_slice %71 {offsets = [0, 32], sizes = [8, 32], strides = [1, 1]} : vector<8x96xf32> to vector<8x32xf32>
    %76 = vector.extract_strided_slice %71 {offsets = [0, 64], sizes = [8, 32], strides = [1, 1]} : vector<8x96xf32> to vector<8x32xf32>
    %77 = arith.mulf %75, %33 : vector<8x32xf32>
    %78 = arith.mulf %74, %73 : vector<8x32xf32>
    %79 = arith.addf %77, %78 : vector<8x32xf32>
    %80 = math.tanh %79 : vector<8x32xf32>
    %81 = arith.mulf %76, %80 : vector<8x32xf32>
    %cst_32 = arith.constant dense<0.000000e+00> : vector<8x128xf32>
    %82 = tpu.matmul %81, %4, %cst_32 {dimension_numbers = #tpu.dot_dimension_numbers<[1], [0], [0], [1], [0, 0, 1, 1], [], []>} : vector<8x32xf32>, vector<32x128xf32>, vector<8x128xf32> -> vector<8x128xf32>
    %cst_33 = arith.constant dense<0.000000e+00> : vector<8x128xf32>
    %83 = tpu.matmul %56, %5, %cst_33 {dimension_numbers = #tpu.dot_dimension_numbers<[1], [0], [0], [1], [0, 0, 1, 1], [], []>} : vector<8x32xf32>, vector<32x128xf32>, vector<8x128xf32> -> vector<8x128xf32>
    %84 = arith.addf %82, %83 : vector<8x128xf32>
    %85 = vector.broadcast %6 : vector<1x128xf32> to vector<8x128xf32>
    %86 = arith.addf %84, %85 : vector<8x128xf32>
    %87 = vector.extract_strided_slice %86 {offsets = [0, 0], sizes = [8, 96], strides = [1, 1]} : vector<8x128xf32> to vector<8x96xf32>
    %88 = arith.negf %87 : vector<8x96xf32>
    %89 = math.exp %88 : vector<8x96xf32>
    %cst_34 = arith.constant 1.000000e+00 : f32
    %90 = vector.broadcast %cst_34 : f32 to vector<8x96xf32>
    %91 = arith.addf %90, %89 : vector<8x96xf32>
    %92 = arith.divf %90, %91 : vector<8x96xf32>
    %93 = vector.extract_strided_slice %86 {offsets = [0, 96], sizes = [8, 32], strides = [1, 1]} : vector<8x128xf32> to vector<8x32xf32>
    %94 = math.tanh %93 : vector<8x32xf32>
    %95 = vector.extract_strided_slice %92 {offsets = [0, 0], sizes = [8, 32], strides = [1, 1]} : vector<8x96xf32> to vector<8x32xf32>
    %96 = vector.extract_strided_slice %92 {offsets = [0, 32], sizes = [8, 32], strides = [1, 1]} : vector<8x96xf32> to vector<8x32xf32>
    %97 = vector.extract_strided_slice %92 {offsets = [0, 64], sizes = [8, 32], strides = [1, 1]} : vector<8x96xf32> to vector<8x32xf32>
    %98 = arith.mulf %96, %54 : vector<8x32xf32>
    %99 = arith.mulf %95, %94 : vector<8x32xf32>
    %100 = arith.addf %98, %99 : vector<8x32xf32>
    %101 = math.tanh %100 : vector<8x32xf32>
    %102 = arith.mulf %97, %101 : vector<8x32xf32>
    %103 = arith.index_cast %c1_i32 : i32 to index
    %c0_35 = arith.constant 0 : index
    %c0_36 = arith.constant 0 : index
    %104 = vector.load %arg6[%103, %c0_35, %c0_36] : memref<8x8x32xf32, #tpu.memory_space<vmem>>, vector<1x8x32xf32>
    %105 = vector.shape_cast %104 : vector<1x8x32xf32> to vector<8x32xf32>
    %106 = vector.shape_cast %102 : vector<8x32xf32> to vector<1x8x32xf32>
    tpu.vector_store %arg6[%103, %c0_35, %c0_36], %106 {strides = array<i32>} : memref<8x8x32xf32, #tpu.memory_space<vmem>>, vector<1x8x32xf32>,
    %c2_i32 = arith.constant 2 : i32
    %107 = arith.index_cast %c2_i32 : i32 to index
    %c0_37 = arith.constant 0 : index
    %c0_38 = arith.constant 0 : index
    %108 = vector.load %arg1[%107, %c0_37, %c0_38] : memref<8x8x128xf32, #tpu.memory_space<vmem>>, vector<1x8x128xf32>
    %109 = vector.shape_cast %108 : vector<1x8x128xf32> to vector<8x128xf32>
    %cst_39 = arith.constant dense<0.000000e+00> : vector<8x128xf32>
    %110 = tpu.matmul %81, %3, %cst_39 {dimension_numbers = #tpu.dot_dimension_numbers<[1], [0], [0], [1], [0, 0, 1, 1], [], []>} : vector<8x32xf32>, vector<32x128xf32>, vector<8x128xf32> -> vector<8x128xf32>
    %111 = arith.addf %109, %110 : vector<8x128xf32>
    %112 = vector.extract_strided_slice %111 {offsets = [0, 0], sizes = [8, 96], strides = [1, 1]} : vector<8x128xf32> to vector<8x96xf32>
    %113 = arith.negf %112 : vector<8x96xf32>
    %114 = math.exp %113 : vector<8x96xf32>
    %cst_40 = arith.constant 1.000000e+00 : f32
    %115 = vector.broadcast %cst_40 : f32 to vector<8x96xf32>
    %116 = arith.addf %115, %114 : vector<8x96xf32>
    %117 = arith.divf %115, %116 : vector<8x96xf32>
    %118 = vector.extract_strided_slice %111 {offsets = [0, 96], sizes = [8, 32], strides = [1, 1]} : vector<8x128xf32> to vector<8x32xf32>
    %119 = math.tanh %118 : vector<8x32xf32>
    %120 = vector.extract_strided_slice %117 {offsets = [0, 0], sizes = [8, 32], strides = [1, 1]} : vector<8x96xf32> to vector<8x32xf32>
    %121 = vector.extract_strided_slice %117 {offsets = [0, 32], sizes = [8, 32], strides = [1, 1]} : vector<8x96xf32> to vector<8x32xf32>
    %122 = vector.extract_strided_slice %117 {offsets = [0, 64], sizes = [8, 32], strides = [1, 1]} : vector<8x96xf32> to vector<8x32xf32>
    %123 = arith.mulf %121, %79 : vector<8x32xf32>
    %124 = arith.mulf %120, %119 : vector<8x32xf32>
    %125 = arith.addf %123, %124 : vector<8x32xf32>
    %126 = math.tanh %125 : vector<8x32xf32>
    %127 = arith.mulf %122, %126 : vector<8x32xf32>
    %cst_41 = arith.constant dense<0.000000e+00> : vector<8x128xf32>
    %128 = tpu.matmul %127, %4, %cst_41 {dimension_numbers = #tpu.dot_dimension_numbers<[1], [0], [0], [1], [0, 0, 1, 1], [], []>} : vector<8x32xf32>, vector<32x128xf32>, vector<8x128xf32> -> vector<8x128xf32>
    %cst_42 = arith.constant dense<0.000000e+00> : vector<8x128xf32>
    %129 = tpu.matmul %102, %5, %cst_42 {dimension_numbers = #tpu.dot_dimension_numbers<[1], [0], [0], [1], [0, 0, 1, 1], [], []>} : vector<8x32xf32>, vector<32x128xf32>, vector<8x128xf32> -> vector<8x128xf32>
    %130 = arith.addf %128, %129 : vector<8x128xf32>
    %131 = vector.broadcast %6 : vector<1x128xf32> to vector<8x128xf32>
    %132 = arith.addf %130, %131 : vector<8x128xf32>
    %133 = vector.extract_strided_slice %132 {offsets = [0, 0], sizes = [8, 96], strides = [1, 1]} : vector<8x128xf32> to vector<8x96xf32>
    %134 = arith.negf %133 : vector<8x96xf32>
    %135 = math.exp %134 : vector<8x96xf32>
    %cst_43 = arith.constant 1.000000e+00 : f32
    %136 = vector.broadcast %cst_43 : f32 to vector<8x96xf32>
    %137 = arith.addf %136, %135 : vector<8x96xf32>
    %138 = arith.divf %136, %137 : vector<8x96xf32>
    %139 = vector.extract_strided_slice %132 {offsets = [0, 96], sizes = [8, 32], strides = [1, 1]} : vector<8x128xf32> to vector<8x32xf32>
    %140 = math.tanh %139 : vector<8x32xf32>
    %141 = vector.extract_strided_slice %138 {offsets = [0, 0], sizes = [8, 32], strides = [1, 1]} : vector<8x96xf32> to vector<8x32xf32>
    %142 = vector.extract_strided_slice %138 {offsets = [0, 32], sizes = [8, 32], strides = [1, 1]} : vector<8x96xf32> to vector<8x32xf32>
    %143 = vector.extract_strided_slice %138 {offsets = [0, 64], sizes = [8, 32], strides = [1, 1]} : vector<8x96xf32> to vector<8x32xf32>
    %144 = arith.mulf %142, %100 : vector<8x32xf32>
    %145 = arith.mulf %141, %140 : vector<8x32xf32>
    %146 = arith.addf %144, %145 : vector<8x32xf32>
    %147 = math.tanh %146 : vector<8x32xf32>
    %148 = arith.mulf %143, %147 : vector<8x32xf32>
    %149 = arith.index_cast %c2_i32 : i32 to index
    %c0_44 = arith.constant 0 : index
    %c0_45 = arith.constant 0 : index
    %150 = vector.load %arg6[%149, %c0_44, %c0_45] : memref<8x8x32xf32, #tpu.memory_space<vmem>>, vector<1x8x32xf32>
    %151 = vector.shape_cast %150 : vector<1x8x32xf32> to vector<8x32xf32>
    %152 = vector.shape_cast %148 : vector<8x32xf32> to vector<1x8x32xf32>
    tpu.vector_store %arg6[%149, %c0_44, %c0_45], %152 {strides = array<i32>} : memref<8x8x32xf32, #tpu.memory_space<vmem>>, vector<1x8x32xf32>,
    %c3_i32 = arith.constant 3 : i32
    %153 = arith.index_cast %c3_i32 : i32 to index
    %c0_46 = arith.constant 0 : index
    %c0_47 = arith.constant 0 : index
    %154 = vector.load %arg1[%153, %c0_46, %c0_47] : memref<8x8x128xf32, #tpu.memory_space<vmem>>, vector<1x8x128xf32>
    %155 = vector.shape_cast %154 : vector<1x8x128xf32> to vector<8x128xf32>
    %cst_48 = arith.constant dense<0.000000e+00> : vector<8x128xf32>
    %156 = tpu.matmul %127, %3, %cst_48 {dimension_numbers = #tpu.dot_dimension_numbers<[1], [0], [0], [1], [0, 0, 1, 1], [], []>} : vector<8x32xf32>, vector<32x128xf32>, vector<8x128xf32> -> vector<8x128xf32>
    %157 = arith.addf %155, %156 : vector<8x128xf32>
    %158 = vector.extract_strided_slice %157 {offsets = [0, 0], sizes = [8, 96], strides = [1, 1]} : vector<8x128xf32> to vector<8x96xf32>
    %159 = arith.negf %158 : vector<8x96xf32>
    %160 = math.exp %159 : vector<8x96xf32>
    %cst_49 = arith.constant 1.000000e+00 : f32
    %161 = vector.broadcast %cst_49 : f32 to vector<8x96xf32>
    %162 = arith.addf %161, %160 : vector<8x96xf32>
    %163 = arith.divf %161, %162 : vector<8x96xf32>
    %164 = vector.extract_strided_slice %157 {offsets = [0, 96], sizes = [8, 32], strides = [1, 1]} : vector<8x128xf32> to vector<8x32xf32>
    %165 = math.tanh %164 : vector<8x32xf32>
    %166 = vector.extract_strided_slice %163 {offsets = [0, 0], sizes = [8, 32], strides = [1, 1]} : vector<8x96xf32> to vector<8x32xf32>
    %167 = vector.extract_strided_slice %163 {offsets = [0, 32], sizes = [8, 32], strides = [1, 1]} : vector<8x96xf32> to vector<8x32xf32>
    %168 = vector.extract_strided_slice %163 {offsets = [0, 64], sizes = [8, 32], strides = [1, 1]} : vector<8x96xf32> to vector<8x32xf32>
    %169 = arith.mulf %167, %125 : vector<8x32xf32>
    %170 = arith.mulf %166, %165 : vector<8x32xf32>
    %171 = arith.addf %169, %170 : vector<8x32xf32>
    %172 = math.tanh %171 : vector<8x32xf32>
    %173 = arith.mulf %168, %172 : vector<8x32xf32>
    %cst_50 = arith.constant dense<0.000000e+00> : vector<8x128xf32>
    %174 = tpu.matmul %173, %4, %cst_50 {dimension_numbers = #tpu.dot_dimension_numbers<[1], [0], [0], [1], [0, 0, 1, 1], [], []>} : vector<8x32xf32>, vector<32x128xf32>, vector<8x128xf32> -> vector<8x128xf32>
    %cst_51 = arith.constant dense<0.000000e+00> : vector<8x128xf32>
    %175 = tpu.matmul %148, %5, %cst_51 {dimension_numbers = #tpu.dot_dimension_numbers<[1], [0], [0], [1], [0, 0, 1, 1], [], []>} : vector<8x32xf32>, vector<32x128xf32>, vector<8x128xf32> -> vector<8x128xf32>
    %176 = arith.addf %174, %175 : vector<8x128xf32>
    %177 = vector.broadcast %6 : vector<1x128xf32> to vector<8x128xf32>
    %178 = arith.addf %176, %177 : vector<8x128xf32>
    %179 = vector.extract_strided_slice %178 {offsets = [0, 0], sizes = [8, 96], strides = [1, 1]} : vector<8x128xf32> to vector<8x96xf32>
    %180 = arith.negf %179 : vector<8x96xf32>
    %181 = math.exp %180 : vector<8x96xf32>
    %cst_52 = arith.constant 1.000000e+00 : f32
    %182 = vector.broadcast %cst_52 : f32 to vector<8x96xf32>
    %183 = arith.addf %182, %181 : vector<8x96xf32>
    %184 = arith.divf %182, %183 : vector<8x96xf32>
    %185 = vector.extract_strided_slice %178 {offsets = [0, 96], sizes = [8, 32], strides = [1, 1]} : vector<8x128xf32> to vector<8x32xf32>
    %186 = math.tanh %185 : vector<8x32xf32>
    %187 = vector.extract_strided_slice %184 {offsets = [0, 0], sizes = [8, 32], strides = [1, 1]} : vector<8x96xf32> to vector<8x32xf32>
    %188 = vector.extract_strided_slice %184 {offsets = [0, 32], sizes = [8, 32], strides = [1, 1]} : vector<8x96xf32> to vector<8x32xf32>
    %189 = vector.extract_strided_slice %184 {offsets = [0, 64], sizes = [8, 32], strides = [1, 1]} : vector<8x96xf32> to vector<8x32xf32>
    %190 = arith.mulf %188, %146 : vector<8x32xf32>
    %191 = arith.mulf %187, %186 : vector<8x32xf32>
    %192 = arith.addf %190, %191 : vector<8x32xf32>
    %193 = math.tanh %192 : vector<8x32xf32>
    %194 = arith.mulf %189, %193 : vector<8x32xf32>
    %195 = arith.index_cast %c3_i32 : i32 to index
    %c0_53 = arith.constant 0 : index
    %c0_54 = arith.constant 0 : index
    %196 = vector.load %arg6[%195, %c0_53, %c0_54] : memref<8x8x32xf32, #tpu.memory_space<vmem>>, vector<1x8x32xf32>
    %197 = vector.shape_cast %196 : vector<1x8x32xf32> to vector<8x32xf32>
    %198 = vector.shape_cast %194 : vector<8x32xf32> to vector<1x8x32xf32>
    tpu.vector_store %arg6[%195, %c0_53, %c0_54], %198 {strides = array<i32>} : memref<8x8x32xf32, #tpu.memory_space<vmem>>, vector<1x8x32xf32>,
    %c4_i32 = arith.constant 4 : i32
    %199 = arith.index_cast %c4_i32 : i32 to index
    %c0_55 = arith.constant 0 : index
    %c0_56 = arith.constant 0 : index
    %200 = vector.load %arg1[%199, %c0_55, %c0_56] : memref<8x8x128xf32, #tpu.memory_space<vmem>>, vector<1x8x128xf32>
    %201 = vector.shape_cast %200 : vector<1x8x128xf32> to vector<8x128xf32>
    %cst_57 = arith.constant dense<0.000000e+00> : vector<8x128xf32>
    %202 = tpu.matmul %173, %3, %cst_57 {dimension_numbers = #tpu.dot_dimension_numbers<[1], [0], [0], [1], [0, 0, 1, 1], [], []>} : vector<8x32xf32>, vector<32x128xf32>, vector<8x128xf32> -> vector<8x128xf32>
    %203 = arith.addf %201, %202 : vector<8x128xf32>
    %204 = vector.extract_strided_slice %203 {offsets = [0, 0], sizes = [8, 96], strides = [1, 1]} : vector<8x128xf32> to vector<8x96xf32>
    %205 = arith.negf %204 : vector<8x96xf32>
    %206 = math.exp %205 : vector<8x96xf32>
    %cst_58 = arith.constant 1.000000e+00 : f32
    %207 = vector.broadcast %cst_58 : f32 to vector<8x96xf32>
    %208 = arith.addf %207, %206 : vector<8x96xf32>
    %209 = arith.divf %207, %208 : vector<8x96xf32>
    %210 = vector.extract_strided_slice %203 {offsets = [0, 96], sizes = [8, 32], strides = [1, 1]} : vector<8x128xf32> to vector<8x32xf32>
    %211 = math.tanh %210 : vector<8x32xf32>
    %212 = vector.extract_strided_slice %209 {offsets = [0, 0], sizes = [8, 32], strides = [1, 1]} : vector<8x96xf32> to vector<8x32xf32>
    %213 = vector.extract_strided_slice %209 {offsets = [0, 32], sizes = [8, 32], strides = [1, 1]} : vector<8x96xf32> to vector<8x32xf32>
    %214 = vector.extract_strided_slice %209 {offsets = [0, 64], sizes = [8, 32], strides = [1, 1]} : vector<8x96xf32> to vector<8x32xf32>
    %215 = arith.mulf %213, %171 : vector<8x32xf32>
    %216 = arith.mulf %212, %211 : vector<8x32xf32>
    %217 = arith.addf %215, %216 : vector<8x32xf32>
    %218 = math.tanh %217 : vector<8x32xf32>
    %219 = arith.mulf %214, %218 : vector<8x32xf32>
    %cst_59 = arith.constant dense<0.000000e+00> : vector<8x128xf32>
    %220 = tpu.matmul %219, %4, %cst_59 {dimension_numbers = #tpu.dot_dimension_numbers<[1], [0], [0], [1], [0, 0, 1, 1], [], []>} : vector<8x32xf32>, vector<32x128xf32>, vector<8x128xf32> -> vector<8x128xf32>
    %cst_60 = arith.constant dense<0.000000e+00> : vector<8x128xf32>
    %221 = tpu.matmul %194, %5, %cst_60 {dimension_numbers = #tpu.dot_dimension_numbers<[1], [0], [0], [1], [0, 0, 1, 1], [], []>} : vector<8x32xf32>, vector<32x128xf32>, vector<8x128xf32> -> vector<8x128xf32>
    %222 = arith.addf %220, %221 : vector<8x128xf32>
    %223 = vector.broadcast %6 : vector<1x128xf32> to vector<8x128xf32>
    %224 = arith.addf %222, %223 : vector<8x128xf32>
    %225 = vector.extract_strided_slice %224 {offsets = [0, 0], sizes = [8, 96], strides = [1, 1]} : vector<8x128xf32> to vector<8x96xf32>
    %226 = arith.negf %225 : vector<8x96xf32>
    %227 = math.exp %226 : vector<8x96xf32>
    %cst_61 = arith.constant 1.000000e+00 : f32
    %228 = vector.broadcast %cst_61 : f32 to vector<8x96xf32>
    %229 = arith.addf %228, %227 : vector<8x96xf32>
    %230 = arith.divf %228, %229 : vector<8x96xf32>
    %231 = vector.extract_strided_slice %224 {offsets = [0, 96], sizes = [8, 32], strides = [1, 1]} : vector<8x128xf32> to vector<8x32xf32>
    %232 = math.tanh %231 : vector<8x32xf32>
    %233 = vector.extract_strided_slice %230 {offsets = [0, 0], sizes = [8, 32], strides = [1, 1]} : vector<8x96xf32> to vector<8x32xf32>
    %234 = vector.extract_strided_slice %230 {offsets = [0, 32], sizes = [8, 32], strides = [1, 1]} : vector<8x96xf32> to vector<8x32xf32>
    %235 = vector.extract_strided_slice %230 {offsets = [0, 64], sizes = [8, 32], strides = [1, 1]} : vector<8x96xf32> to vector<8x32xf32>
    %236 = arith.mulf %234, %192 : vector<8x32xf32>
    %237 = arith.mulf %233, %232 : vector<8x32xf32>
    %238 = arith.addf %236, %237 : vector<8x32xf32>
    %239 = math.tanh %238 : vector<8x32xf32>
    %240 = arith.mulf %235, %239 : vector<8x32xf32>
    %241 = arith.index_cast %c4_i32 : i32 to index
    %c0_62 = arith.constant 0 : index
    %c0_63 = arith.constant 0 : index
    %242 = vector.load %arg6[%241, %c0_62, %c0_63] : memref<8x8x32xf32, #tpu.memory_space<vmem>>, vector<1x8x32xf32>
    %243 = vector.shape_cast %242 : vector<1x8x32xf32> to vector<8x32xf32>
    %244 = vector.shape_cast %240 : vector<8x32xf32> to vector<1x8x32xf32>
    tpu.vector_store %arg6[%241, %c0_62, %c0_63], %244 {strides = array<i32>} : memref<8x8x32xf32, #tpu.memory_space<vmem>>, vector<1x8x32xf32>,
    %c5_i32 = arith.constant 5 : i32
    %245 = arith.index_cast %c5_i32 : i32 to index
    %c0_64 = arith.constant 0 : index
    %c0_65 = arith.constant 0 : index
    %246 = vector.load %arg1[%245, %c0_64, %c0_65] : memref<8x8x128xf32, #tpu.memory_space<vmem>>, vector<1x8x128xf32>
    %247 = vector.shape_cast %246 : vector<1x8x128xf32> to vector<8x128xf32>
    %cst_66 = arith.constant dense<0.000000e+00> : vector<8x128xf32>
    %248 = tpu.matmul %219, %3, %cst_66 {dimension_numbers = #tpu.dot_dimension_numbers<[1], [0], [0], [1], [0, 0, 1, 1], [], []>} : vector<8x32xf32>, vector<32x128xf32>, vector<8x128xf32> -> vector<8x128xf32>
    %249 = arith.addf %247, %248 : vector<8x128xf32>
    %250 = vector.extract_strided_slice %249 {offsets = [0, 0], sizes = [8, 96], strides = [1, 1]} : vector<8x128xf32> to vector<8x96xf32>
    %251 = arith.negf %250 : vector<8x96xf32>
    %252 = math.exp %251 : vector<8x96xf32>
    %cst_67 = arith.constant 1.000000e+00 : f32
    %253 = vector.broadcast %cst_67 : f32 to vector<8x96xf32>
    %254 = arith.addf %253, %252 : vector<8x96xf32>
    %255 = arith.divf %253, %254 : vector<8x96xf32>
    %256 = vector.extract_strided_slice %249 {offsets = [0, 96], sizes = [8, 32], strides = [1, 1]} : vector<8x128xf32> to vector<8x32xf32>
    %257 = math.tanh %256 : vector<8x32xf32>
    %258 = vector.extract_strided_slice %255 {offsets = [0, 0], sizes = [8, 32], strides = [1, 1]} : vector<8x96xf32> to vector<8x32xf32>
    %259 = vector.extract_strided_slice %255 {offsets = [0, 32], sizes = [8, 32], strides = [1, 1]} : vector<8x96xf32> to vector<8x32xf32>
    %260 = vector.extract_strided_slice %255 {offsets = [0, 64], sizes = [8, 32], strides = [1, 1]} : vector<8x96xf32> to vector<8x32xf32>
    %261 = arith.mulf %259, %217 : vector<8x32xf32>
    %262 = arith.mulf %258, %257 : vector<8x32xf32>
    %263 = arith.addf %261, %262 : vector<8x32xf32>
    %264 = math.tanh %263 : vector<8x32xf32>
    %265 = arith.mulf %260, %264 : vector<8x32xf32>
    %cst_68 = arith.constant dense<0.000000e+00> : vector<8x128xf32>
    %266 = tpu.matmul %265, %4, %cst_68 {dimension_numbers = #tpu.dot_dimension_numbers<[1], [0], [0], [1], [0, 0, 1, 1], [], []>} : vector<8x32xf32>, vector<32x128xf32>, vector<8x128xf32> -> vector<8x128xf32>
    %cst_69 = arith.constant dense<0.000000e+00> : vector<8x128xf32>
    %267 = tpu.matmul %240, %5, %cst_69 {dimension_numbers = #tpu.dot_dimension_numbers<[1], [0], [0], [1], [0, 0, 1, 1], [], []>} : vector<8x32xf32>, vector<32x128xf32>, vector<8x128xf32> -> vector<8x128xf32>
    %268 = arith.addf %266, %267 : vector<8x128xf32>
    %269 = vector.broadcast %6 : vector<1x128xf32> to vector<8x128xf32>
    %270 = arith.addf %268, %269 : vector<8x128xf32>
    %271 = vector.extract_strided_slice %270 {offsets = [0, 0], sizes = [8, 96], strides = [1, 1]} : vector<8x128xf32> to vector<8x96xf32>
    %272 = arith.negf %271 : vector<8x96xf32>
    %273 = math.exp %272 : vector<8x96xf32>
    %cst_70 = arith.constant 1.000000e+00 : f32
    %274 = vector.broadcast %cst_70 : f32 to vector<8x96xf32>
    %275 = arith.addf %274, %273 : vector<8x96xf32>
    %276 = arith.divf %274, %275 : vector<8x96xf32>
    %277 = vector.extract_strided_slice %270 {offsets = [0, 96], sizes = [8, 32], strides = [1, 1]} : vector<8x128xf32> to vector<8x32xf32>
    %278 = math.tanh %277 : vector<8x32xf32>
    %279 = vector.extract_strided_slice %276 {offsets = [0, 0], sizes = [8, 32], strides = [1, 1]} : vector<8x96xf32> to vector<8x32xf32>
    %280 = vector.extract_strided_slice %276 {offsets = [0, 32], sizes = [8, 32], strides = [1, 1]} : vector<8x96xf32> to vector<8x32xf32>
    %281 = vector.extract_strided_slice %276 {offsets = [0, 64], sizes = [8, 32], strides = [1, 1]} : vector<8x96xf32> to vector<8x32xf32>
    %282 = arith.mulf %280, %238 : vector<8x32xf32>
    %283 = arith.mulf %279, %278 : vector<8x32xf32>
    %284 = arith.addf %282, %283 : vector<8x32xf32>
    %285 = math.tanh %284 : vector<8x32xf32>
    %286 = arith.mulf %281, %285 : vector<8x32xf32>
    %287 = arith.index_cast %c5_i32 : i32 to index
    %c0_71 = arith.constant 0 : index
    %c0_72 = arith.constant 0 : index
    %288 = vector.load %arg6[%287, %c0_71, %c0_72] : memref<8x8x32xf32, #tpu.memory_space<vmem>>, vector<1x8x32xf32>
    %289 = vector.shape_cast %288 : vector<1x8x32xf32> to vector<8x32xf32>
    %290 = vector.shape_cast %286 : vector<8x32xf32> to vector<1x8x32xf32>
    tpu.vector_store %arg6[%287, %c0_71, %c0_72], %290 {strides = array<i32>} : memref<8x8x32xf32, #tpu.memory_space<vmem>>, vector<1x8x32xf32>,
    %c6_i32 = arith.constant 6 : i32
    %291 = arith.index_cast %c6_i32 : i32 to index
    %c0_73 = arith.constant 0 : index
    %c0_74 = arith.constant 0 : index
    %292 = vector.load %arg1[%291, %c0_73, %c0_74] : memref<8x8x128xf32, #tpu.memory_space<vmem>>, vector<1x8x128xf32>
    %293 = vector.shape_cast %292 : vector<1x8x128xf32> to vector<8x128xf32>
    %cst_75 = arith.constant dense<0.000000e+00> : vector<8x128xf32>
    %294 = tpu.matmul %265, %3, %cst_75 {dimension_numbers = #tpu.dot_dimension_numbers<[1], [0], [0], [1], [0, 0, 1, 1], [], []>} : vector<8x32xf32>, vector<32x128xf32>, vector<8x128xf32> -> vector<8x128xf32>
    %295 = arith.addf %293, %294 : vector<8x128xf32>
    %296 = vector.extract_strided_slice %295 {offsets = [0, 0], sizes = [8, 96], strides = [1, 1]} : vector<8x128xf32> to vector<8x96xf32>
    %297 = arith.negf %296 : vector<8x96xf32>
    %298 = math.exp %297 : vector<8x96xf32>
    %cst_76 = arith.constant 1.000000e+00 : f32
    %299 = vector.broadcast %cst_76 : f32 to vector<8x96xf32>
    %300 = arith.addf %299, %298 : vector<8x96xf32>
    %301 = arith.divf %299, %300 : vector<8x96xf32>
    %302 = vector.extract_strided_slice %295 {offsets = [0, 96], sizes = [8, 32], strides = [1, 1]} : vector<8x128xf32> to vector<8x32xf32>
    %303 = math.tanh %302 : vector<8x32xf32>
    %304 = vector.extract_strided_slice %301 {offsets = [0, 0], sizes = [8, 32], strides = [1, 1]} : vector<8x96xf32> to vector<8x32xf32>
    %305 = vector.extract_strided_slice %301 {offsets = [0, 32], sizes = [8, 32], strides = [1, 1]} : vector<8x96xf32> to vector<8x32xf32>
    %306 = vector.extract_strided_slice %301 {offsets = [0, 64], sizes = [8, 32], strides = [1, 1]} : vector<8x96xf32> to vector<8x32xf32>
    %307 = arith.mulf %305, %263 : vector<8x32xf32>
    %308 = arith.mulf %304, %303 : vector<8x32xf32>
    %309 = arith.addf %307, %308 : vector<8x32xf32>
    %310 = math.tanh %309 : vector<8x32xf32>
    %311 = arith.mulf %306, %310 : vector<8x32xf32>
    %cst_77 = arith.constant dense<0.000000e+00> : vector<8x128xf32>
    %312 = tpu.matmul %311, %4, %cst_77 {dimension_numbers = #tpu.dot_dimension_numbers<[1], [0], [0], [1], [0, 0, 1, 1], [], []>} : vector<8x32xf32>, vector<32x128xf32>, vector<8x128xf32> -> vector<8x128xf32>
    %cst_78 = arith.constant dense<0.000000e+00> : vector<8x128xf32>
    %313 = tpu.matmul %286, %5, %cst_78 {dimension_numbers = #tpu.dot_dimension_numbers<[1], [0], [0], [1], [0, 0, 1, 1], [], []>} : vector<8x32xf32>, vector<32x128xf32>, vector<8x128xf32> -> vector<8x128xf32>
    %314 = arith.addf %312, %313 : vector<8x128xf32>
    %315 = vector.broadcast %6 : vector<1x128xf32> to vector<8x128xf32>
    %316 = arith.addf %314, %315 : vector<8x128xf32>
    %317 = vector.extract_strided_slice %316 {offsets = [0, 0], sizes = [8, 96], strides = [1, 1]} : vector<8x128xf32> to vector<8x96xf32>
    %318 = arith.negf %317 : vector<8x96xf32>
    %319 = math.exp %318 : vector<8x96xf32>
    %cst_79 = arith.constant 1.000000e+00 : f32
    %320 = vector.broadcast %cst_79 : f32 to vector<8x96xf32>
    %321 = arith.addf %320, %319 : vector<8x96xf32>
    %322 = arith.divf %320, %321 : vector<8x96xf32>
    %323 = vector.extract_strided_slice %316 {offsets = [0, 96], sizes = [8, 32], strides = [1, 1]} : vector<8x128xf32> to vector<8x32xf32>
    %324 = math.tanh %323 : vector<8x32xf32>
    %325 = vector.extract_strided_slice %322 {offsets = [0, 0], sizes = [8, 32], strides = [1, 1]} : vector<8x96xf32> to vector<8x32xf32>
    %326 = vector.extract_strided_slice %322 {offsets = [0, 32], sizes = [8, 32], strides = [1, 1]} : vector<8x96xf32> to vector<8x32xf32>
    %327 = vector.extract_strided_slice %322 {offsets = [0, 64], sizes = [8, 32], strides = [1, 1]} : vector<8x96xf32> to vector<8x32xf32>
    %328 = arith.mulf %326, %284 : vector<8x32xf32>
    %329 = arith.mulf %325, %324 : vector<8x32xf32>
    %330 = arith.addf %328, %329 : vector<8x32xf32>
    %331 = math.tanh %330 : vector<8x32xf32>
    %332 = arith.mulf %327, %331 : vector<8x32xf32>
    %333 = arith.index_cast %c6_i32 : i32 to index
    %c0_80 = arith.constant 0 : index
    %c0_81 = arith.constant 0 : index
    %334 = vector.load %arg6[%333, %c0_80, %c0_81] : memref<8x8x32xf32, #tpu.memory_space<vmem>>, vector<1x8x32xf32>
    %335 = vector.shape_cast %334 : vector<1x8x32xf32> to vector<8x32xf32>
    %336 = vector.shape_cast %332 : vector<8x32xf32> to vector<1x8x32xf32>
    tpu.vector_store %arg6[%333, %c0_80, %c0_81], %336 {strides = array<i32>} : memref<8x8x32xf32, #tpu.memory_space<vmem>>, vector<1x8x32xf32>,
    %c7_i32 = arith.constant 7 : i32
    %337 = arith.index_cast %c7_i32 : i32 to index
    %c0_82 = arith.constant 0 : index
    %c0_83 = arith.constant 0 : index
    %338 = vector.load %arg1[%337, %c0_82, %c0_83] : memref<8x8x128xf32, #tpu.memory_space<vmem>>, vector<1x8x128xf32>
    %339 = vector.shape_cast %338 : vector<1x8x128xf32> to vector<8x128xf32>
    %cst_84 = arith.constant dense<0.000000e+00> : vector<8x128xf32>
    %340 = tpu.matmul %311, %3, %cst_84 {dimension_numbers = #tpu.dot_dimension_numbers<[1], [0], [0], [1], [0, 0, 1, 1], [], []>} : vector<8x32xf32>, vector<32x128xf32>, vector<8x128xf32> -> vector<8x128xf32>
    %341 = arith.addf %339, %340 : vector<8x128xf32>
    %342 = vector.extract_strided_slice %341 {offsets = [0, 0], sizes = [8, 96], strides = [1, 1]} : vector<8x128xf32> to vector<8x96xf32>
    %343 = arith.negf %342 : vector<8x96xf32>
    %344 = math.exp %343 : vector<8x96xf32>
    %cst_85 = arith.constant 1.000000e+00 : f32
    %345 = vector.broadcast %cst_85 : f32 to vector<8x96xf32>
    %346 = arith.addf %345, %344 : vector<8x96xf32>
    %347 = arith.divf %345, %346 : vector<8x96xf32>
    %348 = vector.extract_strided_slice %341 {offsets = [0, 96], sizes = [8, 32], strides = [1, 1]} : vector<8x128xf32> to vector<8x32xf32>
    %349 = math.tanh %348 : vector<8x32xf32>
    %350 = vector.extract_strided_slice %347 {offsets = [0, 0], sizes = [8, 32], strides = [1, 1]} : vector<8x96xf32> to vector<8x32xf32>
    %351 = vector.extract_strided_slice %347 {offsets = [0, 32], sizes = [8, 32], strides = [1, 1]} : vector<8x96xf32> to vector<8x32xf32>
    %352 = vector.extract_strided_slice %347 {offsets = [0, 64], sizes = [8, 32], strides = [1, 1]} : vector<8x96xf32> to vector<8x32xf32>
    %353 = arith.mulf %351, %309 : vector<8x32xf32>
    %354 = arith.mulf %350, %349 : vector<8x32xf32>
    %355 = arith.addf %353, %354 : vector<8x32xf32>
    %356 = math.tanh %355 : vector<8x32xf32>
    %357 = arith.mulf %352, %356 : vector<8x32xf32>
    %cst_86 = arith.constant dense<0.000000e+00> : vector<8x128xf32>
    %358 = tpu.matmul %357, %4, %cst_86 {dimension_numbers = #tpu.dot_dimension_numbers<[1], [0], [0], [1], [0, 0, 1, 1], [], []>} : vector<8x32xf32>, vector<32x128xf32>, vector<8x128xf32> -> vector<8x128xf32>
    %cst_87 = arith.constant dense<0.000000e+00> : vector<8x128xf32>
    %359 = tpu.matmul %332, %5, %cst_87 {dimension_numbers = #tpu.dot_dimension_numbers<[1], [0], [0], [1], [0, 0, 1, 1], [], []>} : vector<8x32xf32>, vector<32x128xf32>, vector<8x128xf32> -> vector<8x128xf32>
    %360 = arith.addf %358, %359 : vector<8x128xf32>
    %361 = vector.broadcast %6 : vector<1x128xf32> to vector<8x128xf32>
    %362 = arith.addf %360, %361 : vector<8x128xf32>
    %363 = vector.extract_strided_slice %362 {offsets = [0, 0], sizes = [8, 96], strides = [1, 1]} : vector<8x128xf32> to vector<8x96xf32>
    %364 = arith.negf %363 : vector<8x96xf32>
    %365 = math.exp %364 : vector<8x96xf32>
    %cst_88 = arith.constant 1.000000e+00 : f32
    %366 = vector.broadcast %cst_88 : f32 to vector<8x96xf32>
    %367 = arith.addf %366, %365 : vector<8x96xf32>
    %368 = arith.divf %366, %367 : vector<8x96xf32>
    %369 = vector.extract_strided_slice %362 {offsets = [0, 96], sizes = [8, 32], strides = [1, 1]} : vector<8x128xf32> to vector<8x32xf32>
    %370 = math.tanh %369 : vector<8x32xf32>
    %371 = vector.extract_strided_slice %368 {offsets = [0, 0], sizes = [8, 32], strides = [1, 1]} : vector<8x96xf32> to vector<8x32xf32>
    %372 = vector.extract_strided_slice %368 {offsets = [0, 32], sizes = [8, 32], strides = [1, 1]} : vector<8x96xf32> to vector<8x32xf32>
    %373 = vector.extract_strided_slice %368 {offsets = [0, 64], sizes = [8, 32], strides = [1, 1]} : vector<8x96xf32> to vector<8x32xf32>
    %374 = arith.mulf %372, %330 : vector<8x32xf32>
    %375 = arith.mulf %371, %370 : vector<8x32xf32>
    %376 = arith.addf %374, %375 : vector<8x32xf32>
    %377 = math.tanh %376 : vector<8x32xf32>
    %378 = arith.mulf %373, %377 : vector<8x32xf32>
    %379 = arith.index_cast %c7_i32 : i32 to index
    %c0_89 = arith.constant 0 : index
    %c0_90 = arith.constant 0 : index
    %380 = vector.load %arg6[%379, %c0_89, %c0_90] : memref<8x8x32xf32, #tpu.memory_space<vmem>>, vector<1x8x32xf32>
    %381 = vector.shape_cast %380 : vector<1x8x32xf32> to vector<8x32xf32>
    %382 = vector.shape_cast %378 : vector<8x32xf32> to vector<1x8x32xf32>
    tpu.vector_store %arg6[%379, %c0_89, %c0_90], %382 {strides = array<i32>} : memref<8x8x32xf32, #tpu.memory_space<vmem>>, vector<1x8x32xf32>,
    %c8_i32 = arith.constant 8 : i32
    %c0_91 = arith.constant 0 : index
    %c0_92 = arith.constant 0 : index
    %c0_93 = arith.constant 0 : index
    %383 = vector.load %arg7[%c0_91, %c0_92, %c0_93] : memref<2x8x32xf32, #tpu.memory_space<vmem>>, vector<1x8x32xf32>
    %384 = vector.shape_cast %383 : vector<1x8x32xf32> to vector<8x32xf32>
    %385 = vector.shape_cast %357 : vector<8x32xf32> to vector<1x8x32xf32>
    tpu.vector_store %arg7[%c0_91, %c0_92, %c0_93], %385 {strides = array<i32>} : memref<2x8x32xf32, #tpu.memory_space<vmem>>, vector<1x8x32xf32>,
    %c0_94 = arith.constant 0 : index
    %c0_95 = arith.constant 0 : index
    %c0_96 = arith.constant 0 : index
    %386 = vector.load %arg8[%c0_94, %c0_95, %c0_96] : memref<2x8x32xf32, #tpu.memory_space<vmem>>, vector<1x8x32xf32>
    %387 = vector.shape_cast %386 : vector<1x8x32xf32> to vector<8x32xf32>
    %388 = vector.shape_cast %355 : vector<8x32xf32> to vector<1x8x32xf32>
    tpu.vector_store %arg8[%c0_94, %c0_95, %c0_96], %388 {strides = array<i32>} : memref<2x8x32xf32, #tpu.memory_space<vmem>>, vector<1x8x32xf32>,
    %c1_97 = arith.constant 1 : index
    %c0_98 = arith.constant 0 : index
    %c0_99 = arith.constant 0 : index
    %389 = vector.load %arg7[%c1_97, %c0_98, %c0_99] : memref<2x8x32xf32, #tpu.memory_space<vmem>>, vector<1x8x32xf32>
    %390 = vector.shape_cast %389 : vector<1x8x32xf32> to vector<8x32xf32>
    %391 = vector.shape_cast %378 : vector<8x32xf32> to vector<1x8x32xf32>
    tpu.vector_store %arg7[%c1_97, %c0_98, %c0_99], %391 {strides = array<i32>} : memref<2x8x32xf32, #tpu.memory_space<vmem>>, vector<1x8x32xf32>,
    %c1_100 = arith.constant 1 : index
    %c0_101 = arith.constant 0 : index
    %c0_102 = arith.constant 0 : index
    %392 = vector.load %arg8[%c1_100, %c0_101, %c0_102] : memref<2x8x32xf32, #tpu.memory_space<vmem>>, vector<1x8x32xf32>
    %393 = vector.shape_cast %392 : vector<1x8x32xf32> to vector<8x32xf32>
    %394 = vector.shape_cast %376 : vector<8x32xf32> to vector<1x8x32xf32>
    tpu.vector_store %arg8[%c1_100, %c0_101, %c0_102], %394 {strides = array<i32>} : memref<2x8x32xf32, #tpu.memory_space<vmem>>, vector<1x8x32xf32>,
    return
  }
  func.func @transform_0(%arg0: i32) -> (i32, i32, i32) {
    %c0_i32 = arith.constant 0 : i32
    %c0_i32_0 = arith.constant 0 : i32
    %c0_i32_1 = arith.constant 0 : i32
    return %arg0, %c0_i32, %c0_i32_0 : i32, i32, i32
  }
  func.func @transform_4(%arg0: i32) -> (i32, i32) {
    %c0_i32 = arith.constant 0 : i32
    %c0_i32_0 = arith.constant 0 : i32
    %c0_i32_1 = arith.constant 0 : i32
    return %c0_i32, %c0_i32_0 : i32, i32
  }
  func.func @transform_5(%arg0: i32) -> (i32, i32, i32) {
    %c0_i32 = arith.constant 0 : i32
    %c0_i32_0 = arith.constant 0 : i32
    %c0_i32_1 = arith.constant 0 : i32
    return %arg0, %c0_i32, %c0_i32_0 : i32, i32, i32
  }
}

</mosaic_0001>

<llo_original>
// kernel: tpu_custom_call.1
$region0: #{tpu_custom_call.1}
  #allocation0 [shape = 'u32[]', space=smem, size = 0x4, offset = 0x4, fixed_abs, tag = 'smem constant byte address 0x4 - core index']
  #allocation1 [shape = 'u32[144,128]{1,0:T(1,128)}', space=vmem, size = 0x12000, scoped, tag = 'internal scratch']
  #allocation2 [shape = 'f32[2,8,32]{2,1,0:T(8,128)}', space=vmem, size = 0x2000, scoped, tag = 'scratch operand']
  #allocation3 [shape = 'f32[2,8,32]{2,1,0:T(8,128)}', space=vmem, size = 0x2000, scoped, tag = 'scratch operand']
  #allocation4 [shape = 'f32[32,128]{1,0:T(8,128)}', space=vmem, size = 0x4000, scoped, tag = 'scratch operand']
  #allocation5 [shape = 'f32[32,128]{1,0:T(8,128)}', space=vmem, size = 0x4000, scoped, tag = 'scratch operand']
  #allocation6 [shape = 'f32[32,128]{1,0:T(8,128)}', space=vmem, size = 0x4000, scoped, tag = 'scratch operand']
  #allocation12 [shape = 's32[]', space=sflag, size = 0x4, offset = 0, fixed_abs, tag = 'sflag constant byte address 0x0 - dummy sync flag']
  #allocation13 [shape = 's32[]', space=sflag, size = 0x4, offset = 0, fixed_abs, tag = 'sflag constant byte address 0x0 - dummy sync flag']
  #allocation14 [shape = 'u32[]', space=smem, size = 0x4, offset = 0x44, fixed_abs, tag = 'smem constant byte address 0x44 - assertion arg 0']
  #allocation15 [shape = 'u32[]', space=smem, size = 0x4, offset = 0x48, fixed_abs, tag = 'smem constant byte address 0x48 - assertion arg 1']
  #allocation17 [shape = 's32[]', space=sflag, size = 0x4, offset = 0, fixed_abs, tag = 'sflag constant byte address 0x0 - dummy sync flag']
  #allocation18 [shape = 's32[]', space=sflag, size = 0x4, offset = 0, fixed_abs, tag = 'sflag constant byte address 0x0 - dummy sync flag']
  #allocation20 [shape = 's32[]', space=sflag, size = 0x4, offset = 0, fixed_abs, tag = 'sflag constant byte address 0x0 - dummy sync flag']
  #allocation21 [shape = 's32[]', space=sflag, size = 0x4, offset = 0, fixed_abs, tag = 'sflag constant byte address 0x0 - dummy sync flag']
  %s0 = inlined_call_operand.hbm [shape: f32[8,8,128], index: 0, kind: input, shape index: {}]
  %s1 = inlined_call_operand.hbm [shape: f32[32,128], index: 1, kind: input, shape index: {}]
  %s2 = inlined_call_operand.hbm [shape: f32[32,128], index: 2, kind: input, shape index: {}]
  %s3 = inlined_call_operand.hbm [shape: f32[32,128], index: 3, kind: input, shape index: {}]
  %s4 = inlined_call_operand.vmem [shape: f32[1,128], index: 4, kind: input, shape index: {}]
  %s5 = inlined_call_operand.hbm [shape: f32[8,8,32], index: 5, kind: output, shape index: {}]
  %s6 = sld [smem:[#allocation0]]
  $region41: #{tpu_custom_call.1} parent=0
    _
  %s8 = ssub.s32 1, %s6
  %s9 = scalar_select 0, %s8, %s6
  $region1: #{tpu_custom_call.1} parent=0
    #allocation7 [shape = 'u8[32768]{0}', space=vmem, size = 0x8000, scoped, tag = 'input window, operand 0, single buffered']
    #allocation8 [shape = 's32[1]{0}', space=sflag, size = 0x4, scoped, tag = 'scoped memory for tpu_custom_call.1']
    #allocation9 [shape = 's32[1]{0}', space=sflag, size = 0x4, scoped, tag = 'scoped memory for tpu_custom_call.1']
    #allocation10 [shape = 'u8[32768]{0}', space=vmem, size = 0x8000, scoped, tag = 'output window, operand 0, single buffered']
    %10 = vsyncpa [#allocation8], 0
    %11 = vsyncpa [#allocation9], 0
    // Predicated region
    $region2: #{tpu_custom_call.1} parent=1 // pred_check
      _
    $region3: #{tpu_custom_call.1} parent=1 // pred_check_branch
      %13 = sbr.rel (0) target = $region5
    $region4: #{tpu_custom_call.1} parent=1 // pred_region
      %s15 = ssub.s32 1024, 1024
      %16 = vsyncadd [#allocation8], %s15
      %s17 = sshll.u32 [#allocation7], 4
      %s18 = int_to_ptr.vmem [resolvable:$true] %s17
      %23 = dma.hbm_to_vmem [thread:$0]  %s0, 1024, %s18, [#allocation8], 128, 128, 8
    $region5: #{tpu_custom_call.1} parent=1 // pred_fallthru
      _
    // Predicated region
    $region6: #{tpu_custom_call.1} parent=1 // pred_check
      _
    $region7: #{tpu_custom_call.1} parent=1 // pred_check_branch
      %25 = sbr.rel (0) target = $region9
    $region8: #{tpu_custom_call.1} parent=1 // pred_region
      _
    $region9: #{tpu_custom_call.1} parent=1 // pred_fallthru
      _
    // Predicated region
    $region10: #{tpu_custom_call.1} parent=1 // pred_check
      _
    $region11: #{tpu_custom_call.1} parent=1 // pred_check_branch
      %27 = sbr.rel (0) target = $region13
    $region12: #{tpu_custom_call.1} parent=1 // pred_region
      %28 = dma.done [#allocation8], 1024
    $region13: #{tpu_custom_call.1} parent=1 // pred_fallthru
      _
    %p29 = scmp.eq.s32.totalorder 0, 0
    // Predicated region
    $region14: #{tpu_custom_call.1} parent=1 // pred_check
      %p30 = pneg %p29
    $region15: #{tpu_custom_call.1} parent=1 // pred_check_branch
      %32 = sbr.rel (%p30) target = $region17
    $region16: #{tpu_custom_call.1} parent=1 // pred_region
      %vm33 = vcmask 261120
      %34 = vst.msk [vmem:[#allocation2] sm:$0xff] %vm33, 0.0
      %35 = vst.msk [vmem:[#allocation2 + $0x8] sm:$0xff] %vm33, 0.0
      %36 = vst.msk [vmem:[#allocation3] sm:$0xff] %vm33, 0.0
      %37 = vst.msk [vmem:[#allocation3 + $0x8] sm:$0xff] %vm33, 0.0
      $region18: #{tpu_custom_call.1} parent=16
        #allocation11 [shape = 's32[1]{0}', space=sflag, size = 0x4, scoped, tag = 'scoped memory for tpu_custom_call.1']
        // Predicated region
        $region19: #{tpu_custom_call.1} parent=18 // pred_check
          _
        $region20: #{tpu_custom_call.1} parent=18 // pred_check_branch
          %39 = sbr.rel target = $region22
        $region21: #{tpu_custom_call.1} parent=18 // pred_region
          %40 = sst [smem:[#allocation14]] [#allocation13]
          %41 = sst [smem:[#allocation15]] [#allocation12]
        $region22: #{tpu_custom_call.1} parent=18 // pred_fallthru
          _
        %43 = shalt.err (0)
        %s45 = sshll.u32 [#allocation4], 4
        %s46 = int_to_ptr.vmem [resolvable:$true] %s45
        %48 = dma.hbm_to_vmem [thread:$0]  %s1, 512, %s46, [#allocation11]
        %s49 = smul.u32 32, 1
        %s50 = sshll.u32 %s49, 4
        %51 = dma.done [#allocation11], %s50
      $region23: #{tpu_custom_call.1} parent=16
        #allocation16 [shape = 's32[1]{0}', space=sflag, size = 0x4, scoped, tag = 'scoped memory for tpu_custom_call.1']
        // Predicated region
        $region24: #{tpu_custom_call.1} parent=23 // pred_check
          _
        $region25: #{tpu_custom_call.1} parent=23 // pred_check_branch
          %53 = sbr.rel target = $region27
        $region26: #{tpu_custom_call.1} parent=23 // pred_region
          %54 = sst [smem:[#allocation14]] [#allocation18]
          %55 = sst [smem:[#allocation15]] [#allocation17]
        $region27: #{tpu_custom_call.1} parent=23 // pred_fallthru
          _
        %57 = shalt.err (0)
        %s59 = sshll.u32 [#allocation5], 4
        %s60 = int_to_ptr.vmem [resolvable:$true] %s59
        %62 = dma.hbm_to_vmem [thread:$0]  %s2, 512, %s60, [#allocation16]
        %s63 = smul.u32 32, 1
        %s64 = sshll.u32 %s63, 4
        %65 = dma.done [#allocation16], %s64
      $region28: #{tpu_custom_call.1} parent=16
        #allocation19 [shape = 's32[1]{0}', space=sflag, size = 0x4, scoped, tag = 'scoped memory for tpu_custom_call.1']
        // Predicated region
        $region29: #{tpu_custom_call.1} parent=28 // pred_check
          _
        $region30: #{tpu_custom_call.1} parent=28 // pred_check_branch
          %67 = sbr.rel target = $region32
        $region31: #{tpu_custom_call.1} parent=28 // pred_region
          %68 = sst [smem:[#allocation14]] [#allocation21]
          %69 = sst [smem:[#allocation15]] [#allocation20]
        $region32: #{tpu_custom_call.1} parent=28 // pred_fallthru
          _
        %71 = shalt.err (0)
        %s73 = sshll.u32 [#allocation6], 4
        %s74 = int_to_ptr.vmem [resolvable:$true] %s73
        %76 = dma.hbm_to_vmem [thread:$0]  %s3, 512, %s74, [#allocation19]
        %s77 = smul.u32 32, 1
        %s78 = sshll.u32 %s77, 4
        %79 = dma.done [#allocation19], %s78
    $region17: #{tpu_custom_call.1} parent=1 // pred_fallthru
      _
    %v80 = vld [vmem:[#allocation4] sm:$0xff]
    %v81 = vld [vmem:[#allocation4 + $0x8] sm:$0xff]
    %v82 = vld [vmem:[#allocation4 + $0x10] sm:$0xff]
    %v83 = vld [vmem:[#allocation4 + $0x18] sm:$0xff]
    %v84 = vld [vmem:[#allocation5] sm:$0xff]
    %v85 = vld [vmem:[#allocation5 + $0x8] sm:$0xff]
    %v86 = vld [vmem:[#allocation5 + $0x10] sm:$0xff]
    %v87 = vld [vmem:[#allocation5 + $0x18] sm:$0xff]
    %v88 = vld [vmem:[#allocation6] sm:$0xff]
    %v89 = vld [vmem:[#allocation6 + $0x8] sm:$0xff]
    %v90 = vld [vmem:[#allocation6 + $0x10] sm:$0xff]
    %v91 = vld [vmem:[#allocation6 + $0x18] sm:$0xff]
    %v92 = vld [vmem:[%s4] sm:$0x1]
    %v93 = vld [vmem:[#allocation2] sm:$0xff]
    %s94 = scalar_lea.vmem [#allocation2], 8
    %v95 = vld [vmem:[%s94] sm:$0xff]
    %v96 = vld [vmem:[#allocation3] sm:$0xff]
    %s97 = scalar_lea.vmem [#allocation3], 8
    %v98 = vld [vmem:[%s97] sm:$0xff]
    %v99 = vld [vmem:[#allocation7] sm:$0xff]
    %vm100 = vcmask 261120
    %v102 = vsel %vm100, %v93, 0
    %104 = vmatprep.subr.mxu0 0.0
    %105 = vmatpush1.msra.mxu0 %v80
    %106 = vmatprep.subr.mxu0 0.0
    %107 = vmatpush1.msra.mxu0 %v81
    %108 = vmatprep.subr.mxu0 0.0
    %109 = vmatpush1.msra.mxu0 %v82
    %110 = vmatprep.subr.mxu0 0.0
    %111 = vmatpush1.msra.mxu0 %v83
    %112 = vmatprep.subr.mxu0 0.0
    %113 = vmatpush1.msra.mxu0 0.0
    %114 = vmatprep.subr.mxu0 0.0
    %115 = vmatpush1.msra.mxu0 0.0
    %116 = vmatprep.subr.mxu0 0.0
    %117 = vmatpush1.msra.mxu0 0.0
    %118 = vmatprep.subr.mxu0 0.0
    %119 = vmatpush1.msra.mxu0 0.0
    %120 = vmatprep.subr.mxu0 0.0
    %121 = vmatpush1.msra.mxu0 0.0
    %122 = vmatprep.subr.mxu0 0.0
    %123 = vmatpush1.msra.mxu0 0.0
    %124 = vmatprep.subr.mxu0 0.0
    %125 = vmatpush1.msra.mxu0 0.0
    %126 = vmatprep.subr.mxu0 0.0
    %127 = vmatpush1.msra.mxu0 0.0
    %128 = vmatprep.subr.mxu0 0.0
    %129 = vmatpush1.msra.mxu0 0.0
    %130 = vmatprep.subr.mxu0 0.0
    %131 = vmatpush1.msra.mxu0 0.0
    %132 = vmatprep.subr.mxu0 0.0
    %133 = vmatpush1.msra.mxu0 0.0
    %134 = vmatprep.subr.mxu0 0.0
    %135 = vmatpush1.msra.mxu0 0.0
    %136 = vmatprep.subr.mxu0 0.0
    %137 = vmatpush1.msra.mxu0 0.0
    %138 = vmatprep.subr.mxu0 0.0
    %139 = vmatpush1.msra.mxu0 0.0
    %140 = vmatprep.subr.mxu0 0.0
    %141 = vmatpush1.msra.mxu0 0.0
    %142 = vmatprep.subr.mxu0 0.0
    %143 = vmatpush1.msra.mxu0 0.0
    %144 = vmatprep.subr.mxu0 0.0
    %145 = vmatpush1.msra.mxu0 0.0
    %146 = vmatprep.subr.mxu0 0.0
    %147 = vmatpush1.msra.mxu0 0.0
    %148 = vmatprep.subr.mxu0 0.0
    %149 = vmatpush1.msra.mxu0 0.0
    %150 = vmatprep.subr.mxu0 0.0
    %151 = vmatpush1.msra.mxu0 0.0
    %152 = vmatprep.subr.mxu0 0.0
    %153 = vmatpush1.msra.mxu0 0.0
    %154 = vmatprep.subr.mxu0 0.0
    %155 = vmatpush1.msra.mxu0 0.0
    %156 = vmatprep.subr.mxu0 0.0
    %157 = vmatpush1.msra.mxu0 0.0
    %158 = vmatprep.subr.mxu0 0.0
    %159 = vmatpush1.msra.mxu0 0.0
    %160 = vmatprep.subr.mxu0 0.0
    %161 = vmatpush1.msra.mxu0 0.0
    %162 = vmatprep.subr.mxu0 0.0
    %163 = vmatpush1.msra.mxu0 0.0
    %164 = vmatprep.subr.mxu0 0.0
    %165 = vmatpush1.msra.mxu0 0.0
    %166 = vmatprep.subr.mxu0 0.0
    %167 = vmatpush1.msra.mxu0 0.0
    %168 = vmatprep.mubr.f32.mxu0 0.0
    %169 = vmatmul.mubr.f32.gmra.mrb[0].mxu0 %v102
    %v170 = vpop.f32.mrb[0].mxu0
    %v171 = vadd.f32 0.0, %v170
    %v172 = vpop.f32.mrb[0].mxu0
    %173 = vdwg.mxu0
    %v174 = vadd.f32 %v99, %v171
    %v175 = vxor.u32 %v174, 2147483648
    %v176 = vmul.f32 %v175, 1.442695
    %v177 = vpow.pop %v176
    %v178 = vadd.f32 %v177, 1.0
    %v179 = vrcp.pop %v178
    %v180 = vmul.f32 1.0, %v179
    %v181 = vtanh.pop %v174
    %183 = vrot.lane.b32.xlu0 %v96, 32
    %v184 = vpop.permute.xlu0 %183
    %v186 = vmul.f32 %v180, %v184
    %188 = vrot.lane.b32.xlu0 %v181, 32
    %v189 = vpop.permute.xlu0 %188
    %v191 = vmul.f32 %v180, %v189
    %193 = vrot.lane.b32.xlu0 %v191, 32
    %v194 = vpop.permute.xlu0 %193
    %v196 = vadd.f32 %v186, %v194
    %v197 = vtanh.pop %v196
    %199 = vrot.lane.b32.xlu0 %v197, 32
    %v200 = vpop.permute.xlu0 %199
    %v202 = vmul.f32 %v180, %v200
    %v204 = vsel %vm100, %v95, 0
    %206 = vmatprep.subr.mxu0 0.0
    %207 = vmatpush1.msra.mxu0 %v88
    %208 = vmatprep.subr.mxu0 0.0
    %209 = vmatpush1.msra.mxu0 %v89
    %210 = vmatprep.subr.mxu0 0.0
    %211 = vmatpush1.msra.mxu0 %v90
    %212 = vmatprep.subr.mxu0 0.0
    %213 = vmatpush1.msra.mxu0 %v91
    %214 = vmatprep.subr.mxu0 0.0
    %215 = vmatpush1.msra.mxu0 0.0
    %216 = vmatprep.subr.mxu0 0.0
    %217 = vmatpush1.msra.mxu0 0.0
    %218 = vmatprep.subr.mxu0 0.0
    %219 = vmatpush1.msra.mxu0 0.0
    %220 = vmatprep.subr.mxu0 0.0
    %221 = vmatpush1.msra.mxu0 0.0
    %222 = vmatprep.subr.mxu0 0.0
    %223 = vmatpush1.msra.mxu0 0.0
    %224 = vmatprep.subr.mxu0 0.0
    %225 = vmatpush1.msra.mxu0 0.0
    %226 = vmatprep.subr.mxu0 0.0
    %227 = vmatpush1.msra.mxu0 0.0
    %228 = vmatprep.subr.mxu0 0.0
    %229 = vmatpush1.msra.mxu0 0.0
    %230 = vmatprep.subr.mxu0 0.0
    %231 = vmatpush1.msra.mxu0 0.0
    %232 = vmatprep.subr.mxu0 0.0
    %233 = vmatpush1.msra.mxu0 0.0
    %234 = vmatprep.subr.mxu0 0.0
    %235 = vmatpush1.msra.mxu0 0.0
    %236 = vmatprep.subr.mxu0 0.0
    %237 = vmatpush1.msra.mxu0 0.0
    %238 = vmatprep.subr.mxu0 0.0
    %239 = vmatpush1.msra.mxu0 0.0
    %240 = vmatprep.subr.mxu0 0.0
    %241 = vmatpush1.msra.mxu0 0.0
    %242 = vmatprep.subr.mxu0 0.0
    %243 = vmatpush1.msra.mxu0 0.0
    %244 = vmatprep.subr.mxu0 0.0
    %245 = vmatpush1.msra.mxu0 0.0
    %246 = vmatprep.subr.mxu0 0.0
    %247 = vmatpush1.msra.mxu0 0.0
    %248 = vmatprep.subr.mxu0 0.0
    %249 = vmatpush1.msra.mxu0 0.0
    %250 = vmatprep.subr.mxu0 0.0
    %251 = vmatpush1.msra.mxu0 0.0
    %252 = vmatprep.subr.mxu0 0.0
    %253 = vmatpush1.msra.mxu0 0.0
    %254 = vmatprep.subr.mxu0 0.0
    %255 = vmatpush1.msra.mxu0 0.0
    %256 = vmatprep.subr.mxu0 0.0
    %257 = vmatpush1.msra.mxu0 0.0
    %258 = vmatprep.subr.mxu0 0.0
    %259 = vmatpush1.msra.mxu0 0.0
    %260 = vmatprep.subr.mxu0 0.0
    %261 = vmatpush1.msra.mxu0 0.0
    %262 = vmatprep.subr.mxu0 0.0
    %263 = vmatpush1.msra.mxu0 0.0
    %264 = vmatprep.subr.mxu0 0.0
    %265 = vmatpush1.msra.mxu0 0.0
    %266 = vmatprep.subr.mxu0 0.0
    %267 = vmatpush1.msra.mxu0 0.0
    %268 = vmatprep.subr.mxu0 0.0
    %269 = vmatpush1.msra.mxu0 0.0
    %270 = vmatprep.mubr.f32.mxu0 0.0
    %271 = vmatmul.mubr.f32.gmra.mrb[0].mxu0 %v204
    %v272 = vpop.f32.mrb[0].mxu0
    %v273 = vadd.f32 0.0, %v272
    %v274 = vpop.f32.mrb[0].mxu0
    %275 = vdwg.mxu0
    %277 = vrot.lane.b32.xlu0 %v202, 64
    %v278 = vpop.permute.xlu0 %277
    %v279 = vsel %vm100, %v278, 0
    %281 = vmatprep.subr.mxu0 0.0
    %282 = vmatpush1.msra.mxu0 %v84
    %283 = vmatprep.subr.mxu0 0.0
    %284 = vmatpush1.msra.mxu0 %v85
    %285 = vmatprep.subr.mxu0 0.0
    %286 = vmatpush1.msra.mxu0 %v86
    %287 = vmatprep.subr.mxu0 0.0
    %288 = vmatpush1.msra.mxu0 %v87
    %289 = vmatprep.subr.mxu0 0.0
    %290 = vmatpush1.msra.mxu0 0.0
    %291 = vmatprep.subr.mxu0 0.0
    %292 = vmatpush1.msra.mxu0 0.0
    %293 = vmatprep.subr.mxu0 0.0
    %294 = vmatpush1.msra.mxu0 0.0
    %295 = vmatprep.subr.mxu0 0.0
    %296 = vmatpush1.msra.mxu0 0.0
    %297 = vmatprep.subr.mxu0 0.0
    %298 = vmatpush1.msra.mxu0 0.0
    %299 = vmatprep.subr.mxu0 0.0
    %300 = vmatpush1.msra.mxu0 0.0
    %301 = vmatprep.subr.mxu0 0.0
    %302 = vmatpush1.msra.mxu0 0.0
    %303 = vmatprep.subr.mxu0 0.0
    %304 = vmatpush1.msra.mxu0 0.0
    %305 = vmatprep.subr.mxu0 0.0
    %306 = vmatpush1.msra.mxu0 0.0
    %307 = vmatprep.subr.mxu0 0.0
    %308 = vmatpush1.msra.mxu0 0.0
    %309 = vmatprep.subr.mxu0 0.0
    %310 = vmatpush1.msra.mxu0 0.0
    %311 = vmatprep.subr.mxu0 0.0
    %312 = vmatpush1.msra.mxu0 0.0
    %313 = vmatprep.subr.mxu0 0.0
    %314 = vmatpush1.msra.mxu0 0.0
    %315 = vmatprep.subr.mxu0 0.0
    %316 = vmatpush1.msra.mxu0 0.0
    %317 = vmatprep.subr.mxu0 0.0
    %318 = vmatpush1.msra.mxu0 0.0
    %319 = vmatprep.subr.mxu0 0.0
    %320 = vmatpush1.msra.mxu0 0.0
    %321 = vmatprep.subr.mxu0 0.0
    %322 = vmatpush1.msra.mxu0 0.0
    %323 = vmatprep.subr.mxu0 0.0
    %324 = vmatpush1.msra.mxu0 0.0
    %325 = vmatprep.subr.mxu0 0.0
    %326 = vmatpush1.msra.mxu0 0.0
    %327 = vmatprep.subr.mxu0 0.0
    %328 = vmatpush1.msra.mxu0 0.0
    %329 = vmatprep.subr.mxu0 0.0
    %330 = vmatpush1.msra.mxu0 0.0
    %331 = vmatprep.subr.mxu0 0.0
    %332 = vmatpush1.msra.mxu0 0.0
    %333 = vmatprep.subr.mxu0 0.0
    %334 = vmatpush1.msra.mxu0 0.0
    %335 = vmatprep.subr.mxu0 0.0
    %336 = vmatpush1.msra.mxu0 0.0
    %337 = vmatprep.subr.mxu0 0.0
    %338 = vmatpush1.msra.mxu0 0.0
    %339 = vmatprep.subr.mxu0 0.0
    %340 = vmatpush1.msra.mxu0 0.0
    %341 = vmatprep.subr.mxu0 0.0
    %342 = vmatpush1.msra.mxu0 0.0
    %343 = vmatprep.subr.mxu0 0.0
    %344 = vmatpush1.msra.mxu0 0.0
    %345 = vmatprep.mubr.f32.mxu0 0.0
    %346 = vmatmul.mubr.f32.gmra.mrb[0].mxu0 %v279
    %v347 = vpop.f32.mrb[0].mxu0
    %v348 = vadd.f32 %v273, %v347
    %v349 = vpop.f32.mrb[0].mxu0
    %350 = vdwg.mxu0
    %v352 = vlaneseq
    %v353 = vshrl.u32 %v352, 7
    %v354 = vsub.s32 0, %v353
    %v355 = vrot.slane %v92, %v354
    %v357 = vadd.f32 %v348, %v355
    %v358 = vxor.u32 %v357, 2147483648
    %v359 = vmul.f32 %v358, 1.442695
    %v360 = vpow.pop %v359
    %v361 = vadd.f32 %v360, 1.0
    %v362 = vrcp.pop %v361
    %v363 = vmul.f32 1.0, %v362
    %v364 = vtanh.pop %v357
    %366 = vrot.lane.b32.xlu0 %v98, 32
    %v367 = vpop.permute.xlu0 %366
    %v369 = vmul.f32 %v363, %v367
    %371 = vrot.lane.b32.xlu0 %v364, 32
    %v372 = vpop.permute.xlu0 %371
    %v374 = vmul.f32 %v363, %v372
    %376 = vrot.lane.b32.xlu0 %v374, 32
    %v377 = vpop.permute.xlu0 %376
    %v379 = vadd.f32 %v369, %v377
    %v380 = vtanh.pop %v379
    %382 = vrot.lane.b32.xlu0 %v380, 32
    %v383 = vpop.permute.xlu0 %382
    %v385 = vmul.f32 %v363, %v383
    %387 = vrot.lane.b32.xlu0 %v385, 64
    %v388 = vpop.permute.xlu0 %387
    %390 = vst.msk [vmem:[#allocation10] sm:$0xff] %vm100, %v388
    %s391 = scalar_lea.vmem [#allocation7], 8
    %v392 = vld [vmem:[%s391] sm:$0xff]
    %393 = vmatprep.subr.mxu0 0.0
    %394 = vmatpush1.msra.mxu0 %v80
    %395 = vmatprep.subr.mxu0 0.0
    %396 = vmatpush1.msra.mxu0 %v81
    %397 = vmatprep.subr.mxu0 0.0
    %398 = vmatpush1.msra.mxu0 %v82
    %399 = vmatprep.subr.mxu0 0.0
    %400 = vmatpush1.msra.mxu0 %v83
    %401 = vmatprep.subr.mxu0 0.0
    %402 = vmatpush1.msra.mxu0 0.0
    %403 = vmatprep.subr.mxu0 0.0
    %404 = vmatpush1.msra.mxu0 0.0
    %405 = vmatprep.subr.mxu0 0.0
    %406 = vmatpush1.msra.mxu0 0.0
    %407 = vmatprep.subr.mxu0 0.0
    %408 = vmatpush1.msra.mxu0 0.0
    %409 = vmatprep.subr.mxu0 0.0
    %410 = vmatpush1.msra.mxu0 0.0
    %411 = vmatprep.subr.mxu0 0.0
    %412 = vmatpush1.msra.mxu0 0.0
    %413 = vmatprep.subr.mxu0 0.0
    %414 = vmatpush1.msra.mxu0 0.0
    %415 = vmatprep.subr.mxu0 0.0
    %416 = vmatpush1.msra.mxu0 0.0
    %417 = vmatprep.subr.mxu0 0.0
    %418 = vmatpush1.msra.mxu0 0.0
    %419 = vmatprep.subr.mxu0 0.0
    %420 = vmatpush1.msra.mxu0 0.0
    %421 = vmatprep.subr.mxu0 0.0
    %422 = vmatpush1.msra.mxu0 0.0
    %423 = vmatprep.subr.mxu0 0.0
    %424 = vmatpush1.msra.mxu0 0.0
    %425 = vmatprep.subr.mxu0 0.0
    %426 = vmatpush1.msra.mxu0 0.0
    %427 = vmatprep.subr.mxu0 0.0
    %428 = vmatpush1.msra.mxu0 0.0
    %429 = vmatprep.subr.mxu0 0.0
    %430 = vmatpush1.msra.mxu0 0.0
    %431 = vmatprep.subr.mxu0 0.0
    %432 = vmatpush1.msra.mxu0 0.0
    %433 = vmatprep.subr.mxu0 0.0
    %434 = vmatpush1.msra.mxu0 0.0
    %435 = vmatprep.subr.mxu0 0.0
    %436 = vmatpush1.msra.mxu0 0.0
    %437 = vmatprep.subr.mxu0 0.0
    %438 = vmatpush1.msra.mxu0 0.0
    %439 = vmatprep.subr.mxu0 0.0
    %440 = vmatpush1.msra.mxu0 0.0
    %441 = vmatprep.subr.mxu0 0.0
    %442 = vmatpush1.msra.mxu0 0.0
    %443 = vmatprep.subr.mxu0 0.0
    %444 = vmatpush1.msra.mxu0 0.0
    %445 = vmatprep.subr.mxu0 0.0
    %446 = vmatpush1.msra.mxu0 0.0
    %447 = vmatprep.subr.mxu0 0.0
    %448 = vmatpush1.msra.mxu0 0.0
    %449 = vmatprep.subr.mxu0 0.0
    %450 = vmatpush1.msra.mxu0 0.0
    %451 = vmatprep.subr.mxu0 0.0
    %452 = vmatpush1.msra.mxu0 0.0
    %453 = vmatprep.subr.mxu0 0.0
    %454 = vmatpush1.msra.mxu0 0.0
    %455 = vmatprep.subr.mxu0 0.0
    %456 = vmatpush1.msra.mxu0 0.0
    %457 = vmatprep.mubr.f32.mxu0 0.0
    %458 = vmatmul.mubr.f32.gmra.mrb[0].mxu0 %v279
    %v459 = vpop.f32.mrb[0].mxu0
    %v460 = vadd.f32 0.0, %v459
    %v461 = vpop.f32.mrb[0].mxu0
    %462 = vdwg.mxu0
    %v463 = vadd.f32 %v392, %v460
    %v464 = vxor.u32 %v463, 2147483648
    %v465 = vmul.f32 %v464, 1.442695
    %v466 = vpow.pop %v465
    %v467 = vadd.f32 %v466, 1.0
    %v468 = vrcp.pop %v467
    %v469 = vmul.f32 1.0, %v468
    %v470 = vtanh.pop %v463
    %v471 = vmul.f32 %v469, %v196
    %473 = vrot.lane.b32.xlu0 %v470, 32
    %v474 = vpop.permute.xlu0 %473
    %v476 = vmul.f32 %v469, %v474
    %478 = vrot.lane.b32.xlu0 %v476, 32
    %v479 = vpop.permute.xlu0 %478
    %v481 = vadd.f32 %v471, %v479
    %v482 = vtanh.pop %v481
    %484 = vrot.lane.b32.xlu0 %v482, 32
    %v485 = vpop.permute.xlu0 %484
    %v487 = vmul.f32 %v469, %v485
    %v488 = vsel %vm100, %v388, 0
    %490 = vmatprep.subr.mxu0 0.0
    %491 = vmatpush1.msra.mxu0 %v88
    %492 = vmatprep.subr.mxu0 0.0
    %493 = vmatpush1.msra.mxu0 %v89
    %494 = vmatprep.subr.mxu0 0.0
    %495 = vmatpush1.msra.mxu0 %v90
    %496 = vmatprep.subr.mxu0 0.0
    %497 = vmatpush1.msra.mxu0 %v91
    %498 = vmatprep.subr.mxu0 0.0
    %499 = vmatpush1.msra.mxu0 0.0
    %500 = vmatprep.subr.mxu0 0.0
    %501 = vmatpush1.msra.mxu0 0.0
    %502 = vmatprep.subr.mxu0 0.0
    %503 = vmatpush1.msra.mxu0 0.0
    %504 = vmatprep.subr.mxu0 0.0
    %505 = vmatpush1.msra.mxu0 0.0
    %506 = vmatprep.subr.mxu0 0.0
    %507 = vmatpush1.msra.mxu0 0.0
    %508 = vmatprep.subr.mxu0 0.0
    %509 = vmatpush1.msra.mxu0 0.0
    %510 = vmatprep.subr.mxu0 0.0
    %511 = vmatpush1.msra.mxu0 0.0
    %512 = vmatprep.subr.mxu0 0.0
    %513 = vmatpush1.msra.mxu0 0.0
    %514 = vmatprep.subr.mxu0 0.0
    %515 = vmatpush1.msra.mxu0 0.0
    %516 = vmatprep.subr.mxu0 0.0
    %517 = vmatpush1.msra.mxu0 0.0
    %518 = vmatprep.subr.mxu0 0.0
    %519 = vmatpush1.msra.mxu0 0.0
    %520 = vmatprep.subr.mxu0 0.0
    %521 = vmatpush1.msra.mxu0 0.0
    %522 = vmatprep.subr.mxu0 0.0
    %523 = vmatpush1.msra.mxu0 0.0
    %524 = vmatprep.subr.mxu0 0.0
    %525 = vmatpush1.msra.mxu0 0.0
    %526 = vmatprep.subr.mxu0 0.0
    %527 = vmatpush1.msra.mxu0 0.0
    %528 = vmatprep.subr.mxu0 0.0
    %529 = vmatpush1.msra.mxu0 0.0
    %530 = vmatprep.subr.mxu0 0.0
    %531 = vmatpush1.msra.mxu0 0.0
    %532 = vmatprep.subr.mxu0 0.0
    %533 = vmatpush1.msra.mxu0 0.0
    %534 = vmatprep.subr.mxu0 0.0
    %535 = vmatpush1.msra.mxu0 0.0
    %536 = vmatprep.subr.mxu0 0.0
    %537 = vmatpush1.msra.mxu0 0.0
    %538 = vmatprep.subr.mxu0 0.0
    %539 = vmatpush1.msra.mxu0 0.0
    %540 = vmatprep.subr.mxu0 0.0
    %541 = vmatpush1.msra.mxu0 0.0
    %542 = vmatprep.subr.mxu0 0.0
    %543 = vmatpush1.msra.mxu0 0.0
    %544 = vmatprep.subr.mxu0 0.0
    %545 = vmatpush1.msra.mxu0 0.0
    %546 = vmatprep.subr.mxu0 0.0
    %547 = vmatpush1.msra.mxu0 0.0
    %548 = vmatprep.subr.mxu0 0.0
    %549 = vmatpush1.msra.mxu0 0.0
    %550 = vmatprep.subr.mxu0 0.0
    %551 = vmatpush1.msra.mxu0 0.0
    %552 = vmatprep.subr.mxu0 0.0
    %553 = vmatpush1.msra.mxu0 0.0
    %554 = vmatprep.mubr.f32.mxu0 0.0
    %555 = vmatmul.mubr.f32.gmra.mrb[0].mxu0 %v488
    %v556 = vpop.f32.mrb[0].mxu0
    %v557 = vadd.f32 0.0, %v556
    %v558 = vpop.f32.mrb[0].mxu0
    %559 = vdwg.mxu0
    %561 = vrot.lane.b32.xlu0 %v487, 64
    %v562 = vpop.permute.xlu0 %561
    %v563 = vsel %vm100, %v562, 0
    %565 = vmatprep.subr.mxu0 0.0
    %566 = vmatpush1.msra.mxu0 %v84
    %567 = vmatprep.subr.mxu0 0.0
    %568 = vmatpush1.msra.mxu0 %v85
    %569 = vmatprep.subr.mxu0 0.0
    %570 = vmatpush1.msra.mxu0 %v86
    %571 = vmatprep.subr.mxu0 0.0
    %572 = vmatpush1.msra.mxu0 %v87
    %573 = vmatprep.subr.mxu0 0.0
    %574 = vmatpush1.msra.mxu0 0.0
    %575 = vmatprep.subr.mxu0 0.0
    %576 = vmatpush1.msra.mxu0 0.0
    %577 = vmatprep.subr.mxu0 0.0
    %578 = vmatpush1.msra.mxu0 0.0
    %579 = vmatprep.subr.mxu0 0.0
    %580 = vmatpush1.msra.mxu0 0.0
    %581 = vmatprep.subr.mxu0 0.0
    %582 = vmatpush1.msra.mxu0 0.0
    %583 = vmatprep.subr.mxu0 0.0
    %584 = vmatpush1.msra.mxu0 0.0
    %585 = vmatprep.subr.mxu0 0.0
    %586 = vmatpush1.msra.mxu0 0.0
    %587 = vmatprep.subr.mxu0 0.0
    %588 = vmatpush1.msra.mxu0 0.0
    %589 = vmatprep.subr.mxu0 0.0
    %590 = vmatpush1.msra.mxu0 0.0
    %591 = vmatprep.subr.mxu0 0.0
    %592 = vmatpush1.msra.mxu0 0.0
    %593 = vmatprep.subr.mxu0 0.0
    %594 = vmatpush1.msra.mxu0 0.0
    %595 = vmatprep.subr.mxu0 0.0
    %596 = vmatpush1.msra.mxu0 0.0
    %597 = vmatprep.subr.mxu0 0.0
    %598 = vmatpush1.msra.mxu0 0.0
    %599 = vmatprep.subr.mxu0 0.0
    %600 = vmatpush1.msra.mxu0 0.0
    %601 = vmatprep.subr.mxu0 0.0
    %602 = vmatpush1.msra.mxu0 0.0
    %603 = vmatprep.subr.mxu0 0.0
    %604 = vmatpush1.msra.mxu0 0.0
    %605 = vmatprep.subr.mxu0 0.0
    %606 = vmatpush1.msra.mxu0 0.0
    %607 = vmatprep.subr.mxu0 0.0
    %608 = vmatpush1.msra.mxu0 0.0
    %609 = vmatprep.subr.mxu0 0.0
    %610 = vmatpush1.msra.mxu0 0.0
    %611 = vmatprep.subr.mxu0 0.0
    %612 = vmatpush1.msra.mxu0 0.0
    %613 = vmatprep.subr.mxu0 0.0
    %614 = vmatpush1.msra.mxu0 0.0
    %615 = vmatprep.subr.mxu0 0.0
    %616 = vmatpush1.msra.mxu0 0.0
    %617 = vmatprep.subr.mxu0 0.0
    %618 = vmatpush1.msra.mxu0 0.0
    %619 = vmatprep.subr.mxu0 0.0
    %620 = vmatpush1.msra.mxu0 0.0
    %621 = vmatprep.subr.mxu0 0.0
    %622 = vmatpush1.msra.mxu0 0.0
    %623 = vmatprep.subr.mxu0 0.0
    %624 = vmatpush1.msra.mxu0 0.0
    %625 = vmatprep.subr.mxu0 0.0
    %626 = vmatpush1.msra.mxu0 0.0
    %627 = vmatprep.subr.mxu0 0.0
    %628 = vmatpush1.msra.mxu0 0.0
    %629 = vmatprep.mubr.f32.mxu0 0.0
    %630 = vmatmul.mubr.f32.gmra.mrb[0].mxu0 %v563
    %v631 = vpop.f32.mrb[0].mxu0
    %v632 = vadd.f32 %v557, %v631
    %v633 = vpop.f32.mrb[0].mxu0
    %634 = vdwg.mxu0
    %v635 = vadd.f32 %v632, %v355
    %v636 = vxor.u32 %v635, 2147483648
    %v637 = vmul.f32 %v636, 1.442695
    %v638 = vpow.pop %v637
    %v639 = vadd.f32 %v638, 1.0
    %v640 = vrcp.pop %v639
    %v641 = vmul.f32 1.0, %v640
    %v642 = vtanh.pop %v635
    %v643 = vmul.f32 %v641, %v379
    %645 = vrot.lane.b32.xlu0 %v642, 32
    %v646 = vpop.permute.xlu0 %645
    %v648 = vmul.f32 %v641, %v646
    %650 = vrot.lane.b32.xlu0 %v648, 32
    %v651 = vpop.permute.xlu0 %650
    %v653 = vadd.f32 %v643, %v651
    %v654 = vtanh.pop %v653
    %656 = vrot.lane.b32.xlu0 %v654, 32
    %v657 = vpop.permute.xlu0 %656
    %v659 = vmul.f32 %v641, %v657
    %661 = vrot.lane.b32.xlu0 %v659, 64
    %v662 = vpop.permute.xlu0 %661
    %s664 = scalar_lea.vmem [#allocation10], 8
    %665 = vst.msk [vmem:[%s664] sm:$0xff] %vm100, %v662
    %s666 = scalar_lea.vmem [#allocation7], 16
    %v667 = vld [vmem:[%s666] sm:$0xff]
    %668 = vmatprep.subr.mxu0 0.0
    %669 = vmatpush1.msra.mxu0 %v80
    %670 = vmatprep.subr.mxu0 0.0
    %671 = vmatpush1.msra.mxu0 %v81
    %672 = vmatprep.subr.mxu0 0.0
    %673 = vmatpush1.msra.mxu0 %v82
    %674 = vmatprep.subr.mxu0 0.0
    %675 = vmatpush1.msra.mxu0 %v83
    %676 = vmatprep.subr.mxu0 0.0
    %677 = vmatpush1.msra.mxu0 0.0
    %678 = vmatprep.subr.mxu0 0.0
    %679 = vmatpush1.msra.mxu0 0.0
    %680 = vmatprep.subr.mxu0 0.0
    %681 = vmatpush1.msra.mxu0 0.0
    %682 = vmatprep.subr.mxu0 0.0
    %683 = vmatpush1.msra.mxu0 0.0
    %684 = vmatprep.subr.mxu0 0.0
    %685 = vmatpush1.msra.mxu0 0.0
    %686 = vmatprep.subr.mxu0 0.0
    %687 = vmatpush1.msra.mxu0 0.0
    %688 = vmatprep.subr.mxu0 0.0
    %689 = vmatpush1.msra.mxu0 0.0
    %690 = vmatprep.subr.mxu0 0.0
    %691 = vmatpush1.msra.mxu0 0.0
    %692 = vmatprep.subr.mxu0 0.0
    %693 = vmatpush1.msra.mxu0 0.0
    %694 = vmatprep.subr.mxu0 0.0
    %695 = vmatpush1.msra.mxu0 0.0
    %696 = vmatprep.subr.mxu0 0.0
    %697 = vmatpush1.msra.mxu0 0.0
    %698 = vmatprep.subr.mxu0 0.0
    %699 = vmatpush1.msra.mxu0 0.0
    %700 = vmatprep.subr.mxu0 0.0
    %701 = vmatpush1.msra.mxu0 0.0
    %702 = vmatprep.subr.mxu0 0.0
    %703 = vmatpush1.msra.mxu0 0.0
    %704 = vmatprep.subr.mxu0 0.0
    %705 = vmatpush1.msra.mxu0 0.0
    %706 = vmatprep.subr.mxu0 0.0
    %707 = vmatpush1.msra.mxu0 0.0
    %708 = vmatprep.subr.mxu0 0.0
    %709 = vmatpush1.msra.mxu0 0.0
    %710 = vmatprep.subr.mxu0 0.0
    %711 = vmatpush1.msra.mxu0 0.0
    %712 = vmatprep.subr.mxu0 0.0
    %713 = vmatpush1.msra.mxu0 0.0
    %714 = vmatprep.subr.mxu0 0.0
    %715 = vmatpush1.msra.mxu0 0.0
    %716 = vmatprep.subr.mxu0 0.0
    %717 = vmatpush1.msra.mxu0 0.0
    %718 = vmatprep.subr.mxu0 0.0
    %719 = vmatpush1.msra.mxu0 0.0
    %720 = vmatprep.subr.mxu0 0.0
    %721 = vmatpush1.msra.mxu0 0.0
    %722 = vmatprep.subr.mxu0 0.0
    %723 = vmatpush1.msra.mxu0 0.0
    %724 = vmatprep.subr.mxu0 0.0
    %725 = vmatpush1.msra.mxu0 0.0
    %726 = vmatprep.subr.mxu0 0.0
    %727 = vmatpush1.msra.mxu0 0.0
    %728 = vmatprep.subr.mxu0 0.0
    %729 = vmatpush1.msra.mxu0 0.0
    %730 = vmatprep.subr.mxu0 0.0
    %731 = vmatpush1.msra.mxu0 0.0
    %732 = vmatprep.mubr.f32.mxu0 0.0
    %733 = vmatmul.mubr.f32.gmra.mrb[0].mxu0 %v563
    %v734 = vpop.f32.mrb[0].mxu0
    %v735 = vadd.f32 0.0, %v734
    %v736 = vpop.f32.mrb[0].mxu0
    %737 = vdwg.mxu0
    %v738 = vadd.f32 %v667, %v735
    %v739 = vxor.u32 %v738, 2147483648
    %v740 = vmul.f32 %v739, 1.442695
    %v741 = vpow.pop %v740
    %v742 = vadd.f32 %v741, 1.0
    %v743 = vrcp.pop %v742
    %v744 = vmul.f32 1.0, %v743
    %v745 = vtanh.pop %v738
    %v746 = vmul.f32 %v744, %v481
    %748 = vrot.lane.b32.xlu0 %v745, 32
    %v749 = vpop.permute.xlu0 %748
    %v751 = vmul.f32 %v744, %v749
    %753 = vrot.lane.b32.xlu0 %v751, 32
    %v754 = vpop.permute.xlu0 %753
    %v756 = vadd.f32 %v746, %v754
    %v757 = vtanh.pop %v756
    %759 = vrot.lane.b32.xlu0 %v757, 32
    %v760 = vpop.permute.xlu0 %759
    %v762 = vmul.f32 %v744, %v760
    %v763 = vsel %vm100, %v662, 0
    %765 = vmatprep.subr.mxu0 0.0
    %766 = vmatpush1.msra.mxu0 %v88
    %767 = vmatprep.subr.mxu0 0.0
    %768 = vmatpush1.msra.mxu0 %v89
    %769 = vmatprep.subr.mxu0 0.0
    %770 = vmatpush1.msra.mxu0 %v90
    %771 = vmatprep.subr.mxu0 0.0
    %772 = vmatpush1.msra.mxu0 %v91
    %773 = vmatprep.subr.mxu0 0.0
    %774 = vmatpush1.msra.mxu0 0.0
    %775 = vmatprep.subr.mxu0 0.0
    %776 = vmatpush1.msra.mxu0 0.0
    %777 = vmatprep.subr.mxu0 0.0
    %778 = vmatpush1.msra.mxu0 0.0
    %779 = vmatprep.subr.mxu0 0.0
    %780 = vmatpush1.msra.mxu0 0.0
    %781 = vmatprep.subr.mxu0 0.0
    %782 = vmatpush1.msra.mxu0 0.0
    %783 = vmatprep.subr.mxu0 0.0
    %784 = vmatpush1.msra.mxu0 0.0
    %785 = vmatprep.subr.mxu0 0.0
    %786 = vmatpush1.msra.mxu0 0.0
    %787 = vmatprep.subr.mxu0 0.0
    %788 = vmatpush1.msra.mxu0 0.0
    %789 = vmatprep.subr.mxu0 0.0
    %790 = vmatpush1.msra.mxu0 0.0
    %791 = vmatprep.subr.mxu0 0.0
    %792 = vmatpush1.msra.mxu0 0.0
    %793 = vmatprep.subr.mxu0 0.0
    %794 = vmatpush1.msra.mxu0 0.0
    %795 = vmatprep.subr.mxu0 0.0
    %796 = vmatpush1.msra.mxu0 0.0
    %797 = vmatprep.subr.mxu0 0.0
    %798 = vmatpush1.msra.mxu0 0.0
    %799 = vmatprep.subr.mxu0 0.0
    %800 = vmatpush1.msra.mxu0 0.0
    %801 = vmatprep.subr.mxu0 0.0
    %802 = vmatpush1.msra.mxu0 0.0
    %803 = vmatprep.subr.mxu0 0.0
    %804 = vmatpush1.msra.mxu0 0.0
    %805 = vmatprep.subr.mxu0 0.0
    %806 = vmatpush1.msra.mxu0 0.0
    %807 = vmatprep.subr.mxu0 0.0
    %808 = vmatpush1.msra.mxu0 0.0
    %809 = vmatprep.subr.mxu0 0.0
    %810 = vmatpush1.msra.mxu0 0.0
    %811 = vmatprep.subr.mxu0 0.0
    %812 = vmatpush1.msra.mxu0 0.0
    %813 = vmatprep.subr.mxu0 0.0
    %814 = vmatpush1.msra.mxu0 0.0
    %815 = vmatprep.subr.mxu0 0.0
    %816 = vmatpush1.msra.mxu0 0.0
    %817 = vmatprep.subr.mxu0 0.0
    %818 = vmatpush1.msra.mxu0 0.0
    %819 = vmatprep.subr.mxu0 0.0
    %820 = vmatpush1.msra.mxu0 0.0
    %821 = vmatprep.subr.mxu0 0.0
    %822 = vmatpush1.msra.mxu0 0.0
    %823 = vmatprep.subr.mxu0 0.0
    %824 = vmatpush1.msra.mxu0 0.0
    %825 = vmatprep.subr.mxu0 0.0
    %826 = vmatpush1.msra.mxu0 0.0
    %827 = vmatprep.subr.mxu0 0.0
    %828 = vmatpush1.msra.mxu0 0.0
    %829 = vmatprep.mubr.f32.mxu0 0.0
    %830 = vmatmul.mubr.f32.gmra.mrb[0].mxu0 %v763
    %v831 = vpop.f32.mrb[0].mxu0
    %v832 = vadd.f32 0.0, %v831
    %v833 = vpop.f32.mrb[0].mxu0
    %834 = vdwg.mxu0
    %836 = vrot.lane.b32.xlu0 %v762, 64
    %v837 = vpop.permute.xlu0 %836
    %v838 = vsel %vm100, %v837, 0
    %840 = vmatprep.subr.mxu0 0.0
    %841 = vmatpush1.msra.mxu0 %v84
    %842 = vmatprep.subr.mxu0 0.0
    %843 = vmatpush1.msra.mxu0 %v85
    %844 = vmatprep.subr.mxu0 0.0
    %845 = vmatpush1.msra.mxu0 %v86
    %846 = vmatprep.subr.mxu0 0.0
    %847 = vmatpush1.msra.mxu0 %v87
    %848 = vmatprep.subr.mxu0 0.0
    %849 = vmatpush1.msra.mxu0 0.0
    %850 = vmatprep.subr.mxu0 0.0
    %851 = vmatpush1.msra.mxu0 0.0
    %852 = vmatprep.subr.mxu0 0.0
    %853 = vmatpush1.msra.mxu0 0.0
    %854 = vmatprep.subr.mxu0 0.0
    %855 = vmatpush1.msra.mxu0 0.0
    %856 = vmatprep.subr.mxu0 0.0
    %857 = vmatpush1.msra.mxu0 0.0
    %858 = vmatprep.subr.mxu0 0.0
    %859 = vmatpush1.msra.mxu0 0.0
    %860 = vmatprep.subr.mxu0 0.0
    %861 = vmatpush1.msra.mxu0 0.0
    %862 = vmatprep.subr.mxu0 0.0
    %863 = vmatpush1.msra.mxu0 0.0
    %864 = vmatprep.subr.mxu0 0.0
    %865 = vmatpush1.msra.mxu0 0.0
    %866 = vmatprep.subr.mxu0 0.0
    %867 = vmatpush1.msra.mxu0 0.0
    %868 = vmatprep.subr.mxu0 0.0
    %869 = vmatpush1.msra.mxu0 0.0
    %870 = vmatprep.subr.mxu0 0.0
    %871 = vmatpush1.msra.mxu0 0.0
    %872 = vmatprep.subr.mxu0 0.0
    %873 = vmatpush1.msra.mxu0 0.0
    %874 = vmatprep.subr.mxu0 0.0
    %875 = vmatpush1.msra.mxu0 0.0
    %876 = vmatprep.subr.mxu0 0.0
    %877 = vmatpush1.msra.mxu0 0.0
    %878 = vmatprep.subr.mxu0 0.0
    %879 = vmatpush1.msra.mxu0 0.0
    %880 = vmatprep.subr.mxu0 0.0
    %881 = vmatpush1.msra.mxu0 0.0
    %882 = vmatprep.subr.mxu0 0.0
    %883 = vmatpush1.msra.mxu0 0.0
    %884 = vmatprep.subr.mxu0 0.0
    %885 = vmatpush1.msra.mxu0 0.0
    %886 = vmatprep.subr.mxu0 0.0
    %887 = vmatpush1.msra.mxu0 0.0
    %888 = vmatprep.subr.mxu0 0.0
    %889 = vmatpush1.msra.mxu0 0.0
    %890 = vmatprep.subr.mxu0 0.0
    %891 = vmatpush1.msra.mxu0 0.0
    %892 = vmatprep.subr.mxu0 0.0
    %893 = vmatpush1.msra.mxu0 0.0
    %894 = vmatprep.subr.mxu0 0.0
    %895 = vmatpush1.msra.mxu0 0.0
    %896 = vmatprep.subr.mxu0 0.0
    %897 = vmatpush1.msra.mxu0 0.0
    %898 = vmatprep.subr.mxu0 0.0
    %899 = vmatpush1.msra.mxu0 0.0
    %900 = vmatprep.subr.mxu0 0.0
    %901 = vmatpush1.msra.mxu0 0.0
    %902 = vmatprep.subr.mxu0 0.0
    %903 = vmatpush1.msra.mxu0 0.0
    %904 = vmatprep.mubr.f32.mxu0 0.0
    %905 = vmatmul.mubr.f32.gmra.mrb[0].mxu0 %v838
    %v906 = vpop.f32.mrb[0].mxu0
    %v907 = vadd.f32 %v832, %v906
    %v908 = vpop.f32.mrb[0].mxu0
    %909 = vdwg.mxu0
    %v910 = vadd.f32 %v907, %v355
    %v911 = vxor.u32 %v910, 2147483648
    %v912 = vmul.f32 %v911, 1.442695
    %v913 = vpow.pop %v912
    %v914 = vadd.f32 %v913, 1.0
    %v915 = vrcp.pop %v914
    %v916 = vmul.f32 1.0, %v915
    %v917 = vtanh.pop %v910
    %v918 = vmul.f32 %v916, %v653
    %920 = vrot.lane.b32.xlu0 %v917, 32
    %v921 = vpop.permute.xlu0 %920
    %v923 = vmul.f32 %v916, %v921
    %925 = vrot.lane.b32.xlu0 %v923, 32
    %v926 = vpop.permute.xlu0 %925
    %v928 = vadd.f32 %v918, %v926
    %v929 = vtanh.pop %v928
    %931 = vrot.lane.b32.xlu0 %v929, 32
    %v932 = vpop.permute.xlu0 %931
    %v934 = vmul.f32 %v916, %v932
    %936 = vrot.lane.b32.xlu0 %v934, 64
    %v937 = vpop.permute.xlu0 %936
    %s939 = scalar_lea.vmem [#allocation10], 16
    %940 = vst.msk [vmem:[%s939] sm:$0xff] %vm100, %v937
    %s941 = scalar_lea.vmem [#allocation7], 24
    %v942 = vld [vmem:[%s941] sm:$0xff]
    %943 = vmatprep.subr.mxu0 0.0
    %944 = vmatpush1.msra.mxu0 %v80
    %945 = vmatprep.subr.mxu0 0.0
    %946 = vmatpush1.msra.mxu0 %v81
    %947 = vmatprep.subr.mxu0 0.0
    %948 = vmatpush1.msra.mxu0 %v82
    %949 = vmatprep.subr.mxu0 0.0
    %950 = vmatpush1.msra.mxu0 %v83
    %951 = vmatprep.subr.mxu0 0.0
    %952 = vmatpush1.msra.mxu0 0.0
    %953 = vmatprep.subr.mxu0 0.0
    %954 = vmatpush1.msra.mxu0 0.0
    %955 = vmatprep.subr.mxu0 0.0
    %956 = vmatpush1.msra.mxu0 0.0
    %957 = vmatprep.subr.mxu0 0.0
    %958 = vmatpush1.msra.mxu0 0.0
    %959 = vmatprep.subr.mxu0 0.0
    %960 = vmatpush1.msra.mxu0 0.0
    %961 = vmatprep.subr.mxu0 0.0
    %962 = vmatpush1.msra.mxu0 0.0
    %963 = vmatprep.subr.mxu0 0.0
    %964 = vmatpush1.msra.mxu0 0.0
    %965 = vmatprep.subr.mxu0 0.0
    %966 = vmatpush1.msra.mxu0 0.0
    %967 = vmatprep.subr.mxu0 0.0
    %968 = vmatpush1.msra.mxu0 0.0
    %969 = vmatprep.subr.mxu0 0.0
    %970 = vmatpush1.msra.mxu0 0.0
    %971 = vmatprep.subr.mxu0 0.0
    %972 = vmatpush1.msra.mxu0 0.0
    %973 = vmatprep.subr.mxu0 0.0
    %974 = vmatpush1.msra.mxu0 0.0
    %975 = vmatprep.subr.mxu0 0.0
    %976 = vmatpush1.msra.mxu0 0.0
    %977 = vmatprep.subr.mxu0 0.0
    %978 = vmatpush1.msra.mxu0 0.0
    %979 = vmatprep.subr.mxu0 0.0
    %980 = vmatpush1.msra.mxu0 0.0
    %981 = vmatprep.subr.mxu0 0.0
    %982 = vmatpush1.msra.mxu0 0.0
    %983 = vmatprep.subr.mxu0 0.0
    %984 = vmatpush1.msra.mxu0 0.0
    %985 = vmatprep.subr.mxu0 0.0
    %986 = vmatpush1.msra.mxu0 0.0
    %987 = vmatprep.subr.mxu0 0.0
    %988 = vmatpush1.msra.mxu0 0.0
    %989 = vmatprep.subr.mxu0 0.0
    %990 = vmatpush1.msra.mxu0 0.0
    %991 = vmatprep.subr.mxu0 0.0
    %992 = vmatpush1.msra.mxu0 0.0
    %993 = vmatprep.subr.mxu0 0.0
    %994 = vmatpush1.msra.mxu0 0.0
    %995 = vmatprep.subr.mxu0 0.0
    %996 = vmatpush1.msra.mxu0 0.0
    %997 = vmatprep.subr.mxu0 0.0
    %998 = vmatpush1.msra.mxu0 0.0
    %999 = vmatprep.subr.mxu0 0.0
    %1000 = vmatpush1.msra.mxu0 0.0
    %1001 = vmatprep.subr.mxu0 0.0
    %1002 = vmatpush1.msra.mxu0 0.0
    %1003 = vmatprep.subr.mxu0 0.0
    %1004 = vmatpush1.msra.mxu0 0.0
    %1005 = vmatprep.subr.mxu0 0.0
    %1006 = vmatpush1.msra.mxu0 0.0
    %1007 = vmatprep.mubr.f32.mxu0 0.0
    %1008 = vmatmul.mubr.f32.gmra.mrb[0].mxu0 %v838
    %v1009 = vpop.f32.mrb[0].mxu0
    %v1010 = vadd.f32 0.0, %v1009
    %v1011 = vpop.f32.mrb[0].mxu0
    %1012 = vdwg.mxu0
    %v1013 = vadd.f32 %v942, %v1010
    %v1014 = vxor.u32 %v1013, 2147483648
    %v1015 = vmul.f32 %v1014, 1.442695
    %v1016 = vpow.pop %v1015
    %v1017 = vadd.f32 %v1016, 1.0
    %v1018 = vrcp.pop %v1017
    %v1019 = vmul.f32 1.0, %v1018
    %v1020 = vtanh.pop %v1013
    %v1021 = vmul.f32 %v1019, %v756
    %1023 = vrot.lane.b32.xlu0 %v1020, 32
    %v1024 = vpop.permute.xlu0 %1023
    %v1026 = vmul.f32 %v1019, %v1024
    %1028 = vrot.lane.b32.xlu0 %v1026, 32
    %v1029 = vpop.permute.xlu0 %1028
    %v1031 = vadd.f32 %v1021, %v1029
    %v1032 = vtanh.pop %v1031
    %1034 = vrot.lane.b32.xlu0 %v1032, 32
    %v1035 = vpop.permute.xlu0 %1034
    %v1037 = vmul.f32 %v1019, %v1035
    %v1038 = vsel %vm100, %v937, 0
    %1040 = vmatprep.subr.mxu0 0.0
    %1041 = vmatpush1.msra.mxu0 %v88
    %1042 = vmatprep.subr.mxu0 0.0
    %1043 = vmatpush1.msra.mxu0 %v89
    %1044 = vmatprep.subr.mxu0 0.0
    %1045 = vmatpush1.msra.mxu0 %v90
    %1046 = vmatprep.subr.mxu0 0.0
    %1047 = vmatpush1.msra.mxu0 %v91
    %1048 = vmatprep.subr.mxu0 0.0
    %1049 = vmatpush1.msra.mxu0 0.0
    %1050 = vmatprep.subr.mxu0 0.0
    %1051 = vmatpush1.msra.mxu0 0.0
    %1052 = vmatprep.subr.mxu0 0.0
    %1053 = vmatpush1.msra.mxu0 0.0
    %1054 = vmatprep.subr.mxu0 0.0
    %1055 = vmatpush1.msra.mxu0 0.0
    %1056 = vmatprep.subr.mxu0 0.0
    %1057 = vmatpush1.msra.mxu0 0.0
    %1058 = vmatprep.subr.mxu0 0.0
    %1059 = vmatpush1.msra.mxu0 0.0
    %1060 = vmatprep.subr.mxu0 0.0
    %1061 = vmatpush1.msra.mxu0 0.0
    %1062 = vmatprep.subr.mxu0 0.0
    %1063 = vmatpush1.msra.mxu0 0.0
    %1064 = vmatprep.subr.mxu0 0.0
    %1065 = vmatpush1.msra.mxu0 0.0
    %1066 = vmatprep.subr.mxu0 0.0
    %1067 = vmatpush1.msra.mxu0 0.0
    %1068 = vmatprep.subr.mxu0 0.0
    %1069 = vmatpush1.msra.mxu0 0.0
    %1070 = vmatprep.subr.mxu0 0.0
    %1071 = vmatpush1.msra.mxu0 0.0
    %1072 = vmatprep.subr.mxu0 0.0
    %1073 = vmatpush1.msra.mxu0 0.0
    %1074 = vmatprep.subr.mxu0 0.0
    %1075 = vmatpush1.msra.mxu0 0.0
    %1076 = vmatprep.subr.mxu0 0.0
    %1077 = vmatpush1.msra.mxu0 0.0
    %1078 = vmatprep.subr.mxu0 0.0
    %1079 = vmatpush1.msra.mxu0 0.0
    %1080 = vmatprep.subr.mxu0 0.0
    %1081 = vmatpush1.msra.mxu0 0.0
    %1082 = vmatprep.subr.mxu0 0.0
    %1083 = vmatpush1.msra.mxu0 0.0
    %1084 = vmatprep.subr.mxu0 0.0
    %1085 = vmatpush1.msra.mxu0 0.0
    %1086 = vmatprep.subr.mxu0 0.0
    %1087 = vmatpush1.msra.mxu0 0.0
    %1088 = vmatprep.subr.mxu0 0.0
    %1089 = vmatpush1.msra.mxu0 0.0
    %1090 = vmatprep.subr.mxu0 0.0
    %1091 = vmatpush1.msra.mxu0 0.0
    %1092 = vmatprep.subr.mxu0 0.0
    %1093 = vmatpush1.msra.mxu0 0.0
    %1094 = vmatprep.subr.mxu0 0.0
    %1095 = vmatpush1.msra.mxu0 0.0
    %1096 = vmatprep.subr.mxu0 0.0
    %1097 = vmatpush1.msra.mxu0 0.0
    %1098 = vmatprep.subr.mxu0 0.0
    %1099 = vmatpush1.msra.mxu0 0.0
    %1100 = vmatprep.subr.mxu0 0.0
    %1101 = vmatpush1.msra.mxu0 0.0
    %1102 = vmatprep.subr.mxu0 0.0
    %1103 = vmatpush1.msra.mxu0 0.0
    %1104 = vmatprep.mubr.f32.mxu0 0.0
    %1105 = vmatmul.mubr.f32.gmra.mrb[0].mxu0 %v1038
    %v1106 = vpop.f32.mrb[0].mxu0
    %v1107 = vadd.f32 0.0, %v1106
    %v1108 = vpop.f32.mrb[0].mxu0
    %1109 = vdwg.mxu0
    %1111 = vrot.lane.b32.xlu0 %v1037, 64
    %v1112 = vpop.permute.xlu0 %1111
    %v1113 = vsel %vm100, %v1112, 0
    %1115 = vmatprep.subr.mxu0 0.0
    %1116 = vmatpush1.msra.mxu0 %v84
    %1117 = vmatprep.subr.mxu0 0.0
    %1118 = vmatpush1.msra.mxu0 %v85
    %1119 = vmatprep.subr.mxu0 0.0
    %1120 = vmatpush1.msra.mxu0 %v86
    %1121 = vmatprep.subr.mxu0 0.0
    %1122 = vmatpush1.msra.mxu0 %v87
    %1123 = vmatprep.subr.mxu0 0.0
    %1124 = vmatpush1.msra.mxu0 0.0
    %1125 = vmatprep.subr.mxu0 0.0
    %1126 = vmatpush1.msra.mxu0 0.0
    %1127 = vmatprep.subr.mxu0 0.0
    %1128 = vmatpush1.msra.mxu0 0.0
    %1129 = vmatprep.subr.mxu0 0.0
    %1130 = vmatpush1.msra.mxu0 0.0
    %1131 = vmatprep.subr.mxu0 0.0
    %1132 = vmatpush1.msra.mxu0 0.0
    %1133 = vmatprep.subr.mxu0 0.0
    %1134 = vmatpush1.msra.mxu0 0.0
    %1135 = vmatprep.subr.mxu0 0.0
    %1136 = vmatpush1.msra.mxu0 0.0
    %1137 = vmatprep.subr.mxu0 0.0
    %1138 = vmatpush1.msra.mxu0 0.0
    %1139 = vmatprep.subr.mxu0 0.0
    %1140 = vmatpush1.msra.mxu0 0.0
    %1141 = vmatprep.subr.mxu0 0.0
    %1142 = vmatpush1.msra.mxu0 0.0
    %1143 = vmatprep.subr.mxu0 0.0
    %1144 = vmatpush1.msra.mxu0 0.0
    %1145 = vmatprep.subr.mxu0 0.0
    %1146 = vmatpush1.msra.mxu0 0.0
    %1147 = vmatprep.subr.mxu0 0.0
    %1148 = vmatpush1.msra.mxu0 0.0
    %1149 = vmatprep.subr.mxu0 0.0
    %1150 = vmatpush1.msra.mxu0 0.0
    %1151 = vmatprep.subr.mxu0 0.0
    %1152 = vmatpush1.msra.mxu0 0.0
    %1153 = vmatprep.subr.mxu0 0.0
    %1154 = vmatpush1.msra.mxu0 0.0
    %1155 = vmatprep.subr.mxu0 0.0
    %1156 = vmatpush1.msra.mxu0 0.0
    %1157 = vmatprep.subr.mxu0 0.0
    %1158 = vmatpush1.msra.mxu0 0.0
    %1159 = vmatprep.subr.mxu0 0.0
    %1160 = vmatpush1.msra.mxu0 0.0
    %1161 = vmatprep.subr.mxu0 0.0
    %1162 = vmatpush1.msra.mxu0 0.0
    %1163 = vmatprep.subr.mxu0 0.0
    %1164 = vmatpush1.msra.mxu0 0.0
    %1165 = vmatprep.subr.mxu0 0.0
    %1166 = vmatpush1.msra.mxu0 0.0
    %1167 = vmatprep.subr.mxu0 0.0
    %1168 = vmatpush1.msra.mxu0 0.0
    %1169 = vmatprep.subr.mxu0 0.0
    %1170 = vmatpush1.msra.mxu0 0.0
    %1171 = vmatprep.subr.mxu0 0.0
    %1172 = vmatpush1.msra.mxu0 0.0
    %1173 = vmatprep.subr.mxu0 0.0
    %1174 = vmatpush1.msra.mxu0 0.0
    %1175 = vmatprep.subr.mxu0 0.0
    %1176 = vmatpush1.msra.mxu0 0.0
    %1177 = vmatprep.subr.mxu0 0.0
    %1178 = vmatpush1.msra.mxu0 0.0
    %1179 = vmatprep.mubr.f32.mxu0 0.0
    %1180 = vmatmul.mubr.f32.gmra.mrb[0].mxu0 %v1113
    %v1181 = vpop.f32.mrb[0].mxu0
    %v1182 = vadd.f32 %v1107, %v1181
    %v1183 = vpop.f32.mrb[0].mxu0
    %1184 = vdwg.mxu0
    %v1185 = vadd.f32 %v1182, %v355
    %v1186 = vxor.u32 %v1185, 2147483648
    %v1187 = vmul.f32 %v1186, 1.442695
    %v1188 = vpow.pop %v1187
    %v1189 = vadd.f32 %v1188, 1.0
    %v1190 = vrcp.pop %v1189
    %v1191 = vmul.f32 1.0, %v1190
    %v1192 = vtanh.pop %v1185
    %v1193 = vmul.f32 %v1191, %v928
    %1195 = vrot.lane.b32.xlu0 %v1192, 32
    %v1196 = vpop.permute.xlu0 %1195
    %v1198 = vmul.f32 %v1191, %v1196
    %1200 = vrot.lane.b32.xlu0 %v1198, 32
    %v1201 = vpop.permute.xlu0 %1200
    %v1203 = vadd.f32 %v1193, %v1201
    %v1204 = vtanh.pop %v1203
    %1206 = vrot.lane.b32.xlu0 %v1204, 32
    %v1207 = vpop.permute.xlu0 %1206
    %v1209 = vmul.f32 %v1191, %v1207
    %1211 = vrot.lane.b32.xlu0 %v1209, 64
    %v1212 = vpop.permute.xlu0 %1211
    %s1214 = scalar_lea.vmem [#allocation10], 24
    %1215 = vst.msk [vmem:[%s1214] sm:$0xff] %vm100, %v1212
    %s1216 = scalar_lea.vmem [#allocation7], 32
    %v1217 = vld [vmem:[%s1216] sm:$0xff]
    %1218 = vmatprep.subr.mxu0 0.0
    %1219 = vmatpush1.msra.mxu0 %v80
    %1220 = vmatprep.subr.mxu0 0.0
    %1221 = vmatpush1.msra.mxu0 %v81
    %1222 = vmatprep.subr.mxu0 0.0
    %1223 = vmatpush1.msra.mxu0 %v82
    %1224 = vmatprep.subr.mxu0 0.0
    %1225 = vmatpush1.msra.mxu0 %v83
    %1226 = vmatprep.subr.mxu0 0.0
    %1227 = vmatpush1.msra.mxu0 0.0
    %1228 = vmatprep.subr.mxu0 0.0
    %1229 = vmatpush1.msra.mxu0 0.0
    %1230 = vmatprep.subr.mxu0 0.0
    %1231 = vmatpush1.msra.mxu0 0.0
    %1232 = vmatprep.subr.mxu0 0.0
    %1233 = vmatpush1.msra.mxu0 0.0
    %1234 = vmatprep.subr.mxu0 0.0
    %1235 = vmatpush1.msra.mxu0 0.0
    %1236 = vmatprep.subr.mxu0 0.0
    %1237 = vmatpush1.msra.mxu0 0.0
    %1238 = vmatprep.subr.mxu0 0.0
    %1239 = vmatpush1.msra.mxu0 0.0
    %1240 = vmatprep.subr.mxu0 0.0
    %1241 = vmatpush1.msra.mxu0 0.0
    %1242 = vmatprep.subr.mxu0 0.0
    %1243 = vmatpush1.msra.mxu0 0.0
    %1244 = vmatprep.subr.mxu0 0.0
    %1245 = vmatpush1.msra.mxu0 0.0
    %1246 = vmatprep.subr.mxu0 0.0
    %1247 = vmatpush1.msra.mxu0 0.0
    %1248 = vmatprep.subr.mxu0 0.0
    %1249 = vmatpush1.msra.mxu0 0.0
    %1250 = vmatprep.subr.mxu0 0.0
    %1251 = vmatpush1.msra.mxu0 0.0
    %1252 = vmatprep.subr.mxu0 0.0
    %1253 = vmatpush1.msra.mxu0 0.0
    %1254 = vmatprep.subr.mxu0 0.0
    %1255 = vmatpush1.msra.mxu0 0.0
    %1256 = vmatprep.subr.mxu0 0.0
    %1257 = vmatpush1.msra.mxu0 0.0
    %1258 = vmatprep.subr.mxu0 0.0
    %1259 = vmatpush1.msra.mxu0 0.0
    %1260 = vmatprep.subr.mxu0 0.0
    %1261 = vmatpush1.msra.mxu0 0.0
    %1262 = vmatprep.subr.mxu0 0.0
    %1263 = vmatpush1.msra.mxu0 0.0
    %1264 = vmatprep.subr.mxu0 0.0
    %1265 = vmatpush1.msra.mxu0 0.0
    %1266 = vmatprep.subr.mxu0 0.0
    %1267 = vmatpush1.msra.mxu0 0.0
    %1268 = vmatprep.subr.mxu0 0.0
    %1269 = vmatpush1.msra.mxu0 0.0
    %1270 = vmatprep.subr.mxu0 0.0
    %1271 = vmatpush1.msra.mxu0 0.0
    %1272 = vmatprep.subr.mxu0 0.0
    %1273 = vmatpush1.msra.mxu0 0.0
    %1274 = vmatprep.subr.mxu0 0.0
    %1275 = vmatpush1.msra.mxu0 0.0
    %1276 = vmatprep.subr.mxu0 0.0
    %1277 = vmatpush1.msra.mxu0 0.0
    %1278 = vmatprep.subr.mxu0 0.0
    %1279 = vmatpush1.msra.mxu0 0.0
    %1280 = vmatprep.subr.mxu0 0.0
    %1281 = vmatpush1.msra.mxu0 0.0
    %1282 = vmatprep.mubr.f32.mxu0 0.0
    %1283 = vmatmul.mubr.f32.gmra.mrb[0].mxu0 %v1113
    %v1284 = vpop.f32.mrb[0].mxu0
    %v1285 = vadd.f32 0.0, %v1284
    %v1286 = vpop.f32.mrb[0].mxu0
    %1287 = vdwg.mxu0
    %v1288 = vadd.f32 %v1217, %v1285
    %v1289 = vxor.u32 %v1288, 2147483648
    %v1290 = vmul.f32 %v1289, 1.442695
    %v1291 = vpow.pop %v1290
    %v1292 = vadd.f32 %v1291, 1.0
    %v1293 = vrcp.pop %v1292
    %v1294 = vmul.f32 1.0, %v1293
    %v1295 = vtanh.pop %v1288
    %v1296 = vmul.f32 %v1294, %v1031
    %1298 = vrot.lane.b32.xlu0 %v1295, 32
    %v1299 = vpop.permute.xlu0 %1298
    %v1301 = vmul.f32 %v1294, %v1299
    %1303 = vrot.lane.b32.xlu0 %v1301, 32
    %v1304 = vpop.permute.xlu0 %1303
    %v1306 = vadd.f32 %v1296, %v1304
    %v1307 = vtanh.pop %v1306
    %1309 = vrot.lane.b32.xlu0 %v1307, 32
    %v1310 = vpop.permute.xlu0 %1309
    %v1312 = vmul.f32 %v1294, %v1310
    %v1313 = vsel %vm100, %v1212, 0
    %1315 = vmatprep.subr.mxu0 0.0
    %1316 = vmatpush1.msra.mxu0 %v88
    %1317 = vmatprep.subr.mxu0 0.0
    %1318 = vmatpush1.msra.mxu0 %v89
    %1319 = vmatprep.subr.mxu0 0.0
    %1320 = vmatpush1.msra.mxu0 %v90
    %1321 = vmatprep.subr.mxu0 0.0
    %1322 = vmatpush1.msra.mxu0 %v91
    %1323 = vmatprep.subr.mxu0 0.0
    %1324 = vmatpush1.msra.mxu0 0.0
    %1325 = vmatprep.subr.mxu0 0.0
    %1326 = vmatpush1.msra.mxu0 0.0
    %1327 = vmatprep.subr.mxu0 0.0
    %1328 = vmatpush1.msra.mxu0 0.0
    %1329 = vmatprep.subr.mxu0 0.0
    %1330 = vmatpush1.msra.mxu0 0.0
    %1331 = vmatprep.subr.mxu0 0.0
    %1332 = vmatpush1.msra.mxu0 0.0
    %1333 = vmatprep.subr.mxu0 0.0
    %1334 = vmatpush1.msra.mxu0 0.0
    %1335 = vmatprep.subr.mxu0 0.0
    %1336 = vmatpush1.msra.mxu0 0.0
    %1337 = vmatprep.subr.mxu0 0.0
    %1338 = vmatpush1.msra.mxu0 0.0
    %1339 = vmatprep.subr.mxu0 0.0
    %1340 = vmatpush1.msra.mxu0 0.0
    %1341 = vmatprep.subr.mxu0 0.0
    %1342 = vmatpush1.msra.mxu0 0.0
    %1343 = vmatprep.subr.mxu0 0.0
    %1344 = vmatpush1.msra.mxu0 0.0
    %1345 = vmatprep.subr.mxu0 0.0
    %1346 = vmatpush1.msra.mxu0 0.0
    %1347 = vmatprep.subr.mxu0 0.0
    %1348 = vmatpush1.msra.mxu0 0.0
    %1349 = vmatprep.subr.mxu0 0.0
    %1350 = vmatpush1.msra.mxu0 0.0
    %1351 = vmatprep.subr.mxu0 0.0
    %1352 = vmatpush1.msra.mxu0 0.0
    %1353 = vmatprep.subr.mxu0 0.0
    %1354 = vmatpush1.msra.mxu0 0.0
    %1355 = vmatprep.subr.mxu0 0.0
    %1356 = vmatpush1.msra.mxu0 0.0
    %1357 = vmatprep.subr.mxu0 0.0
    %1358 = vmatpush1.msra.mxu0 0.0
    %1359 = vmatprep.subr.mxu0 0.0
    %1360 = vmatpush1.msra.mxu0 0.0
    %1361 = vmatprep.subr.mxu0 0.0
    %1362 = vmatpush1.msra.mxu0 0.0
    %1363 = vmatprep.subr.mxu0 0.0
    %1364 = vmatpush1.msra.mxu0 0.0
    %1365 = vmatprep.subr.mxu0 0.0
    %1366 = vmatpush1.msra.mxu0 0.0
    %1367 = vmatprep.subr.mxu0 0.0
    %1368 = vmatpush1.msra.mxu0 0.0
    %1369 = vmatprep.subr.mxu0 0.0
    %1370 = vmatpush1.msra.mxu0 0.0
    %1371 = vmatprep.subr.mxu0 0.0
    %1372 = vmatpush1.msra.mxu0 0.0
    %1373 = vmatprep.subr.mxu0 0.0
    %1374 = vmatpush1.msra.mxu0 0.0
    %1375 = vmatprep.subr.mxu0 0.0
    %1376 = vmatpush1.msra.mxu0 0.0
    %1377 = vmatprep.subr.mxu0 0.0
    %1378 = vmatpush1.msra.mxu0 0.0
    %1379 = vmatprep.mubr.f32.mxu0 0.0
    %1380 = vmatmul.mubr.f32.gmra.mrb[0].mxu0 %v1313
    %v1381 = vpop.f32.mrb[0].mxu0
    %v1382 = vadd.f32 0.0, %v1381
    %v1383 = vpop.f32.mrb[0].mxu0
    %1384 = vdwg.mxu0
    %1386 = vrot.lane.b32.xlu0 %v1312, 64
    %v1387 = vpop.permute.xlu0 %1386
    %v1388 = vsel %vm100, %v1387, 0
    %1390 = vmatprep.subr.mxu0 0.0
    %1391 = vmatpush1.msra.mxu0 %v84
    %1392 = vmatprep.subr.mxu0 0.0
    %1393 = vmatpush1.msra.mxu0 %v85
    %1394 = vmatprep.subr.mxu0 0.0
    %1395 = vmatpush1.msra.mxu0 %v86
    %1396 = vmatprep.subr.mxu0 0.0
    %1397 = vmatpush1.msra.mxu0 %v87
    %1398 = vmatprep.subr.mxu0 0.0
    %1399 = vmatpush1.msra.mxu0 0.0
    %1400 = vmatprep.subr.mxu0 0.0
    %1401 = vmatpush1.msra.mxu0 0.0
    %1402 = vmatprep.subr.mxu0 0.0
    %1403 = vmatpush1.msra.mxu0 0.0
    %1404 = vmatprep.subr.mxu0 0.0
    %1405 = vmatpush1.msra.mxu0 0.0
    %1406 = vmatprep.subr.mxu0 0.0
    %1407 = vmatpush1.msra.mxu0 0.0
    %1408 = vmatprep.subr.mxu0 0.0
    %1409 = vmatpush1.msra.mxu0 0.0
    %1410 = vmatprep.subr.mxu0 0.0
    %1411 = vmatpush1.msra.mxu0 0.0
    %1412 = vmatprep.subr.mxu0 0.0
    %1413 = vmatpush1.msra.mxu0 0.0
    %1414 = vmatprep.subr.mxu0 0.0
    %1415 = vmatpush1.msra.mxu0 0.0
    %1416 = vmatprep.subr.mxu0 0.0
    %1417 = vmatpush1.msra.mxu0 0.0
    %1418 = vmatprep.subr.mxu0 0.0
    %1419 = vmatpush1.msra.mxu0 0.0
    %1420 = vmatprep.subr.mxu0 0.0
    %1421 = vmatpush1.msra.mxu0 0.0
    %1422 = vmatprep.subr.mxu0 0.0
    %1423 = vmatpush1.msra.mxu0 0.0
    %1424 = vmatprep.subr.mxu0 0.0
    %1425 = vmatpush1.msra.mxu0 0.0
    %1426 = vmatprep.subr.mxu0 0.0
    %1427 = vmatpush1.msra.mxu0 0.0
    %1428 = vmatprep.subr.mxu0 0.0
    %1429 = vmatpush1.msra.mxu0 0.0
    %1430 = vmatprep.subr.mxu0 0.0
    %1431 = vmatpush1.msra.mxu0 0.0
    %1432 = vmatprep.subr.mxu0 0.0
    %1433 = vmatpush1.msra.mxu0 0.0
    %1434 = vmatprep.subr.mxu0 0.0
    %1435 = vmatpush1.msra.mxu0 0.0
    %1436 = vmatprep.subr.mxu0 0.0
    %1437 = vmatpush1.msra.mxu0 0.0
    %1438 = vmatprep.subr.mxu0 0.0
    %1439 = vmatpush1.msra.mxu0 0.0
    %1440 = vmatprep.subr.mxu0 0.0
    %1441 = vmatpush1.msra.mxu0 0.0
    %1442 = vmatprep.subr.mxu0 0.0
    %1443 = vmatpush1.msra.mxu0 0.0
    %1444 = vmatprep.subr.mxu0 0.0
    %1445 = vmatpush1.msra.mxu0 0.0
    %1446 = vmatprep.subr.mxu0 0.0
    %1447 = vmatpush1.msra.mxu0 0.0
    %1448 = vmatprep.subr.mxu0 0.0
    %1449 = vmatpush1.msra.mxu0 0.0
    %1450 = vmatprep.subr.mxu0 0.0
    %1451 = vmatpush1.msra.mxu0 0.0
    %1452 = vmatprep.subr.mxu0 0.0
    %1453 = vmatpush1.msra.mxu0 0.0
    %1454 = vmatprep.mubr.f32.mxu0 0.0
    %1455 = vmatmul.mubr.f32.gmra.mrb[0].mxu0 %v1388
    %v1456 = vpop.f32.mrb[0].mxu0
    %v1457 = vadd.f32 %v1382, %v1456
    %v1458 = vpop.f32.mrb[0].mxu0
    %1459 = vdwg.mxu0
    %v1460 = vadd.f32 %v1457, %v355
    %v1461 = vxor.u32 %v1460, 2147483648
    %v1462 = vmul.f32 %v1461, 1.442695
    %v1463 = vpow.pop %v1462
    %v1464 = vadd.f32 %v1463, 1.0
    %v1465 = vrcp.pop %v1464
    %v1466 = vmul.f32 1.0, %v1465
    %v1467 = vtanh.pop %v1460
    %v1468 = vmul.f32 %v1466, %v1203
    %1470 = vrot.lane.b32.xlu0 %v1467, 32
    %v1471 = vpop.permute.xlu0 %1470
    %v1473 = vmul.f32 %v1466, %v1471
    %1475 = vrot.lane.b32.xlu0 %v1473, 32
    %v1476 = vpop.permute.xlu0 %1475
    %v1478 = vadd.f32 %v1468, %v1476
    %v1479 = vtanh.pop %v1478
    %1481 = vrot.lane.b32.xlu0 %v1479, 32
    %v1482 = vpop.permute.xlu0 %1481
    %v1484 = vmul.f32 %v1466, %v1482
    %1486 = vrot.lane.b32.xlu0 %v1484, 64
    %v1487 = vpop.permute.xlu0 %1486
    %s1489 = scalar_lea.vmem [#allocation10], 32
    %1490 = vst.msk [vmem:[%s1489] sm:$0xff] %vm100, %v1487
    %s1491 = scalar_lea.vmem [#allocation7], 40
    %v1492 = vld [vmem:[%s1491] sm:$0xff]
    %1493 = vmatprep.subr.mxu0 0.0
    %1494 = vmatpush1.msra.mxu0 %v80
    %1495 = vmatprep.subr.mxu0 0.0
    %1496 = vmatpush1.msra.mxu0 %v81
    %1497 = vmatprep.subr.mxu0 0.0
    %1498 = vmatpush1.msra.mxu0 %v82
    %1499 = vmatprep.subr.mxu0 0.0
    %1500 = vmatpush1.msra.mxu0 %v83
    %1501 = vmatprep.subr.mxu0 0.0
    %1502 = vmatpush1.msra.mxu0 0.0
    %1503 = vmatprep.subr.mxu0 0.0
    %1504 = vmatpush1.msra.mxu0 0.0
    %1505 = vmatprep.subr.mxu0 0.0
    %1506 = vmatpush1.msra.mxu0 0.0
    %1507 = vmatprep.subr.mxu0 0.0
    %1508 = vmatpush1.msra.mxu0 0.0
    %1509 = vmatprep.subr.mxu0 0.0
    %1510 = vmatpush1.msra.mxu0 0.0
    %1511 = vmatprep.subr.mxu0 0.0
    %1512 = vmatpush1.msra.mxu0 0.0
    %1513 = vmatprep.subr.mxu0 0.0
    %1514 = vmatpush1.msra.mxu0 0.0
    %1515 = vmatprep.subr.mxu0 0.0
    %1516 = vmatpush1.msra.mxu0 0.0
    %1517 = vmatprep.subr.mxu0 0.0
    %1518 = vmatpush1.msra.mxu0 0.0
    %1519 = vmatprep.subr.mxu0 0.0
    %1520 = vmatpush1.msra.mxu0 0.0
    %1521 = vmatprep.subr.mxu0 0.0
    %1522 = vmatpush1.msra.mxu0 0.0
    %1523 = vmatprep.subr.mxu0 0.0
    %1524 = vmatpush1.msra.mxu0 0.0
    %1525 = vmatprep.subr.mxu0 0.0
    %1526 = vmatpush1.msra.mxu0 0.0
    %1527 = vmatprep.subr.mxu0 0.0
    %1528 = vmatpush1.msra.mxu0 0.0
    %1529 = vmatprep.subr.mxu0 0.0
    %1530 = vmatpush1.msra.mxu0 0.0
    %1531 = vmatprep.subr.mxu0 0.0
    %1532 = vmatpush1.msra.mxu0 0.0
    %1533 = vmatprep.subr.mxu0 0.0
    %1534 = vmatpush1.msra.mxu0 0.0
    %1535 = vmatprep.subr.mxu0 0.0
    %1536 = vmatpush1.msra.mxu0 0.0
    %1537 = vmatprep.subr.mxu0 0.0
    %1538 = vmatpush1.msra.mxu0 0.0
    %1539 = vmatprep.subr.mxu0 0.0
    %1540 = vmatpush1.msra.mxu0 0.0
    %1541 = vmatprep.subr.mxu0 0.0
    %1542 = vmatpush1.msra.mxu0 0.0
    %1543 = vmatprep.subr.mxu0 0.0
    %1544 = vmatpush1.msra.mxu0 0.0
    %1545 = vmatprep.subr.mxu0 0.0
    %1546 = vmatpush1.msra.mxu0 0.0
    %1547 = vmatprep.subr.mxu0 0.0
    %1548 = vmatpush1.msra.mxu0 0.0
    %1549 = vmatprep.subr.mxu0 0.0
    %1550 = vmatpush1.msra.mxu0 0.0
    %1551 = vmatprep.subr.mxu0 0.0
    %1552 = vmatpush1.msra.mxu0 0.0
    %1553 = vmatprep.subr.mxu0 0.0
    %1554 = vmatpush1.msra.mxu0 0.0
    %1555 = vmatprep.subr.mxu0 0.0
    %1556 = vmatpush1.msra.mxu0 0.0
    %1557 = vmatprep.mubr.f32.mxu0 0.0
    %1558 = vmatmul.mubr.f32.gmra.mrb[0].mxu0 %v1388
    %v1559 = vpop.f32.mrb[0].mxu0
    %v1560 = vadd.f32 0.0, %v1559
    %v1561 = vpop.f32.mrb[0].mxu0
    %1562 = vdwg.mxu0
    %v1563 = vadd.f32 %v1492, %v1560
    %v1564 = vxor.u32 %v1563, 2147483648
    %v1565 = vmul.f32 %v1564, 1.442695
    %v1566 = vpow.pop %v1565
    %v1567 = vadd.f32 %v1566, 1.0
    %v1568 = vrcp.pop %v1567
    %v1569 = vmul.f32 1.0, %v1568
    %v1570 = vtanh.pop %v1563
    %v1571 = vmul.f32 %v1569, %v1306
    %1573 = vrot.lane.b32.xlu0 %v1570, 32
    %v1574 = vpop.permute.xlu0 %1573
    %v1576 = vmul.f32 %v1569, %v1574
    %1578 = vrot.lane.b32.xlu0 %v1576, 32
    %v1579 = vpop.permute.xlu0 %1578
    %v1581 = vadd.f32 %v1571, %v1579
    %v1582 = vtanh.pop %v1581
    %1584 = vrot.lane.b32.xlu0 %v1582, 32
    %v1585 = vpop.permute.xlu0 %1584
    %v1587 = vmul.f32 %v1569, %v1585
    %v1588 = vsel %vm100, %v1487, 0
    %1590 = vmatprep.subr.mxu0 0.0
    %1591 = vmatpush1.msra.mxu0 %v88
    %1592 = vmatprep.subr.mxu0 0.0
    %1593 = vmatpush1.msra.mxu0 %v89
    %1594 = vmatprep.subr.mxu0 0.0
    %1595 = vmatpush1.msra.mxu0 %v90
    %1596 = vmatprep.subr.mxu0 0.0
    %1597 = vmatpush1.msra.mxu0 %v91
    %1598 = vmatprep.subr.mxu0 0.0
    %1599 = vmatpush1.msra.mxu0 0.0
    %1600 = vmatprep.subr.mxu0 0.0
    %1601 = vmatpush1.msra.mxu0 0.0
    %1602 = vmatprep.subr.mxu0 0.0
    %1603 = vmatpush1.msra.mxu0 0.0
    %1604 = vmatprep.subr.mxu0 0.0
    %1605 = vmatpush1.msra.mxu0 0.0
    %1606 = vmatprep.subr.mxu0 0.0
    %1607 = vmatpush1.msra.mxu0 0.0
    %1608 = vmatprep.subr.mxu0 0.0
    %1609 = vmatpush1.msra.mxu0 0.0
    %1610 = vmatprep.subr.mxu0 0.0
    %1611 = vmatpush1.msra.mxu0 0.0
    %1612 = vmatprep.subr.mxu0 0.0
    %1613 = vmatpush1.msra.mxu0 0.0
    %1614 = vmatprep.subr.mxu0 0.0
    %1615 = vmatpush1.msra.mxu0 0.0
    %1616 = vmatprep.subr.mxu0 0.0
    %1617 = vmatpush1.msra.mxu0 0.0
    %1618 = vmatprep.subr.mxu0 0.0
    %1619 = vmatpush1.msra.mxu0 0.0
    %1620 = vmatprep.subr.mxu0 0.0
    %1621 = vmatpush1.msra.mxu0 0.0
    %1622 = vmatprep.subr.mxu0 0.0
    %1623 = vmatpush1.msra.mxu0 0.0
    %1624 = vmatprep.subr.mxu0 0.0
    %1625 = vmatpush1.msra.mxu0 0.0
    %1626 = vmatprep.subr.mxu0 0.0
    %1627 = vmatpush1.msra.mxu0 0.0
    %1628 = vmatprep.subr.mxu0 0.0
    %1629 = vmatpush1.msra.mxu0 0.0
    %1630 = vmatprep.subr.mxu0 0.0
    %1631 = vmatpush1.msra.mxu0 0.0
    %1632 = vmatprep.subr.mxu0 0.0
    %1633 = vmatpush1.msra.mxu0 0.0
    %1634 = vmatprep.subr.mxu0 0.0
    %1635 = vmatpush1.msra.mxu0 0.0
    %1636 = vmatprep.subr.mxu0 0.0
    %1637 = vmatpush1.msra.mxu0 0.0
    %1638 = vmatprep.subr.mxu0 0.0
    %1639 = vmatpush1.msra.mxu0 0.0
    %1640 = vmatprep.subr.mxu0 0.0
    %1641 = vmatpush1.msra.mxu0 0.0
    %1642 = vmatprep.subr.mxu0 0.0
    %1643 = vmatpush1.msra.mxu0 0.0
    %1644 = vmatprep.subr.mxu0 0.0
    %1645 = vmatpush1.msra.mxu0 0.0
    %1646 = vmatprep.subr.mxu0 0.0
    %1647 = vmatpush1.msra.mxu0 0.0
    %1648 = vmatprep.subr.mxu0 0.0
    %1649 = vmatpush1.msra.mxu0 0.0
    %1650 = vmatprep.subr.mxu0 0.0
    %1651 = vmatpush1.msra.mxu0 0.0
    %1652 = vmatprep.subr.mxu0 0.0
    %1653 = vmatpush1.msra.mxu0 0.0
    %1654 = vmatprep.mubr.f32.mxu0 0.0
    %1655 = vmatmul.mubr.f32.gmra.mrb[0].mxu0 %v1588
    %v1656 = vpop.f32.mrb[0].mxu0
    %v1657 = vadd.f32 0.0, %v1656
    %v1658 = vpop.f32.mrb[0].mxu0
    %1659 = vdwg.mxu0
    %1661 = vrot.lane.b32.xlu0 %v1587, 64
    %v1662 = vpop.permute.xlu0 %1661
    %v1663 = vsel %vm100, %v1662, 0
    %1665 = vmatprep.subr.mxu0 0.0
    %1666 = vmatpush1.msra.mxu0 %v84
    %1667 = vmatprep.subr.mxu0 0.0
    %1668 = vmatpush1.msra.mxu0 %v85
    %1669 = vmatprep.subr.mxu0 0.0
    %1670 = vmatpush1.msra.mxu0 %v86
    %1671 = vmatprep.subr.mxu0 0.0
    %1672 = vmatpush1.msra.mxu0 %v87
    %1673 = vmatprep.subr.mxu0 0.0
    %1674 = vmatpush1.msra.mxu0 0.0
    %1675 = vmatprep.subr.mxu0 0.0
    %1676 = vmatpush1.msra.mxu0 0.0
    %1677 = vmatprep.subr.mxu0 0.0
    %1678 = vmatpush1.msra.mxu0 0.0
    %1679 = vmatprep.subr.mxu0 0.0
    %1680 = vmatpush1.msra.mxu0 0.0
    %1681 = vmatprep.subr.mxu0 0.0
    %1682 = vmatpush1.msra.mxu0 0.0
    %1683 = vmatprep.subr.mxu0 0.0
    %1684 = vmatpush1.msra.mxu0 0.0
    %1685 = vmatprep.subr.mxu0 0.0
    %1686 = vmatpush1.msra.mxu0 0.0
    %1687 = vmatprep.subr.mxu0 0.0
    %1688 = vmatpush1.msra.mxu0 0.0
    %1689 = vmatprep.subr.mxu0 0.0
    %1690 = vmatpush1.msra.mxu0 0.0
    %1691 = vmatprep.subr.mxu0 0.0
    %1692 = vmatpush1.msra.mxu0 0.0
    %1693 = vmatprep.subr.mxu0 0.0
    %1694 = vmatpush1.msra.mxu0 0.0
    %1695 = vmatprep.subr.mxu0 0.0
    %1696 = vmatpush1.msra.mxu0 0.0
    %1697 = vmatprep.subr.mxu0 0.0
    %1698 = vmatpush1.msra.mxu0 0.0
    %1699 = vmatprep.subr.mxu0 0.0
    %1700 = vmatpush1.msra.mxu0 0.0
    %1701 = vmatprep.subr.mxu0 0.0
    %1702 = vmatpush1.msra.mxu0 0.0
    %1703 = vmatprep.subr.mxu0 0.0
    %1704 = vmatpush1.msra.mxu0 0.0
    %1705 = vmatprep.subr.mxu0 0.0
    %1706 = vmatpush1.msra.mxu0 0.0
    %1707 = vmatprep.subr.mxu0 0.0
    %1708 = vmatpush1.msra.mxu0 0.0
    %1709 = vmatprep.subr.mxu0 0.0
    %1710 = vmatpush1.msra.mxu0 0.0
    %1711 = vmatprep.subr.mxu0 0.0
    %1712 = vmatpush1.msra.mxu0 0.0
    %1713 = vmatprep.subr.mxu0 0.0
    %1714 = vmatpush1.msra.mxu0 0.0
    %1715 = vmatprep.subr.mxu0 0.0
    %1716 = vmatpush1.msra.mxu0 0.0
    %1717 = vmatprep.subr.mxu0 0.0
    %1718 = vmatpush1.msra.mxu0 0.0
    %1719 = vmatprep.subr.mxu0 0.0
    %1720 = vmatpush1.msra.mxu0 0.0
    %1721 = vmatprep.subr.mxu0 0.0
    %1722 = vmatpush1.msra.mxu0 0.0
    %1723 = vmatprep.subr.mxu0 0.0
    %1724 = vmatpush1.msra.mxu0 0.0
    %1725 = vmatprep.subr.mxu0 0.0
    %1726 = vmatpush1.msra.mxu0 0.0
    %1727 = vmatprep.subr.mxu0 0.0
    %1728 = vmatpush1.msra.mxu0 0.0
    %1729 = vmatprep.mubr.f32.mxu0 0.0
    %1730 = vmatmul.mubr.f32.gmra.mrb[0].mxu0 %v1663
    %v1731 = vpop.f32.mrb[0].mxu0
    %v1732 = vadd.f32 %v1657, %v1731
    %v1733 = vpop.f32.mrb[0].mxu0
    %1734 = vdwg.mxu0
    %v1735 = vadd.f32 %v1732, %v355
    %v1736 = vxor.u32 %v1735, 2147483648
    %v1737 = vmul.f32 %v1736, 1.442695
    %v1738 = vpow.pop %v1737
    %v1739 = vadd.f32 %v1738, 1.0
    %v1740 = vrcp.pop %v1739
    %v1741 = vmul.f32 1.0, %v1740
    %v1742 = vtanh.pop %v1735
    %v1743 = vmul.f32 %v1741, %v1478
    %1745 = vrot.lane.b32.xlu0 %v1742, 32
    %v1746 = vpop.permute.xlu0 %1745
    %v1748 = vmul.f32 %v1741, %v1746
    %1750 = vrot.lane.b32.xlu0 %v1748, 32
    %v1751 = vpop.permute.xlu0 %1750
    %v1753 = vadd.f32 %v1743, %v1751
    %v1754 = vtanh.pop %v1753
    %1756 = vrot.lane.b32.xlu0 %v1754, 32
    %v1757 = vpop.permute.xlu0 %1756
    %v1759 = vmul.f32 %v1741, %v1757
    %1761 = vrot.lane.b32.xlu0 %v1759, 64
    %v1762 = vpop.permute.xlu0 %1761
    %s1764 = scalar_lea.vmem [#allocation10], 40
    %1765 = vst.msk [vmem:[%s1764] sm:$0xff] %vm100, %v1762
    %s1766 = scalar_lea.vmem [#allocation7], 48
    %v1767 = vld [vmem:[%s1766] sm:$0xff]
    %1768 = vmatprep.subr.mxu0 0.0
    %1769 = vmatpush1.msra.mxu0 %v80
    %1770 = vmatprep.subr.mxu0 0.0
    %1771 = vmatpush1.msra.mxu0 %v81
    %1772 = vmatprep.subr.mxu0 0.0
    %1773 = vmatpush1.msra.mxu0 %v82
    %1774 = vmatprep.subr.mxu0 0.0
    %1775 = vmatpush1.msra.mxu0 %v83
    %1776 = vmatprep.subr.mxu0 0.0
    %1777 = vmatpush1.msra.mxu0 0.0
    %1778 = vmatprep.subr.mxu0 0.0
    %1779 = vmatpush1.msra.mxu0 0.0
    %1780 = vmatprep.subr.mxu0 0.0
    %1781 = vmatpush1.msra.mxu0 0.0
    %1782 = vmatprep.subr.mxu0 0.0
    %1783 = vmatpush1.msra.mxu0 0.0
    %1784 = vmatprep.subr.mxu0 0.0
    %1785 = vmatpush1.msra.mxu0 0.0
    %1786 = vmatprep.subr.mxu0 0.0
    %1787 = vmatpush1.msra.mxu0 0.0
    %1788 = vmatprep.subr.mxu0 0.0
    %1789 = vmatpush1.msra.mxu0 0.0
    %1790 = vmatprep.subr.mxu0 0.0
    %1791 = vmatpush1.msra.mxu0 0.0
    %1792 = vmatprep.subr.mxu0 0.0
    %1793 = vmatpush1.msra.mxu0 0.0
    %1794 = vmatprep.subr.mxu0 0.0
    %1795 = vmatpush1.msra.mxu0 0.0
    %1796 = vmatprep.subr.mxu0 0.0
    %1797 = vmatpush1.msra.mxu0 0.0
    %1798 = vmatprep.subr.mxu0 0.0
    %1799 = vmatpush1.msra.mxu0 0.0
    %1800 = vmatprep.subr.mxu0 0.0
    %1801 = vmatpush1.msra.mxu0 0.0
    %1802 = vmatprep.subr.mxu0 0.0
    %1803 = vmatpush1.msra.mxu0 0.0
    %1804 = vmatprep.subr.mxu0 0.0
    %1805 = vmatpush1.msra.mxu0 0.0
    %1806 = vmatprep.subr.mxu0 0.0
    %1807 = vmatpush1.msra.mxu0 0.0
    %1808 = vmatprep.subr.mxu0 0.0
    %1809 = vmatpush1.msra.mxu0 0.0
    %1810 = vmatprep.subr.mxu0 0.0
    %1811 = vmatpush1.msra.mxu0 0.0
    %1812 = vmatprep.subr.mxu0 0.0
    %1813 = vmatpush1.msra.mxu0 0.0
    %1814 = vmatprep.subr.mxu0 0.0
    %1815 = vmatpush1.msra.mxu0 0.0
    %1816 = vmatprep.subr.mxu0 0.0
    %1817 = vmatpush1.msra.mxu0 0.0
    %1818 = vmatprep.subr.mxu0 0.0
    %1819 = vmatpush1.msra.mxu0 0.0
    %1820 = vmatprep.subr.mxu0 0.0
    %1821 = vmatpush1.msra.mxu0 0.0
    %1822 = vmatprep.subr.mxu0 0.0
    %1823 = vmatpush1.msra.mxu0 0.0
    %1824 = vmatprep.subr.mxu0 0.0
    %1825 = vmatpush1.msra.mxu0 0.0
    %1826 = vmatprep.subr.mxu0 0.0
    %1827 = vmatpush1.msra.mxu0 0.0
    %1828 = vmatprep.subr.mxu0 0.0
    %1829 = vmatpush1.msra.mxu0 0.0
    %1830 = vmatprep.subr.mxu0 0.0
    %1831 = vmatpush1.msra.mxu0 0.0
    %1832 = vmatprep.mubr.f32.mxu0 0.0
    %1833 = vmatmul.mubr.f32.gmra.mrb[0].mxu0 %v1663
    %v1834 = vpop.f32.mrb[0].mxu0
    %v1835 = vadd.f32 0.0, %v1834
    %v1836 = vpop.f32.mrb[0].mxu0
    %1837 = vdwg.mxu0
    %v1838 = vadd.f32 %v1767, %v1835
    %v1839 = vxor.u32 %v1838, 2147483648
    %v1840 = vmul.f32 %v1839, 1.442695
    %v1841 = vpow.pop %v1840
    %v1842 = vadd.f32 %v1841, 1.0
    %v1843 = vrcp.pop %v1842
    %v1844 = vmul.f32 1.0, %v1843
    %v1845 = vtanh.pop %v1838
    %v1846 = vmul.f32 %v1844, %v1581
    %1848 = vrot.lane.b32.xlu0 %v1845, 32
    %v1849 = vpop.permute.xlu0 %1848
    %v1851 = vmul.f32 %v1844, %v1849
    %1853 = vrot.lane.b32.xlu0 %v1851, 32
    %v1854 = vpop.permute.xlu0 %1853
    %v1856 = vadd.f32 %v1846, %v1854
    %v1857 = vtanh.pop %v1856
    %1859 = vrot.lane.b32.xlu0 %v1857, 32
    %v1860 = vpop.permute.xlu0 %1859
    %v1862 = vmul.f32 %v1844, %v1860
    %v1863 = vsel %vm100, %v1762, 0
    %1865 = vmatprep.subr.mxu0 0.0
    %1866 = vmatpush1.msra.mxu0 %v88
    %1867 = vmatprep.subr.mxu0 0.0
    %1868 = vmatpush1.msra.mxu0 %v89
    %1869 = vmatprep.subr.mxu0 0.0
    %1870 = vmatpush1.msra.mxu0 %v90
    %1871 = vmatprep.subr.mxu0 0.0
    %1872 = vmatpush1.msra.mxu0 %v91
    %1873 = vmatprep.subr.mxu0 0.0
    %1874 = vmatpush1.msra.mxu0 0.0
    %1875 = vmatprep.subr.mxu0 0.0
    %1876 = vmatpush1.msra.mxu0 0.0
    %1877 = vmatprep.subr.mxu0 0.0
    %1878 = vmatpush1.msra.mxu0 0.0
    %1879 = vmatprep.subr.mxu0 0.0
    %1880 = vmatpush1.msra.mxu0 0.0
    %1881 = vmatprep.subr.mxu0 0.0
    %1882 = vmatpush1.msra.mxu0 0.0
    %1883 = vmatprep.subr.mxu0 0.0
    %1884 = vmatpush1.msra.mxu0 0.0
    %1885 = vmatprep.subr.mxu0 0.0
    %1886 = vmatpush1.msra.mxu0 0.0
    %1887 = vmatprep.subr.mxu0 0.0
    %1888 = vmatpush1.msra.mxu0 0.0
    %1889 = vmatprep.subr.mxu0 0.0
    %1890 = vmatpush1.msra.mxu0 0.0
    %1891 = vmatprep.subr.mxu0 0.0
    %1892 = vmatpush1.msra.mxu0 0.0
    %1893 = vmatprep.subr.mxu0 0.0
    %1894 = vmatpush1.msra.mxu0 0.0
    %1895 = vmatprep.subr.mxu0 0.0
    %1896 = vmatpush1.msra.mxu0 0.0
    %1897 = vmatprep.subr.mxu0 0.0
    %1898 = vmatpush1.msra.mxu0 0.0
    %1899 = vmatprep.subr.mxu0 0.0
    %1900 = vmatpush1.msra.mxu0 0.0
    %1901 = vmatprep.subr.mxu0 0.0
    %1902 = vmatpush1.msra.mxu0 0.0
    %1903 = vmatprep.subr.mxu0 0.0
    %1904 = vmatpush1.msra.mxu0 0.0
    %1905 = vmatprep.subr.mxu0 0.0
    %1906 = vmatpush1.msra.mxu0 0.0
    %1907 = vmatprep.subr.mxu0 0.0
    %1908 = vmatpush1.msra.mxu0 0.0
    %1909 = vmatprep.subr.mxu0 0.0
    %1910 = vmatpush1.msra.mxu0 0.0
    %1911 = vmatprep.subr.mxu0 0.0
    %1912 = vmatpush1.msra.mxu0 0.0
    %1913 = vmatprep.subr.mxu0 0.0
    %1914 = vmatpush1.msra.mxu0 0.0
    %1915 = vmatprep.subr.mxu0 0.0
    %1916 = vmatpush1.msra.mxu0 0.0
    %1917 = vmatprep.subr.mxu0 0.0
    %1918 = vmatpush1.msra.mxu0 0.0
    %1919 = vmatprep.subr.mxu0 0.0
    %1920 = vmatpush1.msra.mxu0 0.0
    %1921 = vmatprep.subr.mxu0 0.0
    %1922 = vmatpush1.msra.mxu0 0.0
    %1923 = vmatprep.subr.mxu0 0.0
    %1924 = vmatpush1.msra.mxu0 0.0
    %1925 = vmatprep.subr.mxu0 0.0
    %1926 = vmatpush1.msra.mxu0 0.0
    %1927 = vmatprep.subr.mxu0 0.0
    %1928 = vmatpush1.msra.mxu0 0.0
    %1929 = vmatprep.mubr.f32.mxu0 0.0
    %1930 = vmatmul.mubr.f32.gmra.mrb[0].mxu0 %v1863
    %v1931 = vpop.f32.mrb[0].mxu0
    %v1932 = vadd.f32 0.0, %v1931
    %v1933 = vpop.f32.mrb[0].mxu0
    %1934 = vdwg.mxu0
    %1936 = vrot.lane.b32.xlu0 %v1862, 64
    %v1937 = vpop.permute.xlu0 %1936
    %v1938 = vsel %vm100, %v1937, 0
    %1940 = vmatprep.subr.mxu0 0.0
    %1941 = vmatpush1.msra.mxu0 %v84
    %1942 = vmatprep.subr.mxu0 0.0
    %1943 = vmatpush1.msra.mxu0 %v85
    %1944 = vmatprep.subr.mxu0 0.0
    %1945 = vmatpush1.msra.mxu0 %v86
    %1946 = vmatprep.subr.mxu0 0.0
    %1947 = vmatpush1.msra.mxu0 %v87
    %1948 = vmatprep.subr.mxu0 0.0
    %1949 = vmatpush1.msra.mxu0 0.0
    %1950 = vmatprep.subr.mxu0 0.0
    %1951 = vmatpush1.msra.mxu0 0.0
    %1952 = vmatprep.subr.mxu0 0.0
    %1953 = vmatpush1.msra.mxu0 0.0
    %1954 = vmatprep.subr.mxu0 0.0
    %1955 = vmatpush1.msra.mxu0 0.0
    %1956 = vmatprep.subr.mxu0 0.0
    %1957 = vmatpush1.msra.mxu0 0.0
    %1958 = vmatprep.subr.mxu0 0.0
    %1959 = vmatpush1.msra.mxu0 0.0
    %1960 = vmatprep.subr.mxu0 0.0
    %1961 = vmatpush1.msra.mxu0 0.0
    %1962 = vmatprep.subr.mxu0 0.0
    %1963 = vmatpush1.msra.mxu0 0.0
    %1964 = vmatprep.subr.mxu0 0.0
    %1965 = vmatpush1.msra.mxu0 0.0
    %1966 = vmatprep.subr.mxu0 0.0
    %1967 = vmatpush1.msra.mxu0 0.0
    %1968 = vmatprep.subr.mxu0 0.0
    %1969 = vmatpush1.msra.mxu0 0.0
    %1970 = vmatprep.subr.mxu0 0.0
    %1971 = vmatpush1.msra.mxu0 0.0
    %1972 = vmatprep.subr.mxu0 0.0
    %1973 = vmatpush1.msra.mxu0 0.0
    %1974 = vmatprep.subr.mxu0 0.0
    %1975 = vmatpush1.msra.mxu0 0.0
    %1976 = vmatprep.subr.mxu0 0.0
    %1977 = vmatpush1.msra.mxu0 0.0
    %1978 = vmatprep.subr.mxu0 0.0
    %1979 = vmatpush1.msra.mxu0 0.0
    %1980 = vmatprep.subr.mxu0 0.0
    %1981 = vmatpush1.msra.mxu0 0.0
    %1982 = vmatprep.subr.mxu0 0.0
    %1983 = vmatpush1.msra.mxu0 0.0
    %1984 = vmatprep.subr.mxu0 0.0
    %1985 = vmatpush1.msra.mxu0 0.0
    %1986 = vmatprep.subr.mxu0 0.0
    %1987 = vmatpush1.msra.mxu0 0.0
    %1988 = vmatprep.subr.mxu0 0.0
    %1989 = vmatpush1.msra.mxu0 0.0
    %1990 = vmatprep.subr.mxu0 0.0
    %1991 = vmatpush1.msra.mxu0 0.0
    %1992 = vmatprep.subr.mxu0 0.0
    %1993 = vmatpush1.msra.mxu0 0.0
    %1994 = vmatprep.subr.mxu0 0.0
    %1995 = vmatpush1.msra.mxu0 0.0
    %1996 = vmatprep.subr.mxu0 0.0
    %1997 = vmatpush1.msra.mxu0 0.0
    %1998 = vmatprep.subr.mxu0 0.0
    %1999 = vmatpush1.msra.mxu0 0.0
    %2000 = vmatprep.subr.mxu0 0.0
    %2001 = vmatpush1.msra.mxu0 0.0
    %2002 = vmatprep.subr.mxu0 0.0
    %2003 = vmatpush1.msra.mxu0 0.0
    %2004 = vmatprep.mubr.f32.mxu0 0.0
    %2005 = vmatmul.mubr.f32.gmra.mrb[0].mxu0 %v1938
    %v2006 = vpop.f32.mrb[0].mxu0
    %v2007 = vadd.f32 %v1932, %v2006
    %v2008 = vpop.f32.mrb[0].mxu0
    %2009 = vdwg.mxu0
    %v2010 = vadd.f32 %v2007, %v355
    %v2011 = vxor.u32 %v2010, 2147483648
    %v2012 = vmul.f32 %v2011, 1.442695
    %v2013 = vpow.pop %v2012
    %v2014 = vadd.f32 %v2013, 1.0
    %v2015 = vrcp.pop %v2014
    %v2016 = vmul.f32 1.0, %v2015
    %v2017 = vtanh.pop %v2010
    %v2018 = vmul.f32 %v2016, %v1753
    %2020 = vrot.lane.b32.xlu0 %v2017, 32
    %v2021 = vpop.permute.xlu0 %2020
    %v2023 = vmul.f32 %v2016, %v2021
    %2025 = vrot.lane.b32.xlu0 %v2023, 32
    %v2026 = vpop.permute.xlu0 %2025
    %v2028 = vadd.f32 %v2018, %v2026
    %v2029 = vtanh.pop %v2028
    %2031 = vrot.lane.b32.xlu0 %v2029, 32
    %v2032 = vpop.permute.xlu0 %2031
    %v2034 = vmul.f32 %v2016, %v2032
    %2036 = vrot.lane.b32.xlu0 %v2034, 64
    %v2037 = vpop.permute.xlu0 %2036
    %s2039 = scalar_lea.vmem [#allocation10], 48
    %2040 = vst.msk [vmem:[%s2039] sm:$0xff] %vm100, %v2037
    %s2041 = scalar_lea.vmem [#allocation7], 56
    %v2042 = vld [vmem:[%s2041] sm:$0xff]
    %2043 = vmatprep.subr.mxu0 0.0
    %2044 = vmatpush1.msra.mxu0 %v80
    %2045 = vmatprep.subr.mxu0 0.0
    %2046 = vmatpush1.msra.mxu0 %v81
    %2047 = vmatprep.subr.mxu0 0.0
    %2048 = vmatpush1.msra.mxu0 %v82
    %2049 = vmatprep.subr.mxu0 0.0
    %2050 = vmatpush1.msra.mxu0 %v83
    %2051 = vmatprep.subr.mxu0 0.0
    %2052 = vmatpush1.msra.mxu0 0.0
    %2053 = vmatprep.subr.mxu0 0.0
    %2054 = vmatpush1.msra.mxu0 0.0
    %2055 = vmatprep.subr.mxu0 0.0
    %2056 = vmatpush1.msra.mxu0 0.0
    %2057 = vmatprep.subr.mxu0 0.0
    %2058 = vmatpush1.msra.mxu0 0.0
    %2059 = vmatprep.subr.mxu0 0.0
    %2060 = vmatpush1.msra.mxu0 0.0
    %2061 = vmatprep.subr.mxu0 0.0
    %2062 = vmatpush1.msra.mxu0 0.0
    %2063 = vmatprep.subr.mxu0 0.0
    %2064 = vmatpush1.msra.mxu0 0.0
    %2065 = vmatprep.subr.mxu0 0.0
    %2066 = vmatpush1.msra.mxu0 0.0
    %2067 = vmatprep.subr.mxu0 0.0
    %2068 = vmatpush1.msra.mxu0 0.0
    %2069 = vmatprep.subr.mxu0 0.0
    %2070 = vmatpush1.msra.mxu0 0.0
    %2071 = vmatprep.subr.mxu0 0.0
    %2072 = vmatpush1.msra.mxu0 0.0
    %2073 = vmatprep.subr.mxu0 0.0
    %2074 = vmatpush1.msra.mxu0 0.0
    %2075 = vmatprep.subr.mxu0 0.0
    %2076 = vmatpush1.msra.mxu0 0.0
    %2077 = vmatprep.subr.mxu0 0.0
    %2078 = vmatpush1.msra.mxu0 0.0
    %2079 = vmatprep.subr.mxu0 0.0
    %2080 = vmatpush1.msra.mxu0 0.0
    %2081 = vmatprep.subr.mxu0 0.0
    %2082 = vmatpush1.msra.mxu0 0.0
    %2083 = vmatprep.subr.mxu0 0.0
    %2084 = vmatpush1.msra.mxu0 0.0
    %2085 = vmatprep.subr.mxu0 0.0
    %2086 = vmatpush1.msra.mxu0 0.0
    %2087 = vmatprep.subr.mxu0 0.0
    %2088 = vmatpush1.msra.mxu0 0.0
    %2089 = vmatprep.subr.mxu0 0.0
    %2090 = vmatpush1.msra.mxu0 0.0
    %2091 = vmatprep.subr.mxu0 0.0
    %2092 = vmatpush1.msra.mxu0 0.0
    %2093 = vmatprep.subr.mxu0 0.0
    %2094 = vmatpush1.msra.mxu0 0.0
    %2095 = vmatprep.subr.mxu0 0.0
    %2096 = vmatpush1.msra.mxu0 0.0
    %2097 = vmatprep.subr.mxu0 0.0
    %2098 = vmatpush1.msra.mxu0 0.0
    %2099 = vmatprep.subr.mxu0 0.0
    %2100 = vmatpush1.msra.mxu0 0.0
    %2101 = vmatprep.subr.mxu0 0.0
    %2102 = vmatpush1.msra.mxu0 0.0
    %2103 = vmatprep.subr.mxu0 0.0
    %2104 = vmatpush1.msra.mxu0 0.0
    %2105 = vmatprep.subr.mxu0 0.0
    %2106 = vmatpush1.msra.mxu0 0.0
    %2107 = vmatprep.mubr.f32.mxu0 0.0
    %2108 = vmatmul.mubr.f32.gmra.mrb[0].mxu0 %v1938
    %v2109 = vpop.f32.mrb[0].mxu0
    %v2110 = vadd.f32 0.0, %v2109
    %v2111 = vpop.f32.mrb[0].mxu0
    %2112 = vdwg.mxu0
    %v2113 = vadd.f32 %v2042, %v2110
    %v2114 = vxor.u32 %v2113, 2147483648
    %v2115 = vmul.f32 %v2114, 1.442695
    %v2116 = vpow.pop %v2115
    %v2117 = vadd.f32 %v2116, 1.0
    %v2118 = vrcp.pop %v2117
    %v2119 = vmul.f32 1.0, %v2118
    %v2120 = vtanh.pop %v2113
    %v2121 = vmul.f32 %v2119, %v1856
    %2123 = vrot.lane.b32.xlu0 %v2120, 32
    %v2124 = vpop.permute.xlu0 %2123
    %v2126 = vmul.f32 %v2119, %v2124
    %2128 = vrot.lane.b32.xlu0 %v2126, 32
    %v2129 = vpop.permute.xlu0 %2128
    %v2131 = vadd.f32 %v2121, %v2129
    %v2132 = vtanh.pop %v2131
    %2134 = vrot.lane.b32.xlu0 %v2132, 32
    %v2135 = vpop.permute.xlu0 %2134
    %v2137 = vmul.f32 %v2119, %v2135
    %v2138 = vsel %vm100, %v2037, 0
    %2140 = vmatprep.subr.mxu0 0.0
    %2141 = vmatpush1.msra.mxu0 %v88
    %2142 = vmatprep.subr.mxu0 0.0
    %2143 = vmatpush1.msra.mxu0 %v89
    %2144 = vmatprep.subr.mxu0 0.0
    %2145 = vmatpush1.msra.mxu0 %v90
    %2146 = vmatprep.subr.mxu0 0.0
    %2147 = vmatpush1.msra.mxu0 %v91
    %2148 = vmatprep.subr.mxu0 0.0
    %2149 = vmatpush1.msra.mxu0 0.0
    %2150 = vmatprep.subr.mxu0 0.0
    %2151 = vmatpush1.msra.mxu0 0.0
    %2152 = vmatprep.subr.mxu0 0.0
    %2153 = vmatpush1.msra.mxu0 0.0
    %2154 = vmatprep.subr.mxu0 0.0
    %2155 = vmatpush1.msra.mxu0 0.0
    %2156 = vmatprep.subr.mxu0 0.0
    %2157 = vmatpush1.msra.mxu0 0.0
    %2158 = vmatprep.subr.mxu0 0.0
    %2159 = vmatpush1.msra.mxu0 0.0
    %2160 = vmatprep.subr.mxu0 0.0
    %2161 = vmatpush1.msra.mxu0 0.0
    %2162 = vmatprep.subr.mxu0 0.0
    %2163 = vmatpush1.msra.mxu0 0.0
    %2164 = vmatprep.subr.mxu0 0.0
    %2165 = vmatpush1.msra.mxu0 0.0
    %2166 = vmatprep.subr.mxu0 0.0
    %2167 = vmatpush1.msra.mxu0 0.0
    %2168 = vmatprep.subr.mxu0 0.0
    %2169 = vmatpush1.msra.mxu0 0.0
    %2170 = vmatprep.subr.mxu0 0.0
    %2171 = vmatpush1.msra.mxu0 0.0
    %2172 = vmatprep.subr.mxu0 0.0
    %2173 = vmatpush1.msra.mxu0 0.0
    %2174 = vmatprep.subr.mxu0 0.0
    %2175 = vmatpush1.msra.mxu0 0.0
    %2176 = vmatprep.subr.mxu0 0.0
    %2177 = vmatpush1.msra.mxu0 0.0
    %2178 = vmatprep.subr.mxu0 0.0
    %2179 = vmatpush1.msra.mxu0 0.0
    %2180 = vmatprep.subr.mxu0 0.0
    %2181 = vmatpush1.msra.mxu0 0.0
    %2182 = vmatprep.subr.mxu0 0.0
    %2183 = vmatpush1.msra.mxu0 0.0
    %2184 = vmatprep.subr.mxu0 0.0
    %2185 = vmatpush1.msra.mxu0 0.0
    %2186 = vmatprep.subr.mxu0 0.0
    %2187 = vmatpush1.msra.mxu0 0.0
    %2188 = vmatprep.subr.mxu0 0.0
    %2189 = vmatpush1.msra.mxu0 0.0
    %2190 = vmatprep.subr.mxu0 0.0
    %2191 = vmatpush1.msra.mxu0 0.0
    %2192 = vmatprep.subr.mxu0 0.0
    %2193 = vmatpush1.msra.mxu0 0.0
    %2194 = vmatprep.subr.mxu0 0.0
    %2195 = vmatpush1.msra.mxu0 0.0
    %2196 = vmatprep.subr.mxu0 0.0
    %2197 = vmatpush1.msra.mxu0 0.0
    %2198 = vmatprep.subr.mxu0 0.0
    %2199 = vmatpush1.msra.mxu0 0.0
    %2200 = vmatprep.subr.mxu0 0.0
    %2201 = vmatpush1.msra.mxu0 0.0
    %2202 = vmatprep.subr.mxu0 0.0
    %2203 = vmatpush1.msra.mxu0 0.0
    %2204 = vmatprep.mubr.f32.mxu0 0.0
    %2205 = vmatmul.mubr.f32.gmra.mrb[0].mxu0 %v2138
    %v2206 = vpop.f32.mrb[0].mxu0
    %v2207 = vadd.f32 0.0, %v2206
    %v2208 = vpop.f32.mrb[0].mxu0
    %2209 = vdwg.mxu0
    %2211 = vrot.lane.b32.xlu0 %v2137, 64
    %v2212 = vpop.permute.xlu0 %2211
    %v2213 = vsel %vm100, %v2212, 0
    %2215 = vmatprep.subr.mxu0 0.0
    %2216 = vmatpush1.msra.mxu0 %v84
    %2217 = vmatprep.subr.mxu0 0.0
    %2218 = vmatpush1.msra.mxu0 %v85
    %2219 = vmatprep.subr.mxu0 0.0
    %2220 = vmatpush1.msra.mxu0 %v86
    %2221 = vmatprep.subr.mxu0 0.0
    %2222 = vmatpush1.msra.mxu0 %v87
    %2223 = vmatprep.subr.mxu0 0.0
    %2224 = vmatpush1.msra.mxu0 0.0
    %2225 = vmatprep.subr.mxu0 0.0
    %2226 = vmatpush1.msra.mxu0 0.0
    %2227 = vmatprep.subr.mxu0 0.0
    %2228 = vmatpush1.msra.mxu0 0.0
    %2229 = vmatprep.subr.mxu0 0.0
    %2230 = vmatpush1.msra.mxu0 0.0
    %2231 = vmatprep.subr.mxu0 0.0
    %2232 = vmatpush1.msra.mxu0 0.0
    %2233 = vmatprep.subr.mxu0 0.0
    %2234 = vmatpush1.msra.mxu0 0.0
    %2235 = vmatprep.subr.mxu0 0.0
    %2236 = vmatpush1.msra.mxu0 0.0
    %2237 = vmatprep.subr.mxu0 0.0
    %2238 = vmatpush1.msra.mxu0 0.0
    %2239 = vmatprep.subr.mxu0 0.0
    %2240 = vmatpush1.msra.mxu0 0.0
    %2241 = vmatprep.subr.mxu0 0.0
    %2242 = vmatpush1.msra.mxu0 0.0
    %2243 = vmatprep.subr.mxu0 0.0
    %2244 = vmatpush1.msra.mxu0 0.0
    %2245 = vmatprep.subr.mxu0 0.0
    %2246 = vmatpush1.msra.mxu0 0.0
    %2247 = vmatprep.subr.mxu0 0.0
    %2248 = vmatpush1.msra.mxu0 0.0
    %2249 = vmatprep.subr.mxu0 0.0
    %2250 = vmatpush1.msra.mxu0 0.0
    %2251 = vmatprep.subr.mxu0 0.0
    %2252 = vmatpush1.msra.mxu0 0.0
    %2253 = vmatprep.subr.mxu0 0.0
    %2254 = vmatpush1.msra.mxu0 0.0
    %2255 = vmatprep.subr.mxu0 0.0
    %2256 = vmatpush1.msra.mxu0 0.0
    %2257 = vmatprep.subr.mxu0 0.0
    %2258 = vmatpush1.msra.mxu0 0.0
    %2259 = vmatprep.subr.mxu0 0.0
    %2260 = vmatpush1.msra.mxu0 0.0
    %2261 = vmatprep.subr.mxu0 0.0
    %2262 = vmatpush1.msra.mxu0 0.0
    %2263 = vmatprep.subr.mxu0 0.0
    %2264 = vmatpush1.msra.mxu0 0.0
    %2265 = vmatprep.subr.mxu0 0.0
    %2266 = vmatpush1.msra.mxu0 0.0
    %2267 = vmatprep.subr.mxu0 0.0
    %2268 = vmatpush1.msra.mxu0 0.0
    %2269 = vmatprep.subr.mxu0 0.0
    %2270 = vmatpush1.msra.mxu0 0.0
    %2271 = vmatprep.subr.mxu0 0.0
    %2272 = vmatpush1.msra.mxu0 0.0
    %2273 = vmatprep.subr.mxu0 0.0
    %2274 = vmatpush1.msra.mxu0 0.0
    %2275 = vmatprep.subr.mxu0 0.0
    %2276 = vmatpush1.msra.mxu0 0.0
    %2277 = vmatprep.subr.mxu0 0.0
    %2278 = vmatpush1.msra.mxu0 0.0
    %2279 = vmatprep.mubr.f32.mxu0 0.0
    %2280 = vmatmul.mubr.f32.gmra.mrb[0].mxu0 %v2213
    %v2281 = vpop.f32.mrb[0].mxu0
    %v2282 = vadd.f32 %v2207, %v2281
    %v2283 = vpop.f32.mrb[0].mxu0
    %2284 = vdwg.mxu0
    %v2285 = vadd.f32 %v2282, %v355
    %v2286 = vxor.u32 %v2285, 2147483648
    %v2287 = vmul.f32 %v2286, 1.442695
    %v2288 = vpow.pop %v2287
    %v2289 = vadd.f32 %v2288, 1.0
    %v2290 = vrcp.pop %v2289
    %v2291 = vmul.f32 1.0, %v2290
    %v2292 = vtanh.pop %v2285
    %v2293 = vmul.f32 %v2291, %v2028
    %2295 = vrot.lane.b32.xlu0 %v2292, 32
    %v2296 = vpop.permute.xlu0 %2295
    %v2298 = vmul.f32 %v2291, %v2296
    %2300 = vrot.lane.b32.xlu0 %v2298, 32
    %v2301 = vpop.permute.xlu0 %2300
    %v2303 = vadd.f32 %v2293, %v2301
    %v2304 = vtanh.pop %v2303
    %2306 = vrot.lane.b32.xlu0 %v2304, 32
    %v2307 = vpop.permute.xlu0 %2306
    %v2309 = vmul.f32 %v2291, %v2307
    %2311 = vrot.lane.b32.xlu0 %v2309, 64
    %v2312 = vpop.permute.xlu0 %2311
    %s2314 = scalar_lea.vmem [#allocation10], 56
    %2315 = vst.msk [vmem:[%s2314] sm:$0xff] %vm100, %v2312
    %2317 = vst.msk [vmem:[#allocation2] sm:$0xff] %vm100, %v2212
    %2319 = vrot.lane.b32.xlu0 %v2131, 96
    %v2320 = vpop.permute.xlu0 %2319
    %2322 = vst.msk [vmem:[#allocation3] sm:$0xff] %vm100, %v2320
    %2323 = vst.msk [vmem:[%s94] sm:$0xff] %vm100, %v2312
    %2325 = vrot.lane.b32.xlu0 %v2303, 96
    %v2326 = vpop.permute.xlu0 %2325
    %2328 = vst.msk [vmem:[%s97] sm:$0xff] %vm100, %v2326
    // Predicated region
    $region33: #{tpu_custom_call.1} parent=1 // pred_check
      _
    $region34: #{tpu_custom_call.1} parent=1 // pred_check_branch
      %2330 = sbr.rel (0) target = $region36
    $region35: #{tpu_custom_call.1} parent=1 // pred_region
      %s2332 = ssub.s32 1024, 1024
      %2333 = vsyncadd [#allocation9], %s2332
      %s2334 = sshll.u32 [#allocation10], 4
      %s2335 = int_to_ptr.vmem [resolvable:$true] %s2334
      %2340 = dma.vmem_to_hbm [thread:$0]  %s2335, 1024, %s5, [#allocation9], 128, 128, 8
    $region36: #{tpu_custom_call.1} parent=1 // pred_fallthru
      _
    // Predicated region
    $region37: #{tpu_custom_call.1} parent=1 // pred_check
      _
    $region38: #{tpu_custom_call.1} parent=1 // pred_check_branch
      %2342 = sbr.rel (0) target = $region40
    $region39: #{tpu_custom_call.1} parent=1 // pred_region
      %2343 = dma.done [#allocation9], 1024
    $region40: #{tpu_custom_call.1} parent=1 // pred_fallthru
      _
    %2344 = vsyncpa [#allocation8], 1
    %2345 = vsyncpa [#allocation9], 1

</llo_original>
